<compile_context>
chip_gen: v6e
topology: v6e:2x2x1
jax: 0.10.0
libtpu: 0.0.40
codegen_flags: <defaults>
</compile_context>

<pallas_src>
import functools

import jax
import jax.numpy as jnp
from jax.experimental import pallas as pl
from jax.experimental.pallas import tpu as pltpu


# ---------------------------------------------------------------------------
# In-kernel helpers
# ---------------------------------------------------------------------------
def _bn_relu(y, gamma_t, beta_t, chans, eps):
    """Training-mode BatchNorm (biased var) + ReLU on a lane-packed layout.

    y: (rows, lanes) f32 where lanes are (replica, channel) packed with period
    `chans`; gamma_t/beta_t: (1, lanes) pre-tiled.  Stats are pooled over all
    rows and all lane replicas of a channel via log2(G) roll+add folds.
    """
    rows, lanes = y.shape
    group = lanes // chans                 # replicas of each channel per row
    count = rows * group                   # = N * Ho * Wo

    s1 = jnp.sum(y, axis=0, keepdims=True)
    s2 = jnp.sum(y * y, axis=0, keepdims=True)
    stats = jnp.concatenate([s1, s2], axis=0)            # (2, lanes)

    shift = lanes // 2
    while shift >= chans:                  # log2(group) XLU roll+adds
        stats = stats + pltpu.roll(stats, shift, axis=1)
        shift //= 2
    # Every lane now holds its channel's total, already broadcast in-layout.

    inv = 1.0 / float(count)
    mean = stats[0:1, :] * inv
    var = stats[1:2, :] * inv - mean * mean
    scale = gamma_t * jax.lax.rsqrt(var + eps)
    offs = beta_t - mean * scale
    return jnp.maximum(y * scale + offs, 0.0)


def _upsampled(a_ref, b_ref, *, h_in, v):
    """stride-2 / pad-1 / 4x4 transposed conv via one matmul + row overlap-add.

    a_ref: (N*H, W*Cin) bf16, b_ref: (W*Cin, 4*V) bf16 banded weight with
    column blocks [kh=1 | kh=2 | kh=3 | kh=0], V = Wo*Cout.
    Returns (N*H, 2*V) f32 packed as [even output row | odd output row].
    """
    cols = jnp.dot(a_ref[...], b_ref[...],
                   preferred_element_type=jnp.float32)    # (N*H, 4V)
    mid = cols[:, : 2 * v]                 # [kh=1 -> even | kh=2 -> odd], same row
    s_dn = cols[:, 2 * v: 3 * v]           # kh=3 -> even row, comes from row above
    s_up = cols[:, 3 * v: 4 * v]           # kh=0 -> odd row, comes from row below

    nh = cols.shape[0]
    ih = jax.lax.broadcasted_iota(jnp.int32, (nh, v), 0) % h_in
    e_extra = jnp.where(ih != 0, jnp.roll(s_dn, 1, axis=0), 0.0)
    o_extra = jnp.where(ih != h_in - 1, jnp.roll(s_up, -1, axis=0), 0.0)
    return mid + jnp.concatenate([e_extra, o_extra], axis=1)


# ---------------------------------------------------------------------------
# Per-layer fused kernels (single invocation, everything resident in VMEM)
# ---------------------------------------------------------------------------
def _first_kernel(a_ref, b_ref, g_ref, bb_ref, o_ref, *, chans, eps):
    # 1x1 input, stride 1, pad 0: the matmul output IS the NHWC output.
    y = jnp.dot(a_ref[...], b_ref[...], preferred_element_type=jnp.float32)
    y = _bn_relu(y, g_ref[...], bb_ref[...], chans, eps)
    o_ref[...] = y.astype(o_ref.dtype)


def _up_bn_relu_kernel(a_ref, b_ref, g_ref, bb_ref, o_ref, *, h_in, v, chans, eps):
    y = _upsampled(a_ref, b_ref, h_in=h_in, v=v)
    y = _bn_relu(y, g_ref[...], bb_ref[...], chans, eps)
    o_ref[...] = y.astype(o_ref.dtype)


def _up_tanh_kernel(a_ref, b_ref, o_ref, *, h_in, v):
    y = _upsampled(a_ref, b_ref, h_in=h_in, v=v)
    o_ref[...] = jnp.tanh(y).astype(o_ref.dtype)


def _first_layer(a, B, g_t, b_t, *, chans, eps, out_dtype):
    rows, lanes = a.shape[0], B.shape[1]
    return pl.pallas_call(
        functools.partial(_first_kernel, chans=chans, eps=eps),
        out_shape=jax.ShapeDtypeStruct((rows, lanes), out_dtype),
    )(a, B, g_t, b_t)


def _up_bn_relu_layer(a, B, g_t, b_t, *, h_in, v, chans, eps, out_dtype):
    rows = a.shape[0]
    return pl.pallas_call(
        functools.partial(_up_bn_relu_kernel, h_in=h_in, v=v, chans=chans, eps=eps),
        out_shape=jax.ShapeDtypeStruct((rows, 2 * v), out_dtype),
    )(a, B, g_t, b_t)


def _up_tanh_layer(a, B, *, h_in, v):
    rows = a.shape[0]
    return pl.pallas_call(
        functools.partial(_up_tanh_kernel, h_in=h_in, v=v),
        out_shape=jax.ShapeDtypeStruct((rows, 2 * v), jnp.float32),
    )(a, B)


# ---------------------------------------------------------------------------
# One-time parameter preprocessing (banded weights, tiled BN params, metadata)
# ---------------------------------------------------------------------------
def prepare_params(params, nz, ngf, NC, eps=1e-5):
    K = 4
    chan = [nz, ngf * 8, ngf * 4, ngf * 2, ngf, NC]
    layers = []
    h_in = 1
    for i in range(1, 6):
        w = jnp.asarray(params[f"w{i}"], jnp.float32)         # (Cin, Cout, K, K)
        cin, cout = chan[i - 1], chan[i]
        assert w.shape == (cin, cout, K, K)

        if i == 1:
            # stride 1, pad 0, 1x1 spatial input.
            B = jnp.transpose(w, (0, 2, 3, 1)).reshape(cin, K * K * cout)
            meta = dict(kind="first", chans=cout, h_in=1, w_in=1,
                        v=0, lanes=K * K * cout)
            h_out = K
        else:
            # stride 2, pad 1, K=4: fold the width direction into the weight.
            W_in, Wo = h_in, 2 * h_in
            cop = cout if i < 5 else ((cout + 3) // 4) * 4    # lane-align layer 5
            wp = jnp.pad(w, ((0, 0), (0, cop - cout), (0, 0), (0, 0)))
            iw = jnp.arange(W_in)[:, None, None]
            kw = jnp.arange(K)[None, :, None]
            ow = jnp.arange(Wo)[None, None, :]
            sel = (ow == 2 * iw - 1 + kw).astype(jnp.float32)  # (W, K, Wo)

            def _block(kh, sel=sel, wp=wp, W_in=W_in, cin=cin, Wo=Wo, cop=cop):
                blk = jnp.einsum("wko,cdk->wcod", sel, wp[:, :, kh, :])
                return blk.reshape(W_in * cin, Wo * cop)

            # column order: [even-direct | odd-direct | even-from-above | odd-from-below]
            B = jnp.concatenate([_block(1), _block(2), _block(3), _block(0)], axis=1)
            meta = dict(kind="up", chans=cop, h_in=h_in, w_in=W_in,
                        v=Wo * cop, lanes=2 * Wo * cop)
            h_out = 2 * h_in

        entry = dict(B=B.astype(jnp.bfloat16), meta=meta)
        if i < 5:
            g = jnp.asarray(params[f"g{i}"], jnp.float32)
            b = jnp.asarray(params[f"b{i}"], jnp.float32)
            reps = meta["lanes"] // cout
            entry["gamma_t"] = jnp.tile(g, reps).reshape(1, meta["lanes"])
            entry["beta_t"] = jnp.tile(b, reps).reshape(1, meta["lanes"])
        layers.append(entry)
        h_in = h_out
    return dict(layers=layers, eps=eps, NC=NC, out_hw=h_in)


def generator_forward(x_nchw, prepped):
    """Forward pass equivalent to Generator.forward(x) (training-mode BN)."""
    layers = prepped["layers"]
    eps = prepped["eps"]
    N = x_nchw.shape[0]
    n_layers = len(layers)

    # (N, nz, 1, 1) NCHW == NHWC when H = W = 1.
    a = x_nchw.reshape(N, -1).astype(jnp.bfloat16)
    y = None
    for idx, layer in enumerate(layers):
        meta = layer["meta"]
        last = idx == n_layers - 1
        out_dtype = jnp.float32 if last else jnp.bfloat16
        if meta["kind"] == "first":
            y = _first_layer(a, layer["B"], layer["gamma_t"], layer["beta_t"],
                             chans=meta["chans"], eps=eps, out_dtype=out_dtype)
        elif not last:
            y = _up_bn_relu_layer(a, layer["B"], layer["gamma_t"], layer["beta_t"],
                                  h_in=meta["h_in"], v=meta["v"],
                                  chans=meta["chans"], eps=eps,
                                  out_dtype=out_dtype)
        else:
            y = _up_tanh_layer(a, layer["B"], h_in=meta["h_in"], v=meta["v"])
        if not last:
            # Free reshape: packed rows are exactly flat NHWC, i.e. the next
            # layer's (N*H', W'*Cin') matmul operand.
            nxt = layers[idx + 1]["meta"]
            a = y.reshape(N * nxt["h_in"], -1)

    hw = prepped["out_hw"]
    cop = layers[-1]["meta"]["chans"]
    out = y.reshape(N, hw, hw, cop)[..., :prepped["NC"]]
    return jnp.transpose(out, (0, 3, 1, 2))                   # NHWC -> NCHW


# ---------------------------------------------------------------------------
# Pure-JAX f32 reference (naive overlap-add) for correctness checking
# ---------------------------------------------------------------------------
def _convT_ref(x, w, stride, pad):
    N, H, W, _ = x.shape
    Cout, K = w.shape[1], w.shape[2]
    Ho = (H - 1) * stride - 2 * pad + K
    Wo = (W - 1) * stride - 2 * pad + K
    yp = jnp.zeros((N, (H - 1) * stride + K, (W - 1) * stride + K, Cout),
                   jnp.float32)
    for kh in range(K):
        for kw in range(K):
            contrib = jnp.einsum("nhwc,cd->nhwd", x, w[:, :, kh, kw])
            yp = yp.at[:, kh:kh + stride * (H - 1) + 1:stride,
                          kw:kw + stride * (W - 1) + 1:stride, :].add(contrib)
    return yp[:, pad:pad + Ho, pad:pad + Wo, :]


def _generator_ref(x_nchw, params, eps=1e-5):
    cfg = [(1, 0, True), (2, 1, True), (2, 1, True), (2, 1, True), (2, 1, False)]
    x = jnp.transpose(x_nchw, (0, 2, 3, 1)).astype(jnp.float32)
    for i, (stride, pad, has_bn) in enumerate(cfg, start=1):
        x = _convT_ref(x, jnp.asarray(params[f"w{i}"], jnp.float32), stride, pad)
        if has_bn:
            mean = x.mean(axis=(0, 1, 2))
            var = x.var(axis=(0, 1, 2))          # biased (training-mode BN)
            x = (x - mean) * params[f"g{i}"] / jnp.sqrt(var + eps) + params[f"b{i}"]
            x = jnp.maximum(x, 0.0)
        else:
            x = jnp.tanh(x)
    return jnp.transpose(x, (0, 3, 1, 2))


if __name__ == "__main__":
    # Small deterministic configuration: nz=16, ngf=8, NC=3, batch=2.
    nz, ngf, NC, batch = 16, 8, 3, 2
    key = jax.random.PRNGKey(0)
    keys = jax.random.split(key, 10)

    def winit(k, shape):
        return 0.02 * jax.random.normal(k, shape, jnp.float32)   # DCGAN-style

    def bninit(k, n):
        k1, k2 = jax.random.split(k)
        return (1.0 + 0.1 * jax.random.normal(k1, (n,), jnp.float32),
                0.05 * jax.random.normal(k2, (n,), jnp.float32))

    params = {
        "w1": winit(keys[0], (nz, ngf * 8, 4, 4)),
        "w2": winit(keys[1], (ngf * 8, ngf * 4, 4, 4)),
        "w3": winit(keys[2], (ngf * 4, ngf * 2, 4, 4)),
        "w4": winit(keys[3], (ngf * 2, ngf, 4, 4)),
        "w5": winit(keys[4], (ngf, NC, 4, 4)),
    }
    params["g1"], params["b1"] = bninit(keys[6], ngf * 8)
    params["g2"], params["b2"] = bninit(keys[7], ngf * 4)
    params["g3"], params["b3"] = bninit(keys[8], ngf * 2)
    params["g4"], params["b4"] = bninit(keys[9], ngf)

    x = jax.random.normal(keys[5], (batch, nz, 1, 1), jnp.float32)

    prepped = prepare_params(params, nz=nz, ngf=ngf, NC=NC)   # one-time prep
    fwd = jax.jit(lambda xx: generator_forward(xx, prepped))
    out = jax.block_until_ready(fwd(x))

    assert out.shape == (batch, NC, 64, 64), out.shape
    assert bool(jnp.all(jnp.isfinite(out)))
    assert bool(jnp.all(jnp.abs(out) <= 1.0 + 1e-4))          # tanh range

    ref = _generator_ref(x, params)
    max_err = float(jnp.max(jnp.abs(out - ref)))
    # bf16 weights/activations with f32 accumulation -> small deviation vs f32.
    assert max_err < 5e-2, f"max abs err vs f32 reference: {max_err}"
    print("KERNEL_OK")
</pallas_src>

<mosaic_0001>
module attributes {stable_mosaic.version = 11 : i64} {
  func.func @_first_kernel(%arg0: memref<2x16xbf16, #tpu.memory_space<vmem>>, %arg1: memref<16x1024xbf16, #tpu.memory_space<vmem>>, %arg2: memref<1x1024xf32, #tpu.memory_space<vmem>>, %arg3: memref<1x1024xf32, #tpu.memory_space<vmem>>, %arg4: memref<2x1024xbf16, #tpu.memory_space<vmem>>) attributes {dimension_semantics = [], scalar_prefetch = 0 : i64, scratch_operands = 0 : i64, tpu.core_type = #tpu.core_type<tc>} {
    %c0 = arith.constant 0 : index
    %c0_0 = arith.constant 0 : index
    %0 = vector.load %arg0[%c0, %c0_0] : memref<2x16xbf16, #tpu.memory_space<vmem>>, vector<2x16xbf16>
    %c0_1 = arith.constant 0 : index
    %c0_2 = arith.constant 0 : index
    %1 = vector.load %arg1[%c0_1, %c0_2] : memref<16x1024xbf16, #tpu.memory_space<vmem>>, vector<16x1024xbf16>
    %cst = arith.constant dense<0.000000e+00> : vector<2x1024xf32>
    %2 = tpu.matmul %0, %1, %cst {dimension_numbers = #tpu.dot_dimension_numbers<[1], [0], [0], [1], [0, 0, 1, 1], [], []>} : vector<2x16xbf16>, vector<16x1024xbf16>, vector<2x1024xf32> -> vector<2x1024xf32>
    %c0_3 = arith.constant 0 : index
    %c0_4 = arith.constant 0 : index
    %3 = vector.load %arg2[%c0_3, %c0_4] : memref<1x1024xf32, #tpu.memory_space<vmem>>, vector<1x1024xf32>
    %c0_5 = arith.constant 0 : index
    %c0_6 = arith.constant 0 : index
    %4 = vector.load %arg3[%c0_5, %c0_6] : memref<1x1024xf32, #tpu.memory_space<vmem>>, vector<1x1024xf32>
    %cst_7 = arith.constant dense<0.000000e+00> : vector<1024xf32>
    %5 = vector.multi_reduction <add>, %2, %cst_7 [0] : vector<2x1024xf32> to vector<1024xf32>
    %6 = vector.shape_cast %5 : vector<1024xf32> to vector<1x1024xf32>
    %7 = arith.mulf %2, %2 : vector<2x1024xf32>
    %cst_8 = arith.constant dense<0.000000e+00> : vector<1024xf32>
    %8 = vector.multi_reduction <add>, %7, %cst_8 [0] : vector<2x1024xf32> to vector<1024xf32>
    %9 = vector.shape_cast %8 : vector<1024xf32> to vector<1x1024xf32>
    %10 = tpu.concatenate %6, %9 in 0 : vector<1x1024xf32>, vector<1x1024xf32> -> vector<2x1024xf32>
    %c512_i32 = arith.constant 512 : i32
    %11 = tpu.dynamic_rotate %10 by %c512_i32 dim 1 : vector<2x1024xf32>, i32 -> vector<2x1024xf32>
    %12 = arith.addf %10, %11 : vector<2x1024xf32>
    %c256_i32 = arith.constant 256 : i32
    %13 = tpu.dynamic_rotate %12 by %c256_i32 dim 1 : vector<2x1024xf32>, i32 -> vector<2x1024xf32>
    %14 = arith.addf %12, %13 : vector<2x1024xf32>
    %c128_i32 = arith.constant 128 : i32
    %15 = tpu.dynamic_rotate %14 by %c128_i32 dim 1 : vector<2x1024xf32>, i32 -> vector<2x1024xf32>
    %16 = arith.addf %14, %15 : vector<2x1024xf32>
    %c64_i32 = arith.constant 64 : i32
    %17 = tpu.dynamic_rotate %16 by %c64_i32 dim 1 : vector<2x1024xf32>, i32 -> vector<2x1024xf32>
    %18 = arith.addf %16, %17 : vector<2x1024xf32>
    %19 = vector.extract_strided_slice %18 {offsets = [0, 0], sizes = [1, 1024], strides = [1, 1]} : vector<2x1024xf32> to vector<1x1024xf32>
    %cst_9 = arith.constant 3.125000e-02 : f32
    %20 = vector.broadcast %cst_9 : f32 to vector<1x1024xf32>
    %21 = arith.mulf %19, %20 : vector<1x1024xf32>
    %22 = vector.extract_strided_slice %18 {offsets = [1, 0], sizes = [1, 1024], strides = [1, 1]} : vector<2x1024xf32> to vector<1x1024xf32>
    %cst_10 = arith.constant 3.125000e-02 : f32
    %23 = vector.broadcast %cst_10 : f32 to vector<1x1024xf32>
    %24 = arith.mulf %22, %23 : vector<1x1024xf32>
    %25 = arith.mulf %21, %21 : vector<1x1024xf32>
    %26 = arith.subf %24, %25 : vector<1x1024xf32>
    %cst_11 = arith.constant 9.99999974E-6 : f32
    %27 = vector.broadcast %cst_11 : f32 to vector<1x1024xf32>
    %28 = arith.addf %26, %27 : vector<1x1024xf32>
    %29 = math.rsqrt %28 : vector<1x1024xf32>
    %30 = arith.mulf %3, %29 : vector<1x1024xf32>
    %31 = arith.mulf %21, %30 : vector<1x1024xf32>
    %32 = arith.subf %4, %31 : vector<1x1024xf32>
    %33 = vector.broadcast %30 : vector<1x1024xf32> to vector<2x1024xf32>
    %34 = arith.mulf %2, %33 : vector<2x1024xf32>
    %35 = vector.broadcast %32 : vector<1x1024xf32> to vector<2x1024xf32>
    %36 = arith.addf %34, %35 : vector<2x1024xf32>
    %cst_12 = arith.constant 0.000000e+00 : f32
    %37 = vector.broadcast %cst_12 : f32 to vector<2x1024xf32>
    %38 = arith.maximumf %36, %37 : vector<2x1024xf32>
    %39 = arith.truncf %38 : vector<2x1024xf32> to vector<2x1024xbf16>
    %c0_13 = arith.constant 0 : index
    %c0_14 = arith.constant 0 : index
    %40 = vector.load %arg4[%c0_13, %c0_14] : memref<2x1024xbf16, #tpu.memory_space<vmem>>, vector<2x1024xbf16>
    tpu.vector_store %arg4[%c0_13, %c0_14], %39 {strides = array<i32>} : memref<2x1024xbf16, #tpu.memory_space<vmem>>, vector<2x1024xbf16>,
    return
  }
}

module attributes {stable_mosaic.version = 11 : i64} {
  func.func @_up_bn_relu_kernel(%arg0: memref<32x256xbf16, #tpu.memory_space<vmem>>, %arg1: memref<256x1024xbf16, #tpu.memory_space<vmem>>, %arg2: memref<1x512xf32, #tpu.memory_space<vmem>>, %arg3: memref<1x512xf32, #tpu.memory_space<vmem>>, %arg4: memref<32x512xbf16, #tpu.memory_space<vmem>>) attributes {dimension_semantics = [], scalar_prefetch = 0 : i64, scratch_operands = 0 : i64, tpu.core_type = #tpu.core_type<tc>} {
    %c0 = arith.constant 0 : index
    %c0_0 = arith.constant 0 : index
    %0 = vector.load %arg0[%c0, %c0_0] : memref<32x256xbf16, #tpu.memory_space<vmem>>, vector<32x256xbf16>
    %c0_1 = arith.constant 0 : index
    %c0_2 = arith.constant 0 : index
    %1 = vector.load %arg1[%c0_1, %c0_2] : memref<256x1024xbf16, #tpu.memory_space<vmem>>, vector<256x1024xbf16>
    %cst = arith.constant dense<0.000000e+00> : vector<32x1024xf32>
    %2 = tpu.matmul %0, %1, %cst {dimension_numbers = #tpu.dot_dimension_numbers<[1], [0], [0], [1], [0, 0, 1, 1], [], []>} : vector<32x256xbf16>, vector<256x1024xbf16>, vector<32x1024xf32> -> vector<32x1024xf32>
    %3 = vector.extract_strided_slice %2 {offsets = [0, 0], sizes = [32, 512], strides = [1, 1]} : vector<32x1024xf32> to vector<32x512xf32>
    %4 = vector.extract_strided_slice %2 {offsets = [0, 512], sizes = [32, 256], strides = [1, 1]} : vector<32x1024xf32> to vector<32x256xf32>
    %5 = vector.extract_strided_slice %2 {offsets = [0, 768], sizes = [32, 256], strides = [1, 1]} : vector<32x1024xf32> to vector<32x256xf32>
    %6 = tpu.iota {dimensions = array<i32: 0>} : vector<32x256xi32>
    %c16_i32 = arith.constant 16 : i32
    %c0_i32 = arith.constant 0 : i32
    %7 = arith.cmpi eq, %c16_i32, %c0_i32 : i32
    %c1_i32 = arith.constant 1 : i32
    %8 = arith.select %7, %c1_i32, %c16_i32 : i32
    %9 = vector.broadcast %8 : i32 to vector<32x256xi32>
    %10 = arith.remsi %6, %9 : vector<32x256xi32>
    %c0_i32_3 = arith.constant 0 : i32
    %11 = vector.broadcast %c0_i32_3 : i32 to vector<32x256xi32>
    %12 = arith.cmpi ne, %10, %11 : vector<32x256xi32>
    %c0_i32_4 = arith.constant 0 : i32
    %13 = vector.broadcast %c0_i32_4 : i32 to vector<32x256xi32>
    %14 = arith.cmpi slt, %10, %13 : vector<32x256xi32>
    %c0_i32_5 = arith.constant 0 : i32
    %15 = arith.cmpi slt, %8, %c0_i32_5 : i32
    %16 = vector.broadcast %15 : i1 to vector<32x256xi1>
    %17 = vector.broadcast %16 : vector<32x256xi1> to vector<32x256xi1>
    %18 = arith.xori %14, %17 : vector<32x256xi1>
    %19 = arith.andi %18, %12 : vector<32x256xi1>
    %20 = vector.broadcast %8 : i32 to vector<32x256xi32>
    %21 = arith.addi %10, %20 : vector<32x256xi32>
    %22 = arith.select %19, %21, %10 : vector<32x256xi1>, vector<32x256xi32>
    %c0_i32_6 = arith.constant 0 : i32
    %23 = vector.broadcast %c0_i32_6 : i32 to vector<32x256xi32>
    %24 = arith.cmpi ne, %22, %23 : vector<32x256xi32>
    %25 = vector.extract_strided_slice %4 {offsets = [31, 0], sizes = [1, 256], strides = [1, 1]} : vector<32x256xf32> to vector<1x256xf32>
    %26 = vector.extract_strided_slice %4 {offsets = [0, 0], sizes = [31, 256], strides = [1, 1]} : vector<32x256xf32> to vector<31x256xf32>
    %27 = tpu.concatenate %25, %26 in 0 : vector<1x256xf32>, vector<31x256xf32> -> vector<32x256xf32>
    %cst_7 = arith.constant 0.000000e+00 : f32
    %28 = vector.broadcast %cst_7 : f32 to vector<32x256xf32>
    %29 = arith.select %24, %27, %28 : vector<32x256xi1>, vector<32x256xf32>
    %c15_i32 = arith.constant 15 : i32
    %30 = vector.broadcast %c15_i32 : i32 to vector<32x256xi32>
    %31 = arith.cmpi ne, %22, %30 : vector<32x256xi32>
    %32 = vector.extract_strided_slice %5 {offsets = [1, 0], sizes = [31, 256], strides = [1, 1]} : vector<32x256xf32> to vector<31x256xf32>
    %33 = vector.extract_strided_slice %5 {offsets = [0, 0], sizes = [1, 256], strides = [1, 1]} : vector<32x256xf32> to vector<1x256xf32>
    %34 = tpu.concatenate %32, %33 in 0 : vector<31x256xf32>, vector<1x256xf32> -> vector<32x256xf32>
    %cst_8 = arith.constant 0.000000e+00 : f32
    %35 = vector.broadcast %cst_8 : f32 to vector<32x256xf32>
    %36 = arith.select %31, %34, %35 : vector<32x256xi1>, vector<32x256xf32>
    %37 = tpu.concatenate %29, %36 in 1 : vector<32x256xf32>, vector<32x256xf32> -> vector<32x512xf32>
    %38 = arith.addf %3, %37 : vector<32x512xf32>
    %c0_9 = arith.constant 0 : index
    %c0_10 = arith.constant 0 : index
    %39 = vector.load %arg2[%c0_9, %c0_10] : memref<1x512xf32, #tpu.memory_space<vmem>>, vector<1x512xf32>
    %c0_11 = arith.constant 0 : index
    %c0_12 = arith.constant 0 : index
    %40 = vector.load %arg3[%c0_11, %c0_12] : memref<1x512xf32, #tpu.memory_space<vmem>>, vector<1x512xf32>
    %cst_13 = arith.constant dense<0.000000e+00> : vector<512xf32>
    %41 = vector.multi_reduction <add>, %38, %cst_13 [0] : vector<32x512xf32> to vector<512xf32>
    %42 = vector.shape_cast %41 : vector<512xf32> to vector<1x512xf32>
    %43 = arith.mulf %38, %38 : vector<32x512xf32>
    %cst_14 = arith.constant dense<0.000000e+00> : vector<512xf32>
    %44 = vector.multi_reduction <add>, %43, %cst_14 [0] : vector<32x512xf32> to vector<512xf32>
    %45 = vector.shape_cast %44 : vector<512xf32> to vector<1x512xf32>
    %46 = tpu.concatenate %42, %45 in 0 : vector<1x512xf32>, vector<1x512xf32> -> vector<2x512xf32>
    %c256_i32 = arith.constant 256 : i32
    %47 = tpu.dynamic_rotate %46 by %c256_i32 dim 1 : vector<2x512xf32>, i32 -> vector<2x512xf32>
    %48 = arith.addf %46, %47 : vector<2x512xf32>
    %c128_i32 = arith.constant 128 : i32
    %49 = tpu.dynamic_rotate %48 by %c128_i32 dim 1 : vector<2x512xf32>, i32 -> vector<2x512xf32>
    %50 = arith.addf %48, %49 : vector<2x512xf32>
    %c64_i32 = arith.constant 64 : i32
    %51 = tpu.dynamic_rotate %50 by %c64_i32 dim 1 : vector<2x512xf32>, i32 -> vector<2x512xf32>
    %52 = arith.addf %50, %51 : vector<2x512xf32>
    %c32_i32 = arith.constant 32 : i32
    %53 = tpu.dynamic_rotate %52 by %c32_i32 dim 1 : vector<2x512xf32>, i32 -> vector<2x512xf32>
    %54 = arith.addf %52, %53 : vector<2x512xf32>
    %c16_i32_15 = arith.constant 16 : i32
    %55 = tpu.dynamic_rotate %54 by %c16_i32_15 dim 1 : vector<2x512xf32>, i32 -> vector<2x512xf32>
    %56 = arith.addf %54, %55 : vector<2x512xf32>
    %c8_i32 = arith.constant 8 : i32
    %57 = tpu.dynamic_rotate %56 by %c8_i32 dim 1 : vector<2x512xf32>, i32 -> vector<2x512xf32>
    %58 = arith.addf %56, %57 : vector<2x512xf32>
    %59 = vector.extract_strided_slice %58 {offsets = [0, 0], sizes = [1, 512], strides = [1, 1]} : vector<2x512xf32> to vector<1x512xf32>
    %cst_16 = arith.constant 4.8828125E-4 : f32
    %60 = vector.broadcast %cst_16 : f32 to vector<1x512xf32>
    %61 = arith.mulf %59, %60 : vector<1x512xf32>
    %62 = vector.extract_strided_slice %58 {offsets = [1, 0], sizes = [1, 512], strides = [1, 1]} : vector<2x512xf32> to vector<1x512xf32>
    %cst_17 = arith.constant 4.8828125E-4 : f32
    %63 = vector.broadcast %cst_17 : f32 to vector<1x512xf32>
    %64 = arith.mulf %62, %63 : vector<1x512xf32>
    %65 = arith.mulf %61, %61 : vector<1x512xf32>
    %66 = arith.subf %64, %65 : vector<1x512xf32>
    %cst_18 = arith.constant 9.99999974E-6 : f32
    %67 = vector.broadcast %cst_18 : f32 to vector<1x512xf32>
    %68 = arith.addf %66, %67 : vector<1x512xf32>
    %69 = math.rsqrt %68 : vector<1x512xf32>
    %70 = arith.mulf %39, %69 : vector<1x512xf32>
    %71 = arith.mulf %61, %70 : vector<1x512xf32>
    %72 = arith.subf %40, %71 : vector<1x512xf32>
    %73 = vector.broadcast %70 : vector<1x512xf32> to vector<32x512xf32>
    %74 = arith.mulf %38, %73 : vector<32x512xf32>
    %75 = vector.broadcast %72 : vector<1x512xf32> to vector<32x512xf32>
    %76 = arith.addf %74, %75 : vector<32x512xf32>
    %cst_19 = arith.constant 0.000000e+00 : f32
    %77 = vector.broadcast %cst_19 : f32 to vector<32x512xf32>
    %78 = arith.maximumf %76, %77 : vector<32x512xf32>
    %79 = arith.truncf %78 : vector<32x512xf32> to vector<32x512xbf16>
    %c0_20 = arith.constant 0 : index
    %c0_21 = arith.constant 0 : index
    %80 = vector.load %arg4[%c0_20, %c0_21] : memref<32x512xbf16, #tpu.memory_space<vmem>>, vector<32x512xbf16>
    tpu.vector_store %arg4[%c0_20, %c0_21], %79 {strides = array<i32>} : memref<32x512xbf16, #tpu.memory_space<vmem>>, vector<32x512xbf16>,
    return
  }
}

module attributes {stable_mosaic.version = 11 : i64} {
  func.func @_up_bn_relu_kernel(%arg0: memref<8x256xbf16, #tpu.memory_space<vmem>>, %arg1: memref<256x1024xbf16, #tpu.memory_space<vmem>>, %arg2: memref<1x512xf32, #tpu.memory_space<vmem>>, %arg3: memref<1x512xf32, #tpu.memory_space<vmem>>, %arg4: memref<8x512xbf16, #tpu.memory_space<vmem>>) attributes {dimension_semantics = [], scalar_prefetch = 0 : i64, scratch_operands = 0 : i64, tpu.core_type = #tpu.core_type<tc>} {
    %c0 = arith.constant 0 : index
    %c0_0 = arith.constant 0 : index
    %0 = vector.load %arg0[%c0, %c0_0] : memref<8x256xbf16, #tpu.memory_space<vmem>>, vector<8x256xbf16>
    %c0_1 = arith.constant 0 : index
    %c0_2 = arith.constant 0 : index
    %1 = vector.load %arg1[%c0_1, %c0_2] : memref<256x1024xbf16, #tpu.memory_space<vmem>>, vector<256x1024xbf16>
    %cst = arith.constant dense<0.000000e+00> : vector<8x1024xf32>
    %2 = tpu.matmul %0, %1, %cst {dimension_numbers = #tpu.dot_dimension_numbers<[1], [0], [0], [1], [0, 0, 1, 1], [], []>} : vector<8x256xbf16>, vector<256x1024xbf16>, vector<8x1024xf32> -> vector<8x1024xf32>
    %3 = vector.extract_strided_slice %2 {offsets = [0, 0], sizes = [8, 512], strides = [1, 1]} : vector<8x1024xf32> to vector<8x512xf32>
    %4 = vector.extract_strided_slice %2 {offsets = [0, 512], sizes = [8, 256], strides = [1, 1]} : vector<8x1024xf32> to vector<8x256xf32>
    %5 = vector.extract_strided_slice %2 {offsets = [0, 768], sizes = [8, 256], strides = [1, 1]} : vector<8x1024xf32> to vector<8x256xf32>
    %6 = tpu.iota {dimensions = array<i32: 0>} : vector<8x256xi32>
    %c4_i32 = arith.constant 4 : i32
    %c0_i32 = arith.constant 0 : i32
    %7 = arith.cmpi eq, %c4_i32, %c0_i32 : i32
    %c1_i32 = arith.constant 1 : i32
    %8 = arith.select %7, %c1_i32, %c4_i32 : i32
    %9 = vector.broadcast %8 : i32 to vector<8x256xi32>
    %10 = arith.remsi %6, %9 : vector<8x256xi32>
    %c0_i32_3 = arith.constant 0 : i32
    %11 = vector.broadcast %c0_i32_3 : i32 to vector<8x256xi32>
    %12 = arith.cmpi ne, %10, %11 : vector<8x256xi32>
    %c0_i32_4 = arith.constant 0 : i32
    %13 = vector.broadcast %c0_i32_4 : i32 to vector<8x256xi32>
    %14 = arith.cmpi slt, %10, %13 : vector<8x256xi32>
    %c0_i32_5 = arith.constant 0 : i32
    %15 = arith.cmpi slt, %8, %c0_i32_5 : i32
    %16 = vector.broadcast %15 : i1 to vector<8x256xi1>
    %17 = vector.broadcast %16 : vector<8x256xi1> to vector<8x256xi1>
    %18 = arith.xori %14, %17 : vector<8x256xi1>
    %19 = arith.andi %18, %12 : vector<8x256xi1>
    %20 = vector.broadcast %8 : i32 to vector<8x256xi32>
    %21 = arith.addi %10, %20 : vector<8x256xi32>
    %22 = arith.select %19, %21, %10 : vector<8x256xi1>, vector<8x256xi32>
    %c0_i32_6 = arith.constant 0 : i32
    %23 = vector.broadcast %c0_i32_6 : i32 to vector<8x256xi32>
    %24 = arith.cmpi ne, %22, %23 : vector<8x256xi32>
    %25 = vector.extract_strided_slice %4 {offsets = [7, 0], sizes = [1, 256], strides = [1, 1]} : vector<8x256xf32> to vector<1x256xf32>
    %26 = vector.extract_strided_slice %4 {offsets = [0, 0], sizes = [7, 256], strides = [1, 1]} : vector<8x256xf32> to vector<7x256xf32>
    %27 = tpu.concatenate %25, %26 in 0 : vector<1x256xf32>, vector<7x256xf32> -> vector<8x256xf32>
    %cst_7 = arith.constant 0.000000e+00 : f32
    %28 = vector.broadcast %cst_7 : f32 to vector<8x256xf32>
    %29 = arith.select %24, %27, %28 : vector<8x256xi1>, vector<8x256xf32>
    %c3_i32 = arith.constant 3 : i32
    %30 = vector.broadcast %c3_i32 : i32 to vector<8x256xi32>
    %31 = arith.cmpi ne, %22, %30 : vector<8x256xi32>
    %32 = vector.extract_strided_slice %5 {offsets = [1, 0], sizes = [7, 256], strides = [1, 1]} : vector<8x256xf32> to vector<7x256xf32>
    %33 = vector.extract_strided_slice %5 {offsets = [0, 0], sizes = [1, 256], strides = [1, 1]} : vector<8x256xf32> to vector<1x256xf32>
    %34 = tpu.concatenate %32, %33 in 0 : vector<7x256xf32>, vector<1x256xf32> -> vector<8x256xf32>
    %cst_8 = arith.constant 0.000000e+00 : f32
    %35 = vector.broadcast %cst_8 : f32 to vector<8x256xf32>
    %36 = arith.select %31, %34, %35 : vector<8x256xi1>, vector<8x256xf32>
    %37 = tpu.concatenate %29, %36 in 1 : vector<8x256xf32>, vector<8x256xf32> -> vector<8x512xf32>
    %38 = arith.addf %3, %37 : vector<8x512xf32>
    %c0_9 = arith.constant 0 : index
    %c0_10 = arith.constant 0 : index
    %39 = vector.load %arg2[%c0_9, %c0_10] : memref<1x512xf32, #tpu.memory_space<vmem>>, vector<1x512xf32>
    %c0_11 = arith.constant 0 : index
    %c0_12 = arith.constant 0 : index
    %40 = vector.load %arg3[%c0_11, %c0_12] : memref<1x512xf32, #tpu.memory_space<vmem>>, vector<1x512xf32>
    %cst_13 = arith.constant dense<0.000000e+00> : vector<512xf32>
    %41 = vector.multi_reduction <add>, %38, %cst_13 [0] : vector<8x512xf32> to vector<512xf32>
    %42 = vector.shape_cast %41 : vector<512xf32> to vector<1x512xf32>
    %43 = arith.mulf %38, %38 : vector<8x512xf32>
    %cst_14 = arith.constant dense<0.000000e+00> : vector<512xf32>
    %44 = vector.multi_reduction <add>, %43, %cst_14 [0] : vector<8x512xf32> to vector<512xf32>
    %45 = vector.shape_cast %44 : vector<512xf32> to vector<1x512xf32>
    %46 = tpu.concatenate %42, %45 in 0 : vector<1x512xf32>, vector<1x512xf32> -> vector<2x512xf32>
    %c256_i32 = arith.constant 256 : i32
    %47 = tpu.dynamic_rotate %46 by %c256_i32 dim 1 : vector<2x512xf32>, i32 -> vector<2x512xf32>
    %48 = arith.addf %46, %47 : vector<2x512xf32>
    %c128_i32 = arith.constant 128 : i32
    %49 = tpu.dynamic_rotate %48 by %c128_i32 dim 1 : vector<2x512xf32>, i32 -> vector<2x512xf32>
    %50 = arith.addf %48, %49 : vector<2x512xf32>
    %c64_i32 = arith.constant 64 : i32
    %51 = tpu.dynamic_rotate %50 by %c64_i32 dim 1 : vector<2x512xf32>, i32 -> vector<2x512xf32>
    %52 = arith.addf %50, %51 : vector<2x512xf32>
    %c32_i32 = arith.constant 32 : i32
    %53 = tpu.dynamic_rotate %52 by %c32_i32 dim 1 : vector<2x512xf32>, i32 -> vector<2x512xf32>
    %54 = arith.addf %52, %53 : vector<2x512xf32>
    %55 = vector.extract_strided_slice %54 {offsets = [0, 0], sizes = [1, 512], strides = [1, 1]} : vector<2x512xf32> to vector<1x512xf32>
    %cst_15 = arith.constant 7.812500e-03 : f32
    %56 = vector.broadcast %cst_15 : f32 to vector<1x512xf32>
    %57 = arith.mulf %55, %56 : vector<1x512xf32>
    %58 = vector.extract_strided_slice %54 {offsets = [1, 0], sizes = [1, 512], strides = [1, 1]} : vector<2x512xf32> to vector<1x512xf32>
    %cst_16 = arith.constant 7.812500e-03 : f32
    %59 = vector.broadcast %cst_16 : f32 to vector<1x512xf32>
    %60 = arith.mulf %58, %59 : vector<1x512xf32>
    %61 = arith.mulf %57, %57 : vector<1x512xf32>
    %62 = arith.subf %60, %61 : vector<1x512xf32>
    %cst_17 = arith.constant 9.99999974E-6 : f32
    %63 = vector.broadcast %cst_17 : f32 to vector<1x512xf32>
    %64 = arith.addf %62, %63 : vector<1x512xf32>
    %65 = math.rsqrt %64 : vector<1x512xf32>
    %66 = arith.mulf %39, %65 : vector<1x512xf32>
    %67 = arith.mulf %57, %66 : vector<1x512xf32>
    %68 = arith.subf %40, %67 : vector<1x512xf32>
    %69 = vector.broadcast %66 : vector<1x512xf32> to vector<8x512xf32>
    %70 = arith.mulf %38, %69 : vector<8x512xf32>
    %71 = vector.broadcast %68 : vector<1x512xf32> to vector<8x512xf32>
    %72 = arith.addf %70, %71 : vector<8x512xf32>
    %cst_18 = arith.constant 0.000000e+00 : f32
    %73 = vector.broadcast %cst_18 : f32 to vector<8x512xf32>
    %74 = arith.maximumf %72, %73 : vector<8x512xf32>
    %75 = arith.truncf %74 : vector<8x512xf32> to vector<8x512xbf16>
    %c0_19 = arith.constant 0 : index
    %c0_20 = arith.constant 0 : index
    %76 = vector.load %arg4[%c0_19, %c0_20] : memref<8x512xbf16, #tpu.memory_space<vmem>>, vector<8x512xbf16>
    tpu.vector_store %arg4[%c0_19, %c0_20], %75 {strides = array<i32>} : memref<8x512xbf16, #tpu.memory_space<vmem>>, vector<8x512xbf16>,
    return
  }
}

module attributes {stable_mosaic.version = 11 : i64} {
  func.func @_up_bn_relu_kernel(%arg0: memref<16x256xbf16, #tpu.memory_space<vmem>>, %arg1: memref<256x1024xbf16, #tpu.memory_space<vmem>>, %arg2: memref<1x512xf32, #tpu.memory_space<vmem>>, %arg3: memref<1x512xf32, #tpu.memory_space<vmem>>, %arg4: memref<16x512xbf16, #tpu.memory_space<vmem>>) attributes {dimension_semantics = [], scalar_prefetch = 0 : i64, scratch_operands = 0 : i64, tpu.core_type = #tpu.core_type<tc>} {
    %c0 = arith.constant 0 : index
    %c0_0 = arith.constant 0 : index
    %0 = vector.load %arg0[%c0, %c0_0] : memref<16x256xbf16, #tpu.memory_space<vmem>>, vector<16x256xbf16>
    %c0_1 = arith.constant 0 : index
    %c0_2 = arith.constant 0 : index
    %1 = vector.load %arg1[%c0_1, %c0_2] : memref<256x1024xbf16, #tpu.memory_space<vmem>>, vector<256x1024xbf16>
    %cst = arith.constant dense<0.000000e+00> : vector<16x1024xf32>
    %2 = tpu.matmul %0, %1, %cst {dimension_numbers = #tpu.dot_dimension_numbers<[1], [0], [0], [1], [0, 0, 1, 1], [], []>} : vector<16x256xbf16>, vector<256x1024xbf16>, vector<16x1024xf32> -> vector<16x1024xf32>
    %3 = vector.extract_strided_slice %2 {offsets = [0, 0], sizes = [16, 512], strides = [1, 1]} : vector<16x1024xf32> to vector<16x512xf32>
    %4 = vector.extract_strided_slice %2 {offsets = [0, 512], sizes = [16, 256], strides = [1, 1]} : vector<16x1024xf32> to vector<16x256xf32>
    %5 = vector.extract_strided_slice %2 {offsets = [0, 768], sizes = [16, 256], strides = [1, 1]} : vector<16x1024xf32> to vector<16x256xf32>
    %6 = tpu.iota {dimensions = array<i32: 0>} : vector<16x256xi32>
    %c8_i32 = arith.constant 8 : i32
    %c0_i32 = arith.constant 0 : i32
    %7 = arith.cmpi eq, %c8_i32, %c0_i32 : i32
    %c1_i32 = arith.constant 1 : i32
    %8 = arith.select %7, %c1_i32, %c8_i32 : i32
    %9 = vector.broadcast %8 : i32 to vector<16x256xi32>
    %10 = arith.remsi %6, %9 : vector<16x256xi32>
    %c0_i32_3 = arith.constant 0 : i32
    %11 = vector.broadcast %c0_i32_3 : i32 to vector<16x256xi32>
    %12 = arith.cmpi ne, %10, %11 : vector<16x256xi32>
    %c0_i32_4 = arith.constant 0 : i32
    %13 = vector.broadcast %c0_i32_4 : i32 to vector<16x256xi32>
    %14 = arith.cmpi slt, %10, %13 : vector<16x256xi32>
    %c0_i32_5 = arith.constant 0 : i32
    %15 = arith.cmpi slt, %8, %c0_i32_5 : i32
    %16 = vector.broadcast %15 : i1 to vector<16x256xi1>
    %17 = vector.broadcast %16 : vector<16x256xi1> to vector<16x256xi1>
    %18 = arith.xori %14, %17 : vector<16x256xi1>
    %19 = arith.andi %18, %12 : vector<16x256xi1>
    %20 = vector.broadcast %8 : i32 to vector<16x256xi32>
    %21 = arith.addi %10, %20 : vector<16x256xi32>
    %22 = arith.select %19, %21, %10 : vector<16x256xi1>, vector<16x256xi32>
    %c0_i32_6 = arith.constant 0 : i32
    %23 = vector.broadcast %c0_i32_6 : i32 to vector<16x256xi32>
    %24 = arith.cmpi ne, %22, %23 : vector<16x256xi32>
    %25 = vector.extract_strided_slice %4 {offsets = [15, 0], sizes = [1, 256], strides = [1, 1]} : vector<16x256xf32> to vector<1x256xf32>
    %26 = vector.extract_strided_slice %4 {offsets = [0, 0], sizes = [15, 256], strides = [1, 1]} : vector<16x256xf32> to vector<15x256xf32>
    %27 = tpu.concatenate %25, %26 in 0 : vector<1x256xf32>, vector<15x256xf32> -> vector<16x256xf32>
    %cst_7 = arith.constant 0.000000e+00 : f32
    %28 = vector.broadcast %cst_7 : f32 to vector<16x256xf32>
    %29 = arith.select %24, %27, %28 : vector<16x256xi1>, vector<16x256xf32>
    %c7_i32 = arith.constant 7 : i32
    %30 = vector.broadcast %c7_i32 : i32 to vector<16x256xi32>
    %31 = arith.cmpi ne, %22, %30 : vector<16x256xi32>
    %32 = vector.extract_strided_slice %5 {offsets = [1, 0], sizes = [15, 256], strides = [1, 1]} : vector<16x256xf32> to vector<15x256xf32>
    %33 = vector.extract_strided_slice %5 {offsets = [0, 0], sizes = [1, 256], strides = [1, 1]} : vector<16x256xf32> to vector<1x256xf32>
    %34 = tpu.concatenate %32, %33 in 0 : vector<15x256xf32>, vector<1x256xf32> -> vector<16x256xf32>
    %cst_8 = arith.constant 0.000000e+00 : f32
    %35 = vector.broadcast %cst_8 : f32 to vector<16x256xf32>
    %36 = arith.select %31, %34, %35 : vector<16x256xi1>, vector<16x256xf32>
    %37 = tpu.concatenate %29, %36 in 1 : vector<16x256xf32>, vector<16x256xf32> -> vector<16x512xf32>
    %38 = arith.addf %3, %37 : vector<16x512xf32>
    %c0_9 = arith.constant 0 : index
    %c0_10 = arith.constant 0 : index
    %39 = vector.load %arg2[%c0_9, %c0_10] : memref<1x512xf32, #tpu.memory_space<vmem>>, vector<1x512xf32>
    %c0_11 = arith.constant 0 : index
    %c0_12 = arith.constant 0 : index
    %40 = vector.load %arg3[%c0_11, %c0_12] : memref<1x512xf32, #tpu.memory_space<vmem>>, vector<1x512xf32>
    %cst_13 = arith.constant dense<0.000000e+00> : vector<512xf32>
    %41 = vector.multi_reduction <add>, %38, %cst_13 [0] : vector<16x512xf32> to vector<512xf32>
    %42 = vector.shape_cast %41 : vector<512xf32> to vector<1x512xf32>
    %43 = arith.mulf %38, %38 : vector<16x512xf32>
    %cst_14 = arith.constant dense<0.000000e+00> : vector<512xf32>
    %44 = vector.multi_reduction <add>, %43, %cst_14 [0] : vector<16x512xf32> to vector<512xf32>
    %45 = vector.shape_cast %44 : vector<512xf32> to vector<1x512xf32>
    %46 = tpu.concatenate %42, %45 in 0 : vector<1x512xf32>, vector<1x512xf32> -> vector<2x512xf32>
    %c256_i32 = arith.constant 256 : i32
    %47 = tpu.dynamic_rotate %46 by %c256_i32 dim 1 : vector<2x512xf32>, i32 -> vector<2x512xf32>
    %48 = arith.addf %46, %47 : vector<2x512xf32>
    %c128_i32 = arith.constant 128 : i32
    %49 = tpu.dynamic_rotate %48 by %c128_i32 dim 1 : vector<2x512xf32>, i32 -> vector<2x512xf32>
    %50 = arith.addf %48, %49 : vector<2x512xf32>
    %c64_i32 = arith.constant 64 : i32
    %51 = tpu.dynamic_rotate %50 by %c64_i32 dim 1 : vector<2x512xf32>, i32 -> vector<2x512xf32>
    %52 = arith.addf %50, %51 : vector<2x512xf32>
    %c32_i32 = arith.constant 32 : i32
    %53 = tpu.dynamic_rotate %52 by %c32_i32 dim 1 : vector<2x512xf32>, i32 -> vector<2x512xf32>
    %54 = arith.addf %52, %53 : vector<2x512xf32>
    %c16_i32 = arith.constant 16 : i32
    %55 = tpu.dynamic_rotate %54 by %c16_i32 dim 1 : vector<2x512xf32>, i32 -> vector<2x512xf32>
    %56 = arith.addf %54, %55 : vector<2x512xf32>
    %57 = vector.extract_strided_slice %56 {offsets = [0, 0], sizes = [1, 512], strides = [1, 1]} : vector<2x512xf32> to vector<1x512xf32>
    %cst_15 = arith.constant 0.001953125 : f32
    %58 = vector.broadcast %cst_15 : f32 to vector<1x512xf32>
    %59 = arith.mulf %57, %58 : vector<1x512xf32>
    %60 = vector.extract_strided_slice %56 {offsets = [1, 0], sizes = [1, 512], strides = [1, 1]} : vector<2x512xf32> to vector<1x512xf32>
    %cst_16 = arith.constant 0.001953125 : f32
    %61 = vector.broadcast %cst_16 : f32 to vector<1x512xf32>
    %62 = arith.mulf %60, %61 : vector<1x512xf32>
    %63 = arith.mulf %59, %59 : vector<1x512xf32>
    %64 = arith.subf %62, %63 : vector<1x512xf32>
    %cst_17 = arith.constant 9.99999974E-6 : f32
    %65 = vector.broadcast %cst_17 : f32 to vector<1x512xf32>
    %66 = arith.addf %64, %65 : vector<1x512xf32>
    %67 = math.rsqrt %66 : vector<1x512xf32>
    %68 = arith.mulf %39, %67 : vector<1x512xf32>
    %69 = arith.mulf %59, %68 : vector<1x512xf32>
    %70 = arith.subf %40, %69 : vector<1x512xf32>
    %71 = vector.broadcast %68 : vector<1x512xf32> to vector<16x512xf32>
    %72 = arith.mulf %38, %71 : vector<16x512xf32>
    %73 = vector.broadcast %70 : vector<1x512xf32> to vector<16x512xf32>
    %74 = arith.addf %72, %73 : vector<16x512xf32>
    %cst_18 = arith.constant 0.000000e+00 : f32
    %75 = vector.broadcast %cst_18 : f32 to vector<16x512xf32>
    %76 = arith.maximumf %74, %75 : vector<16x512xf32>
    %77 = arith.truncf %76 : vector<16x512xf32> to vector<16x512xbf16>
    %c0_19 = arith.constant 0 : index
    %c0_20 = arith.constant 0 : index
    %78 = vector.load %arg4[%c0_19, %c0_20] : memref<16x512xbf16, #tpu.memory_space<vmem>>, vector<16x512xbf16>
    tpu.vector_store %arg4[%c0_19, %c0_20], %77 {strides = array<i32>} : memref<16x512xbf16, #tpu.memory_space<vmem>>, vector<16x512xbf16>,
    return
  }
}

module attributes {stable_mosaic.version = 11 : i64} {
  func.func @_up_tanh_kernel(%arg0: memref<64x256xbf16, #tpu.memory_space<vmem>>, %arg1: memref<256x1024xbf16, #tpu.memory_space<vmem>>, %arg2: memref<64x512xf32, #tpu.memory_space<vmem>>) attributes {dimension_semantics = [], scalar_prefetch = 0 : i64, scratch_operands = 0 : i64, tpu.core_type = #tpu.core_type<tc>} {
    %c0 = arith.constant 0 : index
    %c0_0 = arith.constant 0 : index
    %0 = vector.load %arg0[%c0, %c0_0] : memref<64x256xbf16, #tpu.memory_space<vmem>>, vector<64x256xbf16>
    %c0_1 = arith.constant 0 : index
    %c0_2 = arith.constant 0 : index
    %1 = vector.load %arg1[%c0_1, %c0_2] : memref<256x1024xbf16, #tpu.memory_space<vmem>>, vector<256x1024xbf16>
    %cst = arith.constant dense<0.000000e+00> : vector<64x1024xf32>
    %2 = tpu.matmul %0, %1, %cst {dimension_numbers = #tpu.dot_dimension_numbers<[1], [0], [0], [1], [0, 0, 1, 1], [], []>} : vector<64x256xbf16>, vector<256x1024xbf16>, vector<64x1024xf32> -> vector<64x1024xf32>
    %3 = vector.extract_strided_slice %2 {offsets = [0, 0], sizes = [64, 512], strides = [1, 1]} : vector<64x1024xf32> to vector<64x512xf32>
    %4 = vector.extract_strided_slice %2 {offsets = [0, 512], sizes = [64, 256], strides = [1, 1]} : vector<64x1024xf32> to vector<64x256xf32>
    %5 = vector.extract_strided_slice %2 {offsets = [0, 768], sizes = [64, 256], strides = [1, 1]} : vector<64x1024xf32> to vector<64x256xf32>
    %6 = tpu.iota {dimensions = array<i32: 0>} : vector<64x256xi32>
    %c32_i32 = arith.constant 32 : i32
    %c0_i32 = arith.constant 0 : i32
    %7 = arith.cmpi eq, %c32_i32, %c0_i32 : i32
    %c1_i32 = arith.constant 1 : i32
    %8 = arith.select %7, %c1_i32, %c32_i32 : i32
    %9 = vector.broadcast %8 : i32 to vector<64x256xi32>
    %10 = arith.remsi %6, %9 : vector<64x256xi32>
    %c0_i32_3 = arith.constant 0 : i32
    %11 = vector.broadcast %c0_i32_3 : i32 to vector<64x256xi32>
    %12 = arith.cmpi ne, %10, %11 : vector<64x256xi32>
    %c0_i32_4 = arith.constant 0 : i32
    %13 = vector.broadcast %c0_i32_4 : i32 to vector<64x256xi32>
    %14 = arith.cmpi slt, %10, %13 : vector<64x256xi32>
    %c0_i32_5 = arith.constant 0 : i32
    %15 = arith.cmpi slt, %8, %c0_i32_5 : i32
    %16 = vector.broadcast %15 : i1 to vector<64x256xi1>
    %17 = vector.broadcast %16 : vector<64x256xi1> to vector<64x256xi1>
    %18 = arith.xori %14, %17 : vector<64x256xi1>
    %19 = arith.andi %18, %12 : vector<64x256xi1>
    %20 = vector.broadcast %8 : i32 to vector<64x256xi32>
    %21 = arith.addi %10, %20 : vector<64x256xi32>
    %22 = arith.select %19, %21, %10 : vector<64x256xi1>, vector<64x256xi32>
    %c0_i32_6 = arith.constant 0 : i32
    %23 = vector.broadcast %c0_i32_6 : i32 to vector<64x256xi32>
    %24 = arith.cmpi ne, %22, %23 : vector<64x256xi32>
    %25 = vector.extract_strided_slice %4 {offsets = [63, 0], sizes = [1, 256], strides = [1, 1]} : vector<64x256xf32> to vector<1x256xf32>
    %26 = vector.extract_strided_slice %4 {offsets = [0, 0], sizes = [63, 256], strides = [1, 1]} : vector<64x256xf32> to vector<63x256xf32>
    %27 = tpu.concatenate %25, %26 in 0 : vector<1x256xf32>, vector<63x256xf32> -> vector<64x256xf32>
    %cst_7 = arith.constant 0.000000e+00 : f32
    %28 = vector.broadcast %cst_7 : f32 to vector<64x256xf32>
    %29 = arith.select %24, %27, %28 : vector<64x256xi1>, vector<64x256xf32>
    %c31_i32 = arith.constant 31 : i32
    %30 = vector.broadcast %c31_i32 : i32 to vector<64x256xi32>
    %31 = arith.cmpi ne, %22, %30 : vector<64x256xi32>
    %32 = vector.extract_strided_slice %5 {offsets = [1, 0], sizes = [63, 256], strides = [1, 1]} : vector<64x256xf32> to vector<63x256xf32>
    %33 = vector.extract_strided_slice %5 {offsets = [0, 0], sizes = [1, 256], strides = [1, 1]} : vector<64x256xf32> to vector<1x256xf32>
    %34 = tpu.concatenate %32, %33 in 0 : vector<63x256xf32>, vector<1x256xf32> -> vector<64x256xf32>
    %cst_8 = arith.constant 0.000000e+00 : f32
    %35 = vector.broadcast %cst_8 : f32 to vector<64x256xf32>
    %36 = arith.select %31, %34, %35 : vector<64x256xi1>, vector<64x256xf32>
    %37 = tpu.concatenate %29, %36 in 1 : vector<64x256xf32>, vector<64x256xf32> -> vector<64x512xf32>
    %38 = arith.addf %3, %37 : vector<64x512xf32>
    %39 = math.tanh %38 : vector<64x512xf32>
    %c0_9 = arith.constant 0 : index
    %c0_10 = arith.constant 0 : index
    %40 = vector.load %arg2[%c0_9, %c0_10] : memref<64x512xf32, #tpu.memory_space<vmem>>, vector<64x512xf32>
    tpu.vector_store %arg2[%c0_9, %c0_10], %39 {strides = array<i32>} : memref<64x512xf32, #tpu.memory_space<vmem>>, vector<64x512xf32>,
    return
  }
}

</mosaic_0001>

<llo_original>
// kernel: _lambda_.5
$region0: #{_lambda_.5}
  #allocation0 [shape = 'u32[]', space=smem, size = 0x4, offset = 0x4, fixed_abs, tag = 'smem constant byte address 0x4 - core index']
  #allocation1 [shape = 'u32[144,128]{1,0:T(1,128)}', space=vmem, size = 0x12000, scoped, tag = 'internal scratch']
  %s0 = inlined_call_operand.vmem [shape: bf16[2,16], index: 0, kind: input, shape index: {}]
  %s1 = inlined_call_operand.hbm [shape: bf16[16,1024], index: 1, kind: input, shape index: {}]
  %s2 = inlined_call_operand.hbm [shape: f32[1,1024], index: 2, kind: input, shape index: {}]
  %s3 = inlined_call_operand.hbm [shape: f32[1,1024], index: 3, kind: input, shape index: {}]
  %s4 = inlined_call_operand.vmem [shape: bf16[2,1024], index: 4, kind: output, shape index: {}]
  %s5 = sld [smem:[#allocation0]]
  $region38: #{_lambda_.5} parent=0
    _
  %s7 = ssub.s32 1, %s5
  %s8 = scalar_select 0, %s7, %s5
  $region1: #{_lambda_.5} parent=0
    #allocation2 [shape = 'u8[32768]{0}', space=vmem, size = 0x8000, scoped, tag = 'input window, operand 1, single buffered']
    #allocation3 [shape = 's32[1]{0}', space=sflag, size = 0x4, scoped, tag = 'scoped memory for _lambda_.5']
    #allocation4 [shape = 'u8[4096]{0}', space=vmem, size = 0x1000, scoped, tag = 'input window, operand 2, single buffered']
    #allocation5 [shape = 's32[1]{0}', space=sflag, size = 0x4, scoped, tag = 'scoped memory for _lambda_.5']
    #allocation6 [shape = 'u8[4096]{0}', space=vmem, size = 0x1000, scoped, tag = 'input window, operand 3, single buffered']
    %9 = vsyncpa [#allocation3], 0
    %10 = vsyncpa [#allocation5], 0
    // Predicated region
    $region2: #{_lambda_.5} parent=1 // pred_check
      _
    $region3: #{_lambda_.5} parent=1 // pred_check_branch
      %12 = sbr.rel (0) target = $region5
    $region4: #{_lambda_.5} parent=1 // pred_region
      _
    $region5: #{_lambda_.5} parent=1 // pred_fallthru
      _
    // Predicated region
    $region6: #{_lambda_.5} parent=1 // pred_check
      _
    $region7: #{_lambda_.5} parent=1 // pred_check_branch
      %14 = sbr.rel (0) target = $region9
    $region8: #{_lambda_.5} parent=1 // pred_region
      %s16 = ssub.s32 1024, 1024
      %17 = vsyncadd [#allocation3], %s16
      %s18 = sshll.u32 [#allocation2], 4
      %s19 = int_to_ptr.vmem [resolvable:$true] %s18
      %24 = dma.hbm_to_vmem [thread:$0]  %s1, 1024, %s19, [#allocation3], 512, 512, 32
    $region9: #{_lambda_.5} parent=1 // pred_fallthru
      _
    // Predicated region
    $region10: #{_lambda_.5} parent=1 // pred_check
      _
    $region11: #{_lambda_.5} parent=1 // pred_check_branch
      %26 = sbr.rel (0) target = $region13
    $region12: #{_lambda_.5} parent=1 // pred_region
      %s28 = ssub.s32 128, 128
      %29 = vsyncadd [#allocation5], %s28
      %s31 = sshll.u32 [#allocation4], 4
      %s32 = int_to_ptr.vmem [resolvable:$true] %s31
      %34 = dma.hbm_to_vmem [thread:$0]  %s2, 128, %s32, [#allocation5]
    $region13: #{_lambda_.5} parent=1 // pred_fallthru
      _
    // Predicated region
    $region14: #{_lambda_.5} parent=1 // pred_check
      _
    $region15: #{_lambda_.5} parent=1 // pred_check_branch
      %36 = sbr.rel (0) target = $region17
    $region16: #{_lambda_.5} parent=1 // pred_region
      %s38 = ssub.s32 128, 128
      %39 = vsyncadd [#allocation5], %s38
      %s41 = sshll.u32 [#allocation6], 4
      %s42 = int_to_ptr.vmem [resolvable:$true] %s41
      %44 = dma.hbm_to_vmem [thread:$0]  %s3, 128, %s42, [#allocation5]
    $region17: #{_lambda_.5} parent=1 // pred_fallthru
      _
    // Predicated region
    $region18: #{_lambda_.5} parent=1 // pred_check
      _
    $region19: #{_lambda_.5} parent=1 // pred_check_branch
      %46 = sbr.rel (0) target = $region21
    $region20: #{_lambda_.5} parent=1 // pred_region
      %47 = dma.done [#allocation3], 1024
    $region21: #{_lambda_.5} parent=1 // pred_fallthru
      _
    // Predicated region
    $region22: #{_lambda_.5} parent=1 // pred_check
      _
    $region23: #{_lambda_.5} parent=1 // pred_check_branch
      %49 = sbr.rel (0) target = $region25
    $region24: #{_lambda_.5} parent=1 // pred_region
      %50 = dma.done [#allocation5], 128
    $region25: #{_lambda_.5} parent=1 // pred_fallthru
      _
    // Predicated region
    $region26: #{_lambda_.5} parent=1 // pred_check
      _
    $region27: #{_lambda_.5} parent=1 // pred_check_branch
      %52 = sbr.rel (0) target = $region29
    $region28: #{_lambda_.5} parent=1 // pred_region
      %53 = dma.done [#allocation5], 128
    $region29: #{_lambda_.5} parent=1 // pred_fallthru
      _
    %v55 = vld [vmem:[%s0] sm:$0x1]
    %v56 = vld [vmem:[#allocation2] sm:$0xff]
    %v57 = vld [vmem:[#allocation2 + $0x8] sm:$0xff]
    %v58 = vld [vmem:[#allocation2 + $0x10] sm:$0xff]
    %v59 = vld [vmem:[#allocation2 + $0x18] sm:$0xff]
    %v60 = vld [vmem:[#allocation2 + $0x20] sm:$0xff]
    %v61 = vld [vmem:[#allocation2 + $0x28] sm:$0xff]
    %v62 = vld [vmem:[#allocation2 + $0x30] sm:$0xff]
    %v63 = vld [vmem:[#allocation2 + $0x38] sm:$0xff]
    %v72 = vunpack.c.l.b16 %v56
    %v73 = vunpack.c.h.b16 %v56
    %v74 = vunpack.c.l.b16 %v57
    %v75 = vunpack.c.h.b16 %v57
    %v76 = vunpack.c.l.b16 %v58
    %v77 = vunpack.c.h.b16 %v58
    %v78 = vunpack.c.l.b16 %v59
    %v79 = vunpack.c.h.b16 %v59
    %v80 = vunpack.c.l.b16 %v60
    %v81 = vunpack.c.h.b16 %v60
    %v82 = vunpack.c.l.b16 %v61
    %v83 = vunpack.c.h.b16 %v61
    %v84 = vunpack.c.l.b16 %v62
    %v85 = vunpack.c.h.b16 %v62
    %v86 = vunpack.c.l.b16 %v63
    %v87 = vunpack.c.h.b16 %v63
    %v88 = vpack.c.b16 %v80, %v72
    %v89 = vpack.c.b16 %v81, %v73
    %v90 = vpack.c.b16 %v82, %v74
    %v91 = vpack.c.b16 %v83, %v75
    %v92 = vpack.c.b16 %v84, %v76
    %v93 = vpack.c.b16 %v85, %v77
    %v94 = vpack.c.b16 %v86, %v78
    %v95 = vpack.c.b16 %v87, %v79
    %vm104 = vcmask 130048
    %v106 = vsel %vm104, %v55, 0
    %108 = vmatprep.subr.bf16.mxu0 0
    %109 = vmatpush1.bf16.msra.mxu0 0
    %110 = vmatprep.subr.bf16.mxu0 0
    %111 = vmatpush1.bf16.msra.mxu0 0
    %112 = vmatprep.subr.bf16.mxu0 0
    %113 = vmatpush1.bf16.msra.mxu0 0
    %114 = vmatprep.subr.bf16.mxu0 0
    %115 = vmatpush1.bf16.msra.mxu0 0
    %116 = vmatprep.subr.bf16.mxu0 0
    %117 = vmatpush1.bf16.msra.mxu0 0
    %118 = vmatprep.subr.bf16.mxu0 0
    %119 = vmatpush1.bf16.msra.mxu0 0
    %120 = vmatprep.subr.bf16.mxu0 0
    %121 = vmatpush1.bf16.msra.mxu0 0
    %122 = vmatprep.subr.bf16.mxu0 %v89
    %123 = vmatpush1.bf16.msra.mxu0 %v88
    %124 = vmatprep.subr.bf16.mxu0 0
    %125 = vmatpush2.bf16.msra.mxu0 0
    %126 = vmatprep.subr.bf16.mxu0 0
    %127 = vmatpush2.bf16.msra.mxu0 0
    %128 = vmatprep.subr.bf16.mxu0 0
    %129 = vmatpush2.bf16.msra.mxu0 0
    %130 = vmatprep.subr.bf16.mxu0 0
    %131 = vmatpush2.bf16.msra.mxu0 0
    %132 = vmatprep.subr.bf16.mxu0 0
    %133 = vmatpush2.bf16.msra.mxu0 0
    %134 = vmatprep.subr.bf16.mxu0 0
    %135 = vmatpush2.bf16.msra.mxu0 0
    %136 = vmatprep.subr.bf16.mxu0 0
    %137 = vmatpush2.bf16.msra.mxu0 0
    %138 = vmatprep.subr.bf16.mxu0 0
    %139 = vmatpush2.bf16.msra.mxu0 0
    %140 = vmatprep.mubr.bf16.mxu0 0
    %141 = vmatmul.mubr.bf16.gmra.mxu0 %v106
    %v142 = vpop.f32.mrf.mxu0
    %v143 = vadd.f32 0.0, %v142
    %v144 = vpop.f32.mrf.mxu0
    %v145 = vadd.f32 0.0, %v144
    %v146 = vpop.f32.mrf.mxu0
    %v147 = vpop.f32.mrf.mxu0
    %148 = vdwg.mxu0
    %149 = vmatprep.subr.bf16.mxu0 0
    %150 = vmatpush1.bf16.msra.mxu0 0
    %151 = vmatprep.subr.bf16.mxu0 0
    %152 = vmatpush1.bf16.msra.mxu0 0
    %153 = vmatprep.subr.bf16.mxu0 0
    %154 = vmatpush1.bf16.msra.mxu0 0
    %155 = vmatprep.subr.bf16.mxu0 0
    %156 = vmatpush1.bf16.msra.mxu0 0
    %157 = vmatprep.subr.bf16.mxu0 0
    %158 = vmatpush1.bf16.msra.mxu0 0
    %159 = vmatprep.subr.bf16.mxu0 0
    %160 = vmatpush1.bf16.msra.mxu0 0
    %161 = vmatprep.subr.bf16.mxu0 0
    %162 = vmatpush1.bf16.msra.mxu0 0
    %163 = vmatprep.subr.bf16.mxu0 %v91
    %164 = vmatpush1.bf16.msra.mxu0 %v90
    %165 = vmatprep.subr.bf16.mxu0 0
    %166 = vmatpush2.bf16.msra.mxu0 0
    %167 = vmatprep.subr.bf16.mxu0 0
    %168 = vmatpush2.bf16.msra.mxu0 0
    %169 = vmatprep.subr.bf16.mxu0 0
    %170 = vmatpush2.bf16.msra.mxu0 0
    %171 = vmatprep.subr.bf16.mxu0 0
    %172 = vmatpush2.bf16.msra.mxu0 0
    %173 = vmatprep.subr.bf16.mxu0 0
    %174 = vmatpush2.bf16.msra.mxu0 0
    %175 = vmatprep.subr.bf16.mxu0 0
    %176 = vmatpush2.bf16.msra.mxu0 0
    %177 = vmatprep.subr.bf16.mxu0 0
    %178 = vmatpush2.bf16.msra.mxu0 0
    %179 = vmatprep.subr.bf16.mxu0 0
    %180 = vmatpush2.bf16.msra.mxu0 0
    %181 = vmatprep.mubr.bf16.mxu0 0
    %182 = vmatmul.mubr.bf16.gmra.mxu0 %v106
    %v183 = vpop.f32.mrf.mxu0
    %v184 = vadd.f32 0.0, %v183
    %v185 = vpop.f32.mrf.mxu0
    %v186 = vadd.f32 0.0, %v185
    %v187 = vpop.f32.mrf.mxu0
    %v188 = vpop.f32.mrf.mxu0
    %189 = vdwg.mxu0
    %190 = vmatprep.subr.bf16.mxu0 0
    %191 = vmatpush1.bf16.msra.mxu0 0
    %192 = vmatprep.subr.bf16.mxu0 0
    %193 = vmatpush1.bf16.msra.mxu0 0
    %194 = vmatprep.subr.bf16.mxu0 0
    %195 = vmatpush1.bf16.msra.mxu0 0
    %196 = vmatprep.subr.bf16.mxu0 0
    %197 = vmatpush1.bf16.msra.mxu0 0
    %198 = vmatprep.subr.bf16.mxu0 0
    %199 = vmatpush1.bf16.msra.mxu0 0
    %200 = vmatprep.subr.bf16.mxu0 0
    %201 = vmatpush1.bf16.msra.mxu0 0
    %202 = vmatprep.subr.bf16.mxu0 0
    %203 = vmatpush1.bf16.msra.mxu0 0
    %204 = vmatprep.subr.bf16.mxu0 %v93
    %205 = vmatpush1.bf16.msra.mxu0 %v92
    %206 = vmatprep.subr.bf16.mxu0 0
    %207 = vmatpush2.bf16.msra.mxu0 0
    %208 = vmatprep.subr.bf16.mxu0 0
    %209 = vmatpush2.bf16.msra.mxu0 0
    %210 = vmatprep.subr.bf16.mxu0 0
    %211 = vmatpush2.bf16.msra.mxu0 0
    %212 = vmatprep.subr.bf16.mxu0 0
    %213 = vmatpush2.bf16.msra.mxu0 0
    %214 = vmatprep.subr.bf16.mxu0 0
    %215 = vmatpush2.bf16.msra.mxu0 0
    %216 = vmatprep.subr.bf16.mxu0 0
    %217 = vmatpush2.bf16.msra.mxu0 0
    %218 = vmatprep.subr.bf16.mxu0 0
    %219 = vmatpush2.bf16.msra.mxu0 0
    %220 = vmatprep.subr.bf16.mxu0 0
    %221 = vmatpush2.bf16.msra.mxu0 0
    %222 = vmatprep.mubr.bf16.mxu0 0
    %223 = vmatmul.mubr.bf16.gmra.mxu0 %v106
    %v224 = vpop.f32.mrf.mxu0
    %v225 = vadd.f32 0.0, %v224
    %v226 = vpop.f32.mrf.mxu0
    %v227 = vadd.f32 0.0, %v226
    %v228 = vpop.f32.mrf.mxu0
    %v229 = vpop.f32.mrf.mxu0
    %230 = vdwg.mxu0
    %231 = vmatprep.subr.bf16.mxu0 0
    %232 = vmatpush1.bf16.msra.mxu0 0
    %233 = vmatprep.subr.bf16.mxu0 0
    %234 = vmatpush1.bf16.msra.mxu0 0
    %235 = vmatprep.subr.bf16.mxu0 0
    %236 = vmatpush1.bf16.msra.mxu0 0
    %237 = vmatprep.subr.bf16.mxu0 0
    %238 = vmatpush1.bf16.msra.mxu0 0
    %239 = vmatprep.subr.bf16.mxu0 0
    %240 = vmatpush1.bf16.msra.mxu0 0
    %241 = vmatprep.subr.bf16.mxu0 0
    %242 = vmatpush1.bf16.msra.mxu0 0
    %243 = vmatprep.subr.bf16.mxu0 0
    %244 = vmatpush1.bf16.msra.mxu0 0
    %245 = vmatprep.subr.bf16.mxu0 %v95
    %246 = vmatpush1.bf16.msra.mxu0 %v94
    %247 = vmatprep.subr.bf16.mxu0 0
    %248 = vmatpush2.bf16.msra.mxu0 0
    %249 = vmatprep.subr.bf16.mxu0 0
    %250 = vmatpush2.bf16.msra.mxu0 0
    %251 = vmatprep.subr.bf16.mxu0 0
    %252 = vmatpush2.bf16.msra.mxu0 0
    %253 = vmatprep.subr.bf16.mxu0 0
    %254 = vmatpush2.bf16.msra.mxu0 0
    %255 = vmatprep.subr.bf16.mxu0 0
    %256 = vmatpush2.bf16.msra.mxu0 0
    %257 = vmatprep.subr.bf16.mxu0 0
    %258 = vmatpush2.bf16.msra.mxu0 0
    %259 = vmatprep.subr.bf16.mxu0 0
    %260 = vmatpush2.bf16.msra.mxu0 0
    %261 = vmatprep.subr.bf16.mxu0 0
    %262 = vmatpush2.bf16.msra.mxu0 0
    %263 = vmatprep.mubr.bf16.mxu0 0
    %264 = vmatmul.mubr.bf16.gmra.mxu0 %v106
    %v265 = vpop.f32.mrf.mxu0
    %v266 = vadd.f32 0.0, %v265
    %v267 = vpop.f32.mrf.mxu0
    %v268 = vadd.f32 0.0, %v267
    %v269 = vpop.f32.mrf.mxu0
    %v270 = vpop.f32.mrf.mxu0
    %271 = vdwg.mxu0
    %v272 = vld [vmem:[#allocation4] sm:$0xff]
    %v273 = vld [vmem:[#allocation6] sm:$0xff]
    %vm274 = vcmask 1041408
    %v275 = vsel %vm274, %v143, 0.0
    %v276 = vrot.slane %v275, 4
    %v277 = vadd.f32 %v275, %v276
    %v278 = vrot.slane %v277, 2
    %v279 = vadd.f32 %v277, %v278
    %v280 = vrot.slane %v279, 1
    %v281 = vadd.f32 %v279, %v280
    %v282 = vsel %vm274, %v145, 0.0
    %v283 = vrot.slane %v282, 4
    %v284 = vadd.f32 %v282, %v283
    %v285 = vrot.slane %v284, 2
    %v286 = vadd.f32 %v284, %v285
    %v287 = vrot.slane %v286, 1
    %v288 = vadd.f32 %v286, %v287
    %v289 = vsel %vm274, %v184, 0.0
    %v290 = vrot.slane %v289, 4
    %v291 = vadd.f32 %v289, %v290
    %v292 = vrot.slane %v291, 2
    %v293 = vadd.f32 %v291, %v292
    %v294 = vrot.slane %v293, 1
    %v295 = vadd.f32 %v293, %v294
    %v296 = vsel %vm274, %v186, 0.0
    %v297 = vrot.slane %v296, 4
    %v298 = vadd.f32 %v296, %v297
    %v299 = vrot.slane %v298, 2
    %v300 = vadd.f32 %v298, %v299
    %v301 = vrot.slane %v300, 1
    %v302 = vadd.f32 %v300, %v301
    %v303 = vsel %vm274, %v225, 0.0
    %v304 = vrot.slane %v303, 4
    %v305 = vadd.f32 %v303, %v304
    %v306 = vrot.slane %v305, 2
    %v307 = vadd.f32 %v305, %v306
    %v308 = vrot.slane %v307, 1
    %v309 = vadd.f32 %v307, %v308
    %v310 = vsel %vm274, %v227, 0.0
    %v311 = vrot.slane %v310, 4
    %v312 = vadd.f32 %v310, %v311
    %v313 = vrot.slane %v312, 2
    %v314 = vadd.f32 %v312, %v313
    %v315 = vrot.slane %v314, 1
    %v316 = vadd.f32 %v314, %v315
    %v317 = vsel %vm274, %v266, 0.0
    %v318 = vrot.slane %v317, 4
    %v319 = vadd.f32 %v317, %v318
    %v320 = vrot.slane %v319, 2
    %v321 = vadd.f32 %v319, %v320
    %v322 = vrot.slane %v321, 1
    %v323 = vadd.f32 %v321, %v322
    %v324 = vsel %vm274, %v268, 0.0
    %v325 = vrot.slane %v324, 4
    %v326 = vadd.f32 %v324, %v325
    %v327 = vrot.slane %v326, 2
    %v328 = vadd.f32 %v326, %v327
    %v329 = vrot.slane %v328, 1
    %v330 = vadd.f32 %v328, %v329
    %v331 = vmul.f32 %v143, %v143
    %v332 = vmul.f32 %v145, %v145
    %v333 = vmul.f32 %v184, %v184
    %v334 = vmul.f32 %v186, %v186
    %v335 = vmul.f32 %v225, %v225
    %v336 = vmul.f32 %v227, %v227
    %v337 = vmul.f32 %v266, %v266
    %v338 = vmul.f32 %v268, %v268
    %v339 = vsel %vm274, %v331, 0.0
    %v340 = vrot.slane %v339, 4
    %v341 = vadd.f32 %v339, %v340
    %v342 = vrot.slane %v341, 2
    %v343 = vadd.f32 %v341, %v342
    %v344 = vrot.slane %v343, 1
    %v345 = vadd.f32 %v343, %v344
    %v346 = vsel %vm274, %v332, 0.0
    %v347 = vrot.slane %v346, 4
    %v348 = vadd.f32 %v346, %v347
    %v349 = vrot.slane %v348, 2
    %v350 = vadd.f32 %v348, %v349
    %v351 = vrot.slane %v350, 1
    %v352 = vadd.f32 %v350, %v351
    %v353 = vsel %vm274, %v333, 0.0
    %v354 = vrot.slane %v353, 4
    %v355 = vadd.f32 %v353, %v354
    %v356 = vrot.slane %v355, 2
    %v357 = vadd.f32 %v355, %v356
    %v358 = vrot.slane %v357, 1
    %v359 = vadd.f32 %v357, %v358
    %v360 = vsel %vm274, %v334, 0.0
    %v361 = vrot.slane %v360, 4
    %v362 = vadd.f32 %v360, %v361
    %v363 = vrot.slane %v362, 2
    %v364 = vadd.f32 %v362, %v363
    %v365 = vrot.slane %v364, 1
    %v366 = vadd.f32 %v364, %v365
    %v367 = vsel %vm274, %v335, 0.0
    %v368 = vrot.slane %v367, 4
    %v369 = vadd.f32 %v367, %v368
    %v370 = vrot.slane %v369, 2
    %v371 = vadd.f32 %v369, %v370
    %v372 = vrot.slane %v371, 1
    %v373 = vadd.f32 %v371, %v372
    %v374 = vsel %vm274, %v336, 0.0
    %v375 = vrot.slane %v374, 4
    %v376 = vadd.f32 %v374, %v375
    %v377 = vrot.slane %v376, 2
    %v378 = vadd.f32 %v376, %v377
    %v379 = vrot.slane %v378, 1
    %v380 = vadd.f32 %v378, %v379
    %v381 = vsel %vm274, %v337, 0.0
    %v382 = vrot.slane %v381, 4
    %v383 = vadd.f32 %v381, %v382
    %v384 = vrot.slane %v383, 2
    %v385 = vadd.f32 %v383, %v384
    %v386 = vrot.slane %v385, 1
    %v387 = vadd.f32 %v385, %v386
    %v388 = vsel %vm274, %v338, 0.0
    %v389 = vrot.slane %v388, 4
    %v390 = vadd.f32 %v388, %v389
    %v391 = vrot.slane %v390, 2
    %v392 = vadd.f32 %v390, %v391
    %v393 = vrot.slane %v392, 1
    %v394 = vadd.f32 %v392, %v393
    %vm395 = vcmask 1040384
    %v396 = vsel %vm395, %v281, %v345
    %v397 = vsel %vm395, %v288, %v352
    %v398 = vsel %vm395, %v295, %v359
    %v399 = vsel %vm395, %v302, %v366
    %v400 = vsel %vm395, %v309, %v373
    %v401 = vsel %vm395, %v316, %v380
    %v402 = vsel %vm395, %v323, %v387
    %v403 = vsel %vm395, %v330, %v394
    %v404 = vadd.f32 %v396, %v400
    %v405 = vadd.f32 %v397, %v401
    %v406 = vadd.f32 %v398, %v402
    %v407 = vadd.f32 %v399, %v403
    %v408 = vadd.f32 %v404, %v406
    %v409 = vadd.f32 %v405, %v407
    %v410 = vadd.f32 %v408, %v409
    %411 = vrot.lane.b32.xlu0 %v410, 64
    %v412 = vpop.permute.xlu0 %411
    %v413 = vlaneseq
    %v414 = vand.u32 %v413, 127
    %v415 = vadd.f32 %v410, %v412
    %v416 = vmul.f32 %v415, 0.03125
    %v417 = vmul.f32 %v416, %v416
    %v419 = vrot.slane %v417, 7
    %v421 = vsub.f32 %v416, %v419
    %v422 = vadd.f32 %v421, 1e-05
    %v423 = vrsqrt.pop %v422
    %v425 = vcombine.low %v423, %v423
    %v427 = vunpack.c.l.s4 1966171168
    %v428 = vunpack.c.0.s8 %v427
    %v429 = vlaneseq
    %v430 = vshrl.u32 %v429, 7
    %v431 = vsub.s32 %v428, %v430
    %v432 = vrot.slane %v425, %v431
    %v433 = vcombine.high %v432, %v432
    %v435 = vunpack.c.l.s4 1966171168
    %v436 = vunpack.c.0.s8 %v435
    %v437 = vlaneseq
    %v438 = vshrl.u32 %v437, 7
    %v439 = vsub.s32 %v436, %v438
    %v440 = vrot.slane %v433, %v439
    %v441 = vcombine.low %v440, %v440
    %v443 = vmul.f32 %v272, %v441
    %v445 = vlaneseq
    %v446 = vshrl.u32 %v445, 7
    %v447 = vsub.s32 0, %v446
    %v448 = vrot.slane %v443, %v447
    %v449 = vlaneseq
    %v450 = vshrl.u32 %v449, 7
    %v451 = vsub.s32 1, %v450
    %v452 = vrot.slane %v443, %v451
    %v453 = vlaneseq
    %v454 = vshrl.u32 %v453, 7
    %v455 = vsub.s32 2, %v454
    %v456 = vrot.slane %v443, %v455
    %v457 = vlaneseq
    %v458 = vshrl.u32 %v457, 7
    %v459 = vsub.s32 3, %v458
    %v460 = vrot.slane %v443, %v459
    %v461 = vlaneseq
    %v462 = vshrl.u32 %v461, 7
    %v463 = vsub.s32 4, %v462
    %v464 = vrot.slane %v443, %v463
    %v465 = vlaneseq
    %v466 = vshrl.u32 %v465, 7
    %v467 = vsub.s32 5, %v466
    %v468 = vrot.slane %v443, %v467
    %v469 = vlaneseq
    %v470 = vshrl.u32 %v469, 7
    %v471 = vsub.s32 6, %v470
    %v472 = vrot.slane %v443, %v471
    %v473 = vlaneseq
    %v474 = vshrl.u32 %v473, 7
    %v475 = vsub.s32 7, %v474
    %v476 = vrot.slane %v443, %v475
    %v485 = vmul.f32 %v416, %v448
    %v486 = vmul.f32 %v416, %v452
    %v487 = vmul.f32 %v416, %v456
    %v488 = vmul.f32 %v416, %v460
    %v489 = vmul.f32 %v416, %v464
    %v490 = vmul.f32 %v416, %v468
    %v491 = vmul.f32 %v416, %v472
    %v492 = vmul.f32 %v416, %v476
    %v501 = vcombine.low %v485, %v486
    %v502 = vcombine.low %v487, %v488
    %v503 = vcombine.low %v489, %v490
    %v504 = vcombine.low %v491, %v492
    %v506 = vunpack.c.l.s4 1966171168
    %v507 = vunpack.c.0.s8 %v506
    %v508 = vlaneseq
    %v509 = vshrl.u32 %v508, 7
    %v510 = vsub.s32 %v507, %v509
    %v511 = vrot.slane %v501, %v510
    %v513 = vunpack.c.l.s4 1966171168
    %v514 = vunpack.c.0.s8 %v513
    %v515 = vlaneseq
    %v516 = vshrl.u32 %v515, 7
    %v517 = vsub.s32 %v514, %v516
    %v518 = vrot.slane %v502, %v517
    %v520 = vunpack.c.l.s4 1966171168
    %v521 = vunpack.c.0.s8 %v520
    %v522 = vlaneseq
    %v523 = vshrl.u32 %v522, 7
    %v524 = vsub.s32 %v521, %v523
    %v525 = vrot.slane %v503, %v524
    %v527 = vunpack.c.l.s4 1966171168
    %v528 = vunpack.c.0.s8 %v527
    %v529 = vlaneseq
    %v530 = vshrl.u32 %v529, 7
    %v531 = vsub.s32 %v528, %v530
    %v532 = vrot.slane %v504, %v531
    %v533 = vcombine.low %v511, %v518
    %v534 = vcombine.low %v525, %v532
    %v536 = vunpack.c.l.s4 1966171168
    %v537 = vunpack.c.0.s8 %v536
    %v538 = vlaneseq
    %v539 = vshrl.u32 %v538, 7
    %v540 = vsub.s32 %v537, %v539
    %v541 = vrot.slane %v533, %v540
    %v543 = vunpack.c.l.s4 1966171168
    %v544 = vunpack.c.0.s8 %v543
    %v545 = vlaneseq
    %v546 = vshrl.u32 %v545, 7
    %v547 = vsub.s32 %v544, %v546
    %v548 = vrot.slane %v534, %v547
    %v549 = vcombine.low %v541, %v548
    %v551 = vsub.f32 %v273, %v549
    %v552 = vmul.f32 %v143, %v448
    %v553 = vmul.f32 %v145, %v452
    %v554 = vmul.f32 %v184, %v456
    %v555 = vmul.f32 %v186, %v460
    %v556 = vmul.f32 %v225, %v464
    %v557 = vmul.f32 %v227, %v468
    %v558 = vmul.f32 %v266, %v472
    %v559 = vmul.f32 %v268, %v476
    %v561 = vlaneseq
    %v562 = vshrl.u32 %v561, 7
    %v563 = vsub.s32 0, %v562
    %v564 = vrot.slane %v551, %v563
    %v565 = vlaneseq
    %v566 = vshrl.u32 %v565, 7
    %v567 = vsub.s32 1, %v566
    %v568 = vrot.slane %v551, %v567
    %v569 = vlaneseq
    %v570 = vshrl.u32 %v569, 7
    %v571 = vsub.s32 2, %v570
    %v572 = vrot.slane %v551, %v571
    %v573 = vlaneseq
    %v574 = vshrl.u32 %v573, 7
    %v575 = vsub.s32 3, %v574
    %v576 = vrot.slane %v551, %v575
    %v577 = vlaneseq
    %v578 = vshrl.u32 %v577, 7
    %v579 = vsub.s32 4, %v578
    %v580 = vrot.slane %v551, %v579
    %v581 = vlaneseq
    %v582 = vshrl.u32 %v581, 7
    %v583 = vsub.s32 5, %v582
    %v584 = vrot.slane %v551, %v583
    %v585 = vlaneseq
    %v586 = vshrl.u32 %v585, 7
    %v587 = vsub.s32 6, %v586
    %v588 = vrot.slane %v551, %v587
    %v589 = vlaneseq
    %v590 = vshrl.u32 %v589, 7
    %v591 = vsub.s32 7, %v590
    %v592 = vrot.slane %v551, %v591
    %v601 = vadd.f32 %v552, %v564
    %v602 = vadd.f32 %v553, %v568
    %v603 = vadd.f32 %v554, %v572
    %v604 = vadd.f32 %v555, %v576
    %v605 = vadd.f32 %v556, %v580
    %v606 = vadd.f32 %v557, %v584
    %v607 = vadd.f32 %v558, %v588
    %v608 = vadd.f32 %v559, %v592
    %v609 = vmax.f32 %v601, 0.0
    %v610 = vmax.f32 %v602, 0.0
    %v611 = vmax.f32 %v603, 0.0
    %v612 = vmax.f32 %v604, 0.0
    %v613 = vmax.f32 %v605, 0.0
    %v614 = vmax.f32 %v606, 0.0
    %v615 = vmax.f32 %v607, 0.0
    %v616 = vmax.f32 %v608, 0.0
    %v617 = vpack.c.bf16 %v609, %v609
    %v618 = vpack.c.bf16 %v610, %v610
    %v619 = vpack.c.bf16 %v611, %v611
    %v620 = vpack.c.bf16 %v612, %v612
    %v621 = vpack.c.bf16 %v613, %v613
    %v622 = vpack.c.bf16 %v614, %v614
    %v623 = vpack.c.bf16 %v615, %v615
    %v624 = vpack.c.bf16 %v616, %v616
    %v633 = vcombine.low %v617, %v618
    %v634 = vcombine.low %v619, %v620
    %v635 = vcombine.low %v621, %v622
    %v636 = vcombine.low %v623, %v624
    %v638 = vunpack.c.l.s4 1966171168
    %v639 = vunpack.c.0.s8 %v638
    %v640 = vlaneseq
    %v641 = vshrl.u32 %v640, 7
    %v642 = vsub.s32 %v639, %v641
    %v643 = vrot.slane %v633, %v642
    %v645 = vunpack.c.l.s4 1966171168
    %v646 = vunpack.c.0.s8 %v645
    %v647 = vlaneseq
    %v648 = vshrl.u32 %v647, 7
    %v649 = vsub.s32 %v646, %v648
    %v650 = vrot.slane %v634, %v649
    %v652 = vunpack.c.l.s4 1966171168
    %v653 = vunpack.c.0.s8 %v652
    %v654 = vlaneseq
    %v655 = vshrl.u32 %v654, 7
    %v656 = vsub.s32 %v653, %v655
    %v657 = vrot.slane %v635, %v656
    %v659 = vunpack.c.l.s4 1966171168
    %v660 = vunpack.c.0.s8 %v659
    %v661 = vlaneseq
    %v662 = vshrl.u32 %v661, 7
    %v663 = vsub.s32 %v660, %v662
    %v664 = vrot.slane %v636, %v663
    %v665 = vcombine.low %v643, %v650
    %v666 = vcombine.low %v657, %v664
    %v668 = vunpack.c.l.s4 1966171168
    %v669 = vunpack.c.0.s8 %v668
    %v670 = vlaneseq
    %v671 = vshrl.u32 %v670, 7
    %v672 = vsub.s32 %v669, %v671
    %v673 = vrot.slane %v665, %v672
    %v675 = vunpack.c.l.s4 1966171168
    %v676 = vunpack.c.0.s8 %v675
    %v677 = vlaneseq
    %v678 = vshrl.u32 %v677, 7
    %v679 = vsub.s32 %v676, %v678
    %v680 = vrot.slane %v666, %v679
    %v681 = vcombine.low %v673, %v680
    %683 = vst [vmem:[%s4] sm:$0xff] %v681
    // Predicated region
    $region30: #{_lambda_.5} parent=1 // pred_check
      _
    $region31: #{_lambda_.5} parent=1 // pred_check_branch
      %685 = sbr.rel (0) target = $region33
    $region32: #{_lambda_.5} parent=1 // pred_region
      _
    $region33: #{_lambda_.5} parent=1 // pred_fallthru
      _
    // Predicated region
    $region34: #{_lambda_.5} parent=1 // pred_check
      _
    $region35: #{_lambda_.5} parent=1 // pred_check_branch
      %687 = sbr.rel (0) target = $region37
    $region36: #{_lambda_.5} parent=1 // pred_region
      _
    $region37: #{_lambda_.5} parent=1 // pred_fallthru
      _
    %688 = vsyncpa [#allocation3], 1
    %689 = vsyncpa [#allocation5], 1

// kernel: _lambda_.8
$region0: #{_lambda_.8}
  #allocation0 [shape = 'u32[]', space=smem, size = 0x4, offset = 0x4, fixed_abs, tag = 'smem constant byte address 0x4 - core index']
  #allocation1 [shape = 'u32[144,128]{1,0:T(1,128)}', space=vmem, size = 0x12000, scoped, tag = 'internal scratch']
  %s0 = inlined_call_operand.vmem [shape: bf16[32,256], index: 0, kind: input, shape index: {}]
  %s1 = inlined_call_operand.hbm [shape: bf16[256,1024], index: 1, kind: input, shape index: {}]
  %s2 = inlined_call_operand.hbm [shape: f32[1,512], index: 2, kind: input, shape index: {}]
  %s3 = inlined_call_operand.hbm [shape: f32[1,512], index: 3, kind: input, shape index: {}]
  %s4 = inlined_call_operand.vmem [shape: bf16[32,512], index: 4, kind: output, shape index: {}]
  %s5 = sld [smem:[#allocation0]]
  $region38: #{_lambda_.8} parent=0
    _
  %s7 = ssub.s32 1, %s5
  %s8 = scalar_select 0, %s7, %s5
  $region1: #{_lambda_.8} parent=0
    #allocation2 [shape = 'u8[524288]{0}', space=vmem, size = 0x80000, scoped, tag = 'input window, operand 1, single buffered']
    #allocation3 [shape = 's32[1]{0}', space=sflag, size = 0x4, scoped, tag = 'scoped memory for _lambda_.8']
    #allocation4 [shape = 'u8[2048]{0}', space=vmem, size = 0x800, scoped, tag = 'input window, operand 2, single buffered']
    #allocation5 [shape = 's32[1]{0}', space=sflag, size = 0x4, scoped, tag = 'scoped memory for _lambda_.8']
    #allocation6 [shape = 'u8[2048]{0}', space=vmem, size = 0x800, scoped, tag = 'input window, operand 3, single buffered']
    %9 = vsyncpa [#allocation3], 0
    %10 = vsyncpa [#allocation5], 0
    // Predicated region
    $region2: #{_lambda_.8} parent=1 // pred_check
      _
    $region3: #{_lambda_.8} parent=1 // pred_check_branch
      %12 = sbr.rel (0) target = $region5
    $region4: #{_lambda_.8} parent=1 // pred_region
      _
    $region5: #{_lambda_.8} parent=1 // pred_fallthru
      _
    // Predicated region
    $region6: #{_lambda_.8} parent=1 // pred_check
      _
    $region7: #{_lambda_.8} parent=1 // pred_check_branch
      %14 = sbr.rel (0) target = $region9
    $region8: #{_lambda_.8} parent=1 // pred_region
      %s16 = ssub.s32 16384, 16384
      %17 = vsyncadd [#allocation3], %s16
      %s18 = sshll.u32 [#allocation2], 4
      %s19 = int_to_ptr.vmem [resolvable:$true] %s18
      %24 = dma.hbm_to_vmem [thread:$0]  %s1, 16384, %s19, [#allocation3], 512, 512, 32
    $region9: #{_lambda_.8} parent=1 // pred_fallthru
      _
    // Predicated region
    $region10: #{_lambda_.8} parent=1 // pred_check
      _
    $region11: #{_lambda_.8} parent=1 // pred_check_branch
      %26 = sbr.rel (0) target = $region13
    $region12: #{_lambda_.8} parent=1 // pred_region
      %s28 = ssub.s32 64, 64
      %29 = vsyncadd [#allocation5], %s28
      %s31 = sshll.u32 [#allocation4], 4
      %s32 = int_to_ptr.vmem [resolvable:$true] %s31
      %34 = dma.hbm_to_vmem [thread:$0]  %s2, 64, %s32, [#allocation5]
    $region13: #{_lambda_.8} parent=1 // pred_fallthru
      _
    // Predicated region
    $region14: #{_lambda_.8} parent=1 // pred_check
      _
    $region15: #{_lambda_.8} parent=1 // pred_check_branch
      %36 = sbr.rel (0) target = $region17
    $region16: #{_lambda_.8} parent=1 // pred_region
      %s38 = ssub.s32 64, 64
      %39 = vsyncadd [#allocation5], %s38
      %s41 = sshll.u32 [#allocation6], 4
      %s42 = int_to_ptr.vmem [resolvable:$true] %s41
      %44 = dma.hbm_to_vmem [thread:$0]  %s3, 64, %s42, [#allocation5]
    $region17: #{_lambda_.8} parent=1 // pred_fallthru
      _
    // Predicated region
    $region18: #{_lambda_.8} parent=1 // pred_check
      _
    $region19: #{_lambda_.8} parent=1 // pred_check_branch
      %46 = sbr.rel (0) target = $region21
    $region20: #{_lambda_.8} parent=1 // pred_region
      %47 = dma.done [#allocation3], 16384
    $region21: #{_lambda_.8} parent=1 // pred_fallthru
      _
    // Predicated region
    $region22: #{_lambda_.8} parent=1 // pred_check
      _
    $region23: #{_lambda_.8} parent=1 // pred_check_branch
      %49 = sbr.rel (0) target = $region25
    $region24: #{_lambda_.8} parent=1 // pred_region
      %50 = dma.done [#allocation5], 64
    $region25: #{_lambda_.8} parent=1 // pred_fallthru
      _
    // Predicated region
    $region26: #{_lambda_.8} parent=1 // pred_check
      _
    $region27: #{_lambda_.8} parent=1 // pred_check_branch
      %52 = sbr.rel (0) target = $region29
    $region28: #{_lambda_.8} parent=1 // pred_region
      %53 = dma.done [#allocation5], 64
    $region29: #{_lambda_.8} parent=1 // pred_fallthru
      _
    %v54 = vld [vmem:[%s0] sm:$0xff]
    %v55 = vld [vmem:[%s0 + $0x8] sm:$0xff]
    %v56 = vld [vmem:[%s0 + $0x10] sm:$0xff]
    %v57 = vld [vmem:[%s0 + $0x18] sm:$0xff]
    %v58 = vld [vmem:[#allocation2] sm:$0xff]
    %v59 = vld [vmem:[#allocation2 + $0x8] sm:$0xff]
    %v60 = vld [vmem:[#allocation2 + $0x10] sm:$0xff]
    %v61 = vld [vmem:[#allocation2 + $0x18] sm:$0xff]
    %v62 = vld [vmem:[#allocation2 + $0x20] sm:$0xff]
    %v63 = vld [vmem:[#allocation2 + $0x28] sm:$0xff]
    %v64 = vld [vmem:[#allocation2 + $0x30] sm:$0xff]
    %v65 = vld [vmem:[#allocation2 + $0x38] sm:$0xff]
    %v66 = vld [vmem:[#allocation2 + $0x40] sm:$0xff]
    %v67 = vld [vmem:[#allocation2 + $0x48] sm:$0xff]
    %v68 = vld [vmem:[#allocation2 + $0x50] sm:$0xff]
    %v69 = vld [vmem:[#allocation2 + $0x58] sm:$0xff]
    %v70 = vld [vmem:[#allocation2 + $0x60] sm:$0xff]
    %v71 = vld [vmem:[#allocation2 + $0x68] sm:$0xff]
    %v72 = vld [vmem:[#allocation2 + $0x70] sm:$0xff]
    %v73 = vld [vmem:[#allocation2 + $0x78] sm:$0xff]
    %v74 = vld [vmem:[#allocation2 + $0x80] sm:$0xff]
    %v75 = vld [vmem:[#allocation2 + $0x88] sm:$0xff]
    %v76 = vld [vmem:[#allocation2 + $0x90] sm:$0xff]
    %v77 = vld [vmem:[#allocation2 + $0x98] sm:$0xff]
    %v78 = vld [vmem:[#allocation2 + $0xa0] sm:$0xff]
    %v79 = vld [vmem:[#allocation2 + $0xa8] sm:$0xff]
    %v80 = vld [vmem:[#allocation2 + $0xb0] sm:$0xff]
    %v81 = vld [vmem:[#allocation2 + $0xb8] sm:$0xff]
    %v82 = vld [vmem:[#allocation2 + $0xc0] sm:$0xff]
    %v83 = vld [vmem:[#allocation2 + $0xc8] sm:$0xff]
    %v84 = vld [vmem:[#allocation2 + $0xd0] sm:$0xff]
    %v85 = vld [vmem:[#allocation2 + $0xd8] sm:$0xff]
    %v86 = vld [vmem:[#allocation2 + $0xe0] sm:$0xff]
    %v87 = vld [vmem:[#allocation2 + $0xe8] sm:$0xff]
    %v88 = vld [vmem:[#allocation2 + $0xf0] sm:$0xff]
    %v89 = vld [vmem:[#allocation2 + $0xf8] sm:$0xff]
    %v90 = vld [vmem:[#allocation2 + $0x100] sm:$0xff]
    %v91 = vld [vmem:[#allocation2 + $0x108] sm:$0xff]
    %v92 = vld [vmem:[#allocation2 + $0x110] sm:$0xff]
    %v93 = vld [vmem:[#allocation2 + $0x118] sm:$0xff]
    %v94 = vld [vmem:[#allocation2 + $0x120] sm:$0xff]
    %v95 = vld [vmem:[#allocation2 + $0x128] sm:$0xff]
    %v96 = vld [vmem:[#allocation2 + $0x130] sm:$0xff]
    %v97 = vld [vmem:[#allocation2 + $0x138] sm:$0xff]
    %v98 = vld [vmem:[#allocation2 + $0x140] sm:$0xff]
    %v99 = vld [vmem:[#allocation2 + $0x148] sm:$0xff]
    %v100 = vld [vmem:[#allocation2 + $0x150] sm:$0xff]
    %v101 = vld [vmem:[#allocation2 + $0x158] sm:$0xff]
    %v102 = vld [vmem:[#allocation2 + $0x160] sm:$0xff]
    %v103 = vld [vmem:[#allocation2 + $0x168] sm:$0xff]
    %v104 = vld [vmem:[#allocation2 + $0x170] sm:$0xff]
    %v105 = vld [vmem:[#allocation2 + $0x178] sm:$0xff]
    %v106 = vld [vmem:[#allocation2 + $0x180] sm:$0xff]
    %v107 = vld [vmem:[#allocation2 + $0x188] sm:$0xff]
    %v108 = vld [vmem:[#allocation2 + $0x190] sm:$0xff]
    %v109 = vld [vmem:[#allocation2 + $0x198] sm:$0xff]
    %v110 = vld [vmem:[#allocation2 + $0x1a0] sm:$0xff]
    %v111 = vld [vmem:[#allocation2 + $0x1a8] sm:$0xff]
    %v112 = vld [vmem:[#allocation2 + $0x1b0] sm:$0xff]
    %v113 = vld [vmem:[#allocation2 + $0x1b8] sm:$0xff]
    %v114 = vld [vmem:[#allocation2 + $0x1c0] sm:$0xff]
    %v115 = vld [vmem:[#allocation2 + $0x1c8] sm:$0xff]
    %v116 = vld [vmem:[#allocation2 + $0x1d0] sm:$0xff]
    %v117 = vld [vmem:[#allocation2 + $0x1d8] sm:$0xff]
    %v118 = vld [vmem:[#allocation2 + $0x1e0] sm:$0xff]
    %v119 = vld [vmem:[#allocation2 + $0x1e8] sm:$0xff]
    %v120 = vld [vmem:[#allocation2 + $0x1f0] sm:$0xff]
    %v121 = vld [vmem:[#allocation2 + $0x1f8] sm:$0xff]
    %v122 = vld [vmem:[#allocation2 + $0x200] sm:$0xff]
    %v123 = vld [vmem:[#allocation2 + $0x208] sm:$0xff]
    %v124 = vld [vmem:[#allocation2 + $0x210] sm:$0xff]
    %v125 = vld [vmem:[#allocation2 + $0x218] sm:$0xff]
    %v126 = vld [vmem:[#allocation2 + $0x220] sm:$0xff]
    %v127 = vld [vmem:[#allocation2 + $0x228] sm:$0xff]
    %v128 = vld [vmem:[#allocation2 + $0x230] sm:$0xff]
    %v129 = vld [vmem:[#allocation2 + $0x238] sm:$0xff]
    %v130 = vld [vmem:[#allocation2 + $0x240] sm:$0xff]
    %v131 = vld [vmem:[#allocation2 + $0x248] sm:$0xff]
    %v132 = vld [vmem:[#allocation2 + $0x250] sm:$0xff]
    %v133 = vld [vmem:[#allocation2 + $0x258] sm:$0xff]
    %v134 = vld [vmem:[#allocation2 + $0x260] sm:$0xff]
    %v135 = vld [vmem:[#allocation2 + $0x268] sm:$0xff]
    %v136 = vld [vmem:[#allocation2 + $0x270] sm:$0xff]
    %v137 = vld [vmem:[#allocation2 + $0x278] sm:$0xff]
    %v138 = vld [vmem:[#allocation2 + $0x280] sm:$0xff]
    %v139 = vld [vmem:[#allocation2 + $0x288] sm:$0xff]
    %v140 = vld [vmem:[#allocation2 + $0x290] sm:$0xff]
    %v141 = vld [vmem:[#allocation2 + $0x298] sm:$0xff]
    %v142 = vld [vmem:[#allocation2 + $0x2a0] sm:$0xff]
    %v143 = vld [vmem:[#allocation2 + $0x2a8] sm:$0xff]
    %v144 = vld [vmem:[#allocation2 + $0x2b0] sm:$0xff]
    %v145 = vld [vmem:[#allocation2 + $0x2b8] sm:$0xff]
    %v146 = vld [vmem:[#allocation2 + $0x2c0] sm:$0xff]
    %v147 = vld [vmem:[#allocation2 + $0x2c8] sm:$0xff]
    %v148 = vld [vmem:[#allocation2 + $0x2d0] sm:$0xff]
    %v149 = vld [vmem:[#allocation2 + $0x2d8] sm:$0xff]
    %v150 = vld [vmem:[#allocation2 + $0x2e0] sm:$0xff]
    %v151 = vld [vmem:[#allocation2 + $0x2e8] sm:$0xff]
    %v152 = vld [vmem:[#allocation2 + $0x2f0] sm:$0xff]
    %v153 = vld [vmem:[#allocation2 + $0x2f8] sm:$0xff]
    %v154 = vld [vmem:[#allocation2 + $0x300] sm:$0xff]
    %v155 = vld [vmem:[#allocation2 + $0x308] sm:$0xff]
    %v156 = vld [vmem:[#allocation2 + $0x310] sm:$0xff]
    %v157 = vld [vmem:[#allocation2 + $0x318] sm:$0xff]
    %v158 = vld [vmem:[#allocation2 + $0x320] sm:$0xff]
    %v159 = vld [vmem:[#allocation2 + $0x328] sm:$0xff]
    %v160 = vld [vmem:[#allocation2 + $0x330] sm:$0xff]
    %v161 = vld [vmem:[#allocation2 + $0x338] sm:$0xff]
    %v162 = vld [vmem:[#allocation2 + $0x340] sm:$0xff]
    %v163 = vld [vmem:[#allocation2 + $0x348] sm:$0xff]
    %v164 = vld [vmem:[#allocation2 + $0x350] sm:$0xff]
    %v165 = vld [vmem:[#allocation2 + $0x358] sm:$0xff]
    %v166 = vld [vmem:[#allocation2 + $0x360] sm:$0xff]
    %v167 = vld [vmem:[#allocation2 + $0x368] sm:$0xff]
    %v168 = vld [vmem:[#allocation2 + $0x370] sm:$0xff]
    %v169 = vld [vmem:[#allocation2 + $0x378] sm:$0xff]
    %v170 = vld [vmem:[#allocation2 + $0x380] sm:$0xff]
    %v171 = vld [vmem:[#allocation2 + $0x388] sm:$0xff]
    %v172 = vld [vmem:[#allocation2 + $0x390] sm:$0xff]
    %v173 = vld [vmem:[#allocation2 + $0x398] sm:$0xff]
    %v174 = vld [vmem:[#allocation2 + $0x3a0] sm:$0xff]
    %v175 = vld [vmem:[#allocation2 + $0x3a8] sm:$0xff]
    %v176 = vld [vmem:[#allocation2 + $0x3b0] sm:$0xff]
    %v177 = vld [vmem:[#allocation2 + $0x3b8] sm:$0xff]
    %v178 = vld [vmem:[#allocation2 + $0x3c0] sm:$0xff]
    %v179 = vld [vmem:[#allocation2 + $0x3c8] sm:$0xff]
    %v180 = vld [vmem:[#allocation2 + $0x3d0] sm:$0xff]
    %v181 = vld [vmem:[#allocation2 + $0x3d8] sm:$0xff]
    %v182 = vld [vmem:[#allocation2 + $0x3e0] sm:$0xff]
    %v183 = vld [vmem:[#allocation2 + $0x3e8] sm:$0xff]
    %v184 = vld [vmem:[#allocation2 + $0x3f0] sm:$0xff]
    %v185 = vld [vmem:[#allocation2 + $0x3f8] sm:$0xff]
    %v190 = vunpack.c.l.b16 %v54
    %v191 = vunpack.c.h.b16 %v54
    %v192 = vunpack.c.l.b16 %v55
    %v193 = vunpack.c.h.b16 %v55
    %v194 = vunpack.c.l.b16 %v56
    %v195 = vunpack.c.h.b16 %v56
    %v196 = vunpack.c.l.b16 %v57
    %v197 = vunpack.c.h.b16 %v57
    %v198 = vpack.c.b16 %v192, %v190
    %v199 = vpack.c.b16 %v193, %v191
    %v200 = vpack.c.b16 %v196, %v194
    %v201 = vpack.c.b16 %v197, %v195
    %v334 = vunpack.c.l.b16 %v58
    %v335 = vunpack.c.h.b16 %v58
    %v336 = vunpack.c.l.b16 %v59
    %v337 = vunpack.c.h.b16 %v59
    %v338 = vunpack.c.l.b16 %v60
    %v339 = vunpack.c.h.b16 %v60
    %v340 = vunpack.c.l.b16 %v61
    %v341 = vunpack.c.h.b16 %v61
    %v342 = vunpack.c.l.b16 %v62
    %v343 = vunpack.c.h.b16 %v62
    %v344 = vunpack.c.l.b16 %v63
    %v345 = vunpack.c.h.b16 %v63
    %v346 = vunpack.c.l.b16 %v64
    %v347 = vunpack.c.h.b16 %v64
    %v348 = vunpack.c.l.b16 %v65
    %v349 = vunpack.c.h.b16 %v65
    %v350 = vunpack.c.l.b16 %v66
    %v351 = vunpack.c.h.b16 %v66
    %v352 = vunpack.c.l.b16 %v67
    %v353 = vunpack.c.h.b16 %v67
    %v354 = vunpack.c.l.b16 %v68
    %v355 = vunpack.c.h.b16 %v68
    %v356 = vunpack.c.l.b16 %v69
    %v357 = vunpack.c.h.b16 %v69
    %v358 = vunpack.c.l.b16 %v70
    %v359 = vunpack.c.h.b16 %v70
    %v360 = vunpack.c.l.b16 %v71
    %v361 = vunpack.c.h.b16 %v71
    %v362 = vunpack.c.l.b16 %v72
    %v363 = vunpack.c.h.b16 %v72
    %v364 = vunpack.c.l.b16 %v73
    %v365 = vunpack.c.h.b16 %v73
    %v366 = vunpack.c.l.b16 %v74
    %v367 = vunpack.c.h.b16 %v74
    %v368 = vunpack.c.l.b16 %v75
    %v369 = vunpack.c.h.b16 %v75
    %v370 = vunpack.c.l.b16 %v76
    %v371 = vunpack.c.h.b16 %v76
    %v372 = vunpack.c.l.b16 %v77
    %v373 = vunpack.c.h.b16 %v77
    %v374 = vunpack.c.l.b16 %v78
    %v375 = vunpack.c.h.b16 %v78
    %v376 = vunpack.c.l.b16 %v79
    %v377 = vunpack.c.h.b16 %v79
    %v378 = vunpack.c.l.b16 %v80
    %v379 = vunpack.c.h.b16 %v80
    %v380 = vunpack.c.l.b16 %v81
    %v381 = vunpack.c.h.b16 %v81
    %v382 = vunpack.c.l.b16 %v82
    %v383 = vunpack.c.h.b16 %v82
    %v384 = vunpack.c.l.b16 %v83
    %v385 = vunpack.c.h.b16 %v83
    %v386 = vunpack.c.l.b16 %v84
    %v387 = vunpack.c.h.b16 %v84
    %v388 = vunpack.c.l.b16 %v85
    %v389 = vunpack.c.h.b16 %v85
    %v390 = vunpack.c.l.b16 %v86
    %v391 = vunpack.c.h.b16 %v86
    %v392 = vunpack.c.l.b16 %v87
    %v393 = vunpack.c.h.b16 %v87
    %v394 = vunpack.c.l.b16 %v88
    %v395 = vunpack.c.h.b16 %v88
    %v396 = vunpack.c.l.b16 %v89
    %v397 = vunpack.c.h.b16 %v89
    %v398 = vunpack.c.l.b16 %v90
    %v399 = vunpack.c.h.b16 %v90
    %v400 = vunpack.c.l.b16 %v91
    %v401 = vunpack.c.h.b16 %v91
    %v402 = vunpack.c.l.b16 %v92
    %v403 = vunpack.c.h.b16 %v92
    %v404 = vunpack.c.l.b16 %v93
    %v405 = vunpack.c.h.b16 %v93
    %v406 = vunpack.c.l.b16 %v94
    %v407 = vunpack.c.h.b16 %v94
    %v408 = vunpack.c.l.b16 %v95
    %v409 = vunpack.c.h.b16 %v95
    %v410 = vunpack.c.l.b16 %v96
    %v411 = vunpack.c.h.b16 %v96
    %v412 = vunpack.c.l.b16 %v97
    %v413 = vunpack.c.h.b16 %v97
    %v414 = vunpack.c.l.b16 %v98
    %v415 = vunpack.c.h.b16 %v98
    %v416 = vunpack.c.l.b16 %v99
    %v417 = vunpack.c.h.b16 %v99
    %v418 = vunpack.c.l.b16 %v100
    %v419 = vunpack.c.h.b16 %v100
    %v420 = vunpack.c.l.b16 %v101
    %v421 = vunpack.c.h.b16 %v101
    %v422 = vunpack.c.l.b16 %v102
    %v423 = vunpack.c.h.b16 %v102
    %v424 = vunpack.c.l.b16 %v103
    %v425 = vunpack.c.h.b16 %v103
    %v426 = vunpack.c.l.b16 %v104
    %v427 = vunpack.c.h.b16 %v104
    %v428 = vunpack.c.l.b16 %v105
    %v429 = vunpack.c.h.b16 %v105
    %v430 = vunpack.c.l.b16 %v106
    %v431 = vunpack.c.h.b16 %v106
    %v432 = vunpack.c.l.b16 %v107
    %v433 = vunpack.c.h.b16 %v107
    %v434 = vunpack.c.l.b16 %v108
    %v435 = vunpack.c.h.b16 %v108
    %v436 = vunpack.c.l.b16 %v109
    %v437 = vunpack.c.h.b16 %v109
    %v438 = vunpack.c.l.b16 %v110
    %v439 = vunpack.c.h.b16 %v110
    %v440 = vunpack.c.l.b16 %v111
    %v441 = vunpack.c.h.b16 %v111
    %v442 = vunpack.c.l.b16 %v112
    %v443 = vunpack.c.h.b16 %v112
    %v444 = vunpack.c.l.b16 %v113
    %v445 = vunpack.c.h.b16 %v113
    %v446 = vunpack.c.l.b16 %v114
    %v447 = vunpack.c.h.b16 %v114
    %v448 = vunpack.c.l.b16 %v115
    %v449 = vunpack.c.h.b16 %v115
    %v450 = vunpack.c.l.b16 %v116
    %v451 = vunpack.c.h.b16 %v116
    %v452 = vunpack.c.l.b16 %v117
    %v453 = vunpack.c.h.b16 %v117
    %v454 = vunpack.c.l.b16 %v118
    %v455 = vunpack.c.h.b16 %v118
    %v456 = vunpack.c.l.b16 %v119
    %v457 = vunpack.c.h.b16 %v119
    %v458 = vunpack.c.l.b16 %v120
    %v459 = vunpack.c.h.b16 %v120
    %v460 = vunpack.c.l.b16 %v121
    %v461 = vunpack.c.h.b16 %v121
    %v462 = vunpack.c.l.b16 %v122
    %v463 = vunpack.c.h.b16 %v122
    %v464 = vunpack.c.l.b16 %v123
    %v465 = vunpack.c.h.b16 %v123
    %v466 = vunpack.c.l.b16 %v124
    %v467 = vunpack.c.h.b16 %v124
    %v468 = vunpack.c.l.b16 %v125
    %v469 = vunpack.c.h.b16 %v125
    %v470 = vunpack.c.l.b16 %v126
    %v471 = vunpack.c.h.b16 %v126
    %v472 = vunpack.c.l.b16 %v127
    %v473 = vunpack.c.h.b16 %v127
    %v474 = vunpack.c.l.b16 %v128
    %v475 = vunpack.c.h.b16 %v128
    %v476 = vunpack.c.l.b16 %v129
    %v477 = vunpack.c.h.b16 %v129
    %v478 = vunpack.c.l.b16 %v130
    %v479 = vunpack.c.h.b16 %v130
    %v480 = vunpack.c.l.b16 %v131
    %v481 = vunpack.c.h.b16 %v131
    %v482 = vunpack.c.l.b16 %v132
    %v483 = vunpack.c.h.b16 %v132
    %v484 = vunpack.c.l.b16 %v133
    %v485 = vunpack.c.h.b16 %v133
    %v486 = vunpack.c.l.b16 %v134
    %v487 = vunpack.c.h.b16 %v134
    %v488 = vunpack.c.l.b16 %v135
    %v489 = vunpack.c.h.b16 %v135
    %v490 = vunpack.c.l.b16 %v136
    %v491 = vunpack.c.h.b16 %v136
    %v492 = vunpack.c.l.b16 %v137
    %v493 = vunpack.c.h.b16 %v137
    %v494 = vunpack.c.l.b16 %v138
    %v495 = vunpack.c.h.b16 %v138
    %v496 = vunpack.c.l.b16 %v139
    %v497 = vunpack.c.h.b16 %v139
    %v498 = vunpack.c.l.b16 %v140
    %v499 = vunpack.c.h.b16 %v140
    %v500 = vunpack.c.l.b16 %v141
    %v501 = vunpack.c.h.b16 %v141
    %v502 = vunpack.c.l.b16 %v142
    %v503 = vunpack.c.h.b16 %v142
    %v504 = vunpack.c.l.b16 %v143
    %v505 = vunpack.c.h.b16 %v143
    %v506 = vunpack.c.l.b16 %v144
    %v507 = vunpack.c.h.b16 %v144
    %v508 = vunpack.c.l.b16 %v145
    %v509 = vunpack.c.h.b16 %v145
    %v510 = vunpack.c.l.b16 %v146
    %v511 = vunpack.c.h.b16 %v146
    %v512 = vunpack.c.l.b16 %v147
    %v513 = vunpack.c.h.b16 %v147
    %v514 = vunpack.c.l.b16 %v148
    %v515 = vunpack.c.h.b16 %v148
    %v516 = vunpack.c.l.b16 %v149
    %v517 = vunpack.c.h.b16 %v149
    %v518 = vunpack.c.l.b16 %v150
    %v519 = vunpack.c.h.b16 %v150
    %v520 = vunpack.c.l.b16 %v151
    %v521 = vunpack.c.h.b16 %v151
    %v522 = vunpack.c.l.b16 %v152
    %v523 = vunpack.c.h.b16 %v152
    %v524 = vunpack.c.l.b16 %v153
    %v525 = vunpack.c.h.b16 %v153
    %v526 = vunpack.c.l.b16 %v154
    %v527 = vunpack.c.h.b16 %v154
    %v528 = vunpack.c.l.b16 %v155
    %v529 = vunpack.c.h.b16 %v155
    %v530 = vunpack.c.l.b16 %v156
    %v531 = vunpack.c.h.b16 %v156
    %v532 = vunpack.c.l.b16 %v157
    %v533 = vunpack.c.h.b16 %v157
    %v534 = vunpack.c.l.b16 %v158
    %v535 = vunpack.c.h.b16 %v158
    %v536 = vunpack.c.l.b16 %v159
    %v537 = vunpack.c.h.b16 %v159
    %v538 = vunpack.c.l.b16 %v160
    %v539 = vunpack.c.h.b16 %v160
    %v540 = vunpack.c.l.b16 %v161
    %v541 = vunpack.c.h.b16 %v161
    %v542 = vunpack.c.l.b16 %v162
    %v543 = vunpack.c.h.b16 %v162
    %v544 = vunpack.c.l.b16 %v163
    %v545 = vunpack.c.h.b16 %v163
    %v546 = vunpack.c.l.b16 %v164
    %v547 = vunpack.c.h.b16 %v164
    %v548 = vunpack.c.l.b16 %v165
    %v549 = vunpack.c.h.b16 %v165
    %v550 = vunpack.c.l.b16 %v166
    %v551 = vunpack.c.h.b16 %v166
    %v552 = vunpack.c.l.b16 %v167
    %v553 = vunpack.c.h.b16 %v167
    %v554 = vunpack.c.l.b16 %v168
    %v555 = vunpack.c.h.b16 %v168
    %v556 = vunpack.c.l.b16 %v169
    %v557 = vunpack.c.h.b16 %v169
    %v558 = vunpack.c.l.b16 %v170
    %v559 = vunpack.c.h.b16 %v170
    %v560 = vunpack.c.l.b16 %v171
    %v561 = vunpack.c.h.b16 %v171
    %v562 = vunpack.c.l.b16 %v172
    %v563 = vunpack.c.h.b16 %v172
    %v564 = vunpack.c.l.b16 %v173
    %v565 = vunpack.c.h.b16 %v173
    %v566 = vunpack.c.l.b16 %v174
    %v567 = vunpack.c.h.b16 %v174
    %v568 = vunpack.c.l.b16 %v175
    %v569 = vunpack.c.h.b16 %v175
    %v570 = vunpack.c.l.b16 %v176
    %v571 = vunpack.c.h.b16 %v176
    %v572 = vunpack.c.l.b16 %v177
    %v573 = vunpack.c.h.b16 %v177
    %v574 = vunpack.c.l.b16 %v178
    %v575 = vunpack.c.h.b16 %v178
    %v576 = vunpack.c.l.b16 %v179
    %v577 = vunpack.c.h.b16 %v179
    %v578 = vunpack.c.l.b16 %v180
    %v579 = vunpack.c.h.b16 %v180
    %v580 = vunpack.c.l.b16 %v181
    %v581 = vunpack.c.h.b16 %v181
    %v582 = vunpack.c.l.b16 %v182
    %v583 = vunpack.c.h.b16 %v182
    %v584 = vunpack.c.l.b16 %v183
    %v585 = vunpack.c.h.b16 %v183
    %v586 = vunpack.c.l.b16 %v184
    %v587 = vunpack.c.h.b16 %v184
    %v588 = vunpack.c.l.b16 %v185
    %v589 = vunpack.c.h.b16 %v185
    %v590 = vpack.c.b16 %v342, %v334
    %v591 = vpack.c.b16 %v343, %v335
    %v592 = vpack.c.b16 %v344, %v336
    %v593 = vpack.c.b16 %v345, %v337
    %v594 = vpack.c.b16 %v346, %v338
    %v595 = vpack.c.b16 %v347, %v339
    %v596 = vpack.c.b16 %v348, %v340
    %v597 = vpack.c.b16 %v349, %v341
    %v598 = vpack.c.b16 %v358, %v350
    %v599 = vpack.c.b16 %v359, %v351
    %v600 = vpack.c.b16 %v360, %v352
    %v601 = vpack.c.b16 %v361, %v353
    %v602 = vpack.c.b16 %v362, %v354
    %v603 = vpack.c.b16 %v363, %v355
    %v604 = vpack.c.b16 %v364, %v356
    %v605 = vpack.c.b16 %v365, %v357
    %v606 = vpack.c.b16 %v374, %v366
    %v607 = vpack.c.b16 %v375, %v367
    %v608 = vpack.c.b16 %v376, %v368
    %v609 = vpack.c.b16 %v377, %v369
    %v610 = vpack.c.b16 %v378, %v370
    %v611 = vpack.c.b16 %v379, %v371
    %v612 = vpack.c.b16 %v380, %v372
    %v613 = vpack.c.b16 %v381, %v373
    %v614 = vpack.c.b16 %v390, %v382
    %v615 = vpack.c.b16 %v391, %v383
    %v616 = vpack.c.b16 %v392, %v384
    %v617 = vpack.c.b16 %v393, %v385
    %v618 = vpack.c.b16 %v394, %v386
    %v619 = vpack.c.b16 %v395, %v387
    %v620 = vpack.c.b16 %v396, %v388
    %v621 = vpack.c.b16 %v397, %v389
    %v622 = vpack.c.b16 %v406, %v398
    %v623 = vpack.c.b16 %v407, %v399
    %v624 = vpack.c.b16 %v408, %v400
    %v625 = vpack.c.b16 %v409, %v401
    %v626 = vpack.c.b16 %v410, %v402
    %v627 = vpack.c.b16 %v411, %v403
    %v628 = vpack.c.b16 %v412, %v404
    %v629 = vpack.c.b16 %v413, %v405
    %v630 = vpack.c.b16 %v422, %v414
    %v631 = vpack.c.b16 %v423, %v415
    %v632 = vpack.c.b16 %v424, %v416
    %v633 = vpack.c.b16 %v425, %v417
    %v634 = vpack.c.b16 %v426, %v418
    %v635 = vpack.c.b16 %v427, %v419
    %v636 = vpack.c.b16 %v428, %v420
    %v637 = vpack.c.b16 %v429, %v421
    %v638 = vpack.c.b16 %v438, %v430
    %v639 = vpack.c.b16 %v439, %v431
    %v640 = vpack.c.b16 %v440, %v432
    %v641 = vpack.c.b16 %v441, %v433
    %v642 = vpack.c.b16 %v442, %v434
    %v643 = vpack.c.b16 %v443, %v435
    %v644 = vpack.c.b16 %v444, %v436
    %v645 = vpack.c.b16 %v445, %v437
    %v646 = vpack.c.b16 %v454, %v446
    %v647 = vpack.c.b16 %v455, %v447
    %v648 = vpack.c.b16 %v456, %v448
    %v649 = vpack.c.b16 %v457, %v449
    %v650 = vpack.c.b16 %v458, %v450
    %v651 = vpack.c.b16 %v459, %v451
    %v652 = vpack.c.b16 %v460, %v452
    %v653 = vpack.c.b16 %v461, %v453
    %v654 = vpack.c.b16 %v470, %v462
    %v655 = vpack.c.b16 %v471, %v463
    %v656 = vpack.c.b16 %v472, %v464
    %v657 = vpack.c.b16 %v473, %v465
    %v658 = vpack.c.b16 %v474, %v466
    %v659 = vpack.c.b16 %v475, %v467
    %v660 = vpack.c.b16 %v476, %v468
    %v661 = vpack.c.b16 %v477, %v469
    %v662 = vpack.c.b16 %v486, %v478
    %v663 = vpack.c.b16 %v487, %v479
    %v664 = vpack.c.b16 %v488, %v480
    %v665 = vpack.c.b16 %v489, %v481
    %v666 = vpack.c.b16 %v490, %v482
    %v667 = vpack.c.b16 %v491, %v483
    %v668 = vpack.c.b16 %v492, %v484
    %v669 = vpack.c.b16 %v493, %v485
    %v670 = vpack.c.b16 %v502, %v494
    %v671 = vpack.c.b16 %v503, %v495
    %v672 = vpack.c.b16 %v504, %v496
    %v673 = vpack.c.b16 %v505, %v497
    %v674 = vpack.c.b16 %v506, %v498
    %v675 = vpack.c.b16 %v507, %v499
    %v676 = vpack.c.b16 %v508, %v500
    %v677 = vpack.c.b16 %v509, %v501
    %v678 = vpack.c.b16 %v518, %v510
    %v679 = vpack.c.b16 %v519, %v511
    %v680 = vpack.c.b16 %v520, %v512
    %v681 = vpack.c.b16 %v521, %v513
    %v682 = vpack.c.b16 %v522, %v514
    %v683 = vpack.c.b16 %v523, %v515
    %v684 = vpack.c.b16 %v524, %v516
    %v685 = vpack.c.b16 %v525, %v517
    %v686 = vpack.c.b16 %v534, %v526
    %v687 = vpack.c.b16 %v535, %v527
    %v688 = vpack.c.b16 %v536, %v528
    %v689 = vpack.c.b16 %v537, %v529
    %v690 = vpack.c.b16 %v538, %v530
    %v691 = vpack.c.b16 %v539, %v531
    %v692 = vpack.c.b16 %v540, %v532
    %v693 = vpack.c.b16 %v541, %v533
    %v694 = vpack.c.b16 %v550, %v542
    %v695 = vpack.c.b16 %v551, %v543
    %v696 = vpack.c.b16 %v552, %v544
    %v697 = vpack.c.b16 %v553, %v545
    %v698 = vpack.c.b16 %v554, %v546
    %v699 = vpack.c.b16 %v555, %v547
    %v700 = vpack.c.b16 %v556, %v548
    %v701 = vpack.c.b16 %v557, %v549
    %v702 = vpack.c.b16 %v566, %v558
    %v703 = vpack.c.b16 %v567, %v559
    %v704 = vpack.c.b16 %v568, %v560
    %v705 = vpack.c.b16 %v569, %v561
    %v706 = vpack.c.b16 %v570, %v562
    %v707 = vpack.c.b16 %v571, %v563
    %v708 = vpack.c.b16 %v572, %v564
    %v709 = vpack.c.b16 %v573, %v565
    %v710 = vpack.c.b16 %v582, %v574
    %v711 = vpack.c.b16 %v583, %v575
    %v712 = vpack.c.b16 %v584, %v576
    %v713 = vpack.c.b16 %v585, %v577
    %v714 = vpack.c.b16 %v586, %v578
    %v715 = vpack.c.b16 %v587, %v579
    %v716 = vpack.c.b16 %v588, %v580
    %v717 = vpack.c.b16 %v589, %v581
    %846 = vmatprep.subr.bf16.mxu0 %v647
    %847 = vmatpush1.bf16.msra.mxu0 %v646
    %848 = vmatprep.subr.bf16.mxu0 %v639
    %849 = vmatpush1.bf16.msra.mxu0 %v638
    %850 = vmatprep.subr.bf16.mxu0 %v631
    %851 = vmatpush1.bf16.msra.mxu0 %v630
    %852 = vmatprep.subr.bf16.mxu0 %v623
    %853 = vmatpush1.bf16.msra.mxu0 %v622
    %854 = vmatprep.subr.bf16.mxu0 %v615
    %855 = vmatpush1.bf16.msra.mxu0 %v614
    %856 = vmatprep.subr.bf16.mxu0 %v607
    %857 = vmatpush1.bf16.msra.mxu0 %v606
    %858 = vmatprep.subr.bf16.mxu0 %v599
    %859 = vmatpush1.bf16.msra.mxu0 %v598
    %860 = vmatprep.subr.bf16.mxu0 %v591
    %861 = vmatpush1.bf16.msra.mxu0 %v590
    %862 = vmatprep.subr.bf16.mxu0 %v711
    %863 = vmatpush2.bf16.msra.mxu0 %v710
    %864 = vmatprep.subr.bf16.mxu0 %v703
    %865 = vmatpush2.bf16.msra.mxu0 %v702
    %866 = vmatprep.subr.bf16.mxu0 %v695
    %867 = vmatpush2.bf16.msra.mxu0 %v694
    %868 = vmatprep.subr.bf16.mxu0 %v687
    %869 = vmatpush2.bf16.msra.mxu0 %v686
    %870 = vmatprep.subr.bf16.mxu0 %v679
    %871 = vmatpush2.bf16.msra.mxu0 %v678
    %872 = vmatprep.subr.bf16.mxu0 %v671
    %873 = vmatpush2.bf16.msra.mxu0 %v670
    %874 = vmatprep.subr.bf16.mxu0 %v663
    %875 = vmatpush2.bf16.msra.mxu0 %v662
    %876 = vmatprep.subr.bf16.mxu0 %v655
    %877 = vmatpush2.bf16.msra.mxu0 %v654
    %878 = vmatprep.mubr.bf16.mxu0 %v199
    %879 = vmatmul.mubr.bf16.gmra.mxu0 %v198
    %v880 = vpop.f32.mrf.mxu0
    %v881 = vadd.f32 0.0, %v880
    %v882 = vpop.f32.mrf.mxu0
    %v883 = vadd.f32 0.0, %v882
    %v884 = vpop.f32.mrf.mxu0
    %v885 = vadd.f32 0.0, %v884
    %v886 = vpop.f32.mrf.mxu0
    %v887 = vadd.f32 0.0, %v886
    %888 = vmatprep.mubr.bf16.mxu0 %v201
    %889 = vmatmul.mubr.bf16.gmra.mxu0 %v200
    %v890 = vpop.f32.mrf.mxu0
    %v891 = vadd.f32 0.0, %v890
    %v892 = vpop.f32.mrf.mxu0
    %v893 = vadd.f32 0.0, %v892
    %v894 = vpop.f32.mrf.mxu0
    %v895 = vadd.f32 0.0, %v894
    %v896 = vpop.f32.mrf.mxu0
    %v897 = vadd.f32 0.0, %v896
    %898 = vdwg.mxu0
    %899 = vmatprep.subr.bf16.mxu0 %v649
    %900 = vmatpush1.bf16.msra.mxu0 %v648
    %901 = vmatprep.subr.bf16.mxu0 %v641
    %902 = vmatpush1.bf16.msra.mxu0 %v640
    %903 = vmatprep.subr.bf16.mxu0 %v633
    %904 = vmatpush1.bf16.msra.mxu0 %v632
    %905 = vmatprep.subr.bf16.mxu0 %v625
    %906 = vmatpush1.bf16.msra.mxu0 %v624
    %907 = vmatprep.subr.bf16.mxu0 %v617
    %908 = vmatpush1.bf16.msra.mxu0 %v616
    %909 = vmatprep.subr.bf16.mxu0 %v609
    %910 = vmatpush1.bf16.msra.mxu0 %v608
    %911 = vmatprep.subr.bf16.mxu0 %v601
    %912 = vmatpush1.bf16.msra.mxu0 %v600
    %913 = vmatprep.subr.bf16.mxu0 %v593
    %914 = vmatpush1.bf16.msra.mxu0 %v592
    %915 = vmatprep.subr.bf16.mxu0 %v713
    %916 = vmatpush2.bf16.msra.mxu0 %v712
    %917 = vmatprep.subr.bf16.mxu0 %v705
    %918 = vmatpush2.bf16.msra.mxu0 %v704
    %919 = vmatprep.subr.bf16.mxu0 %v697
    %920 = vmatpush2.bf16.msra.mxu0 %v696
    %921 = vmatprep.subr.bf16.mxu0 %v689
    %922 = vmatpush2.bf16.msra.mxu0 %v688
    %923 = vmatprep.subr.bf16.mxu0 %v681
    %924 = vmatpush2.bf16.msra.mxu0 %v680
    %925 = vmatprep.subr.bf16.mxu0 %v673
    %926 = vmatpush2.bf16.msra.mxu0 %v672
    %927 = vmatprep.subr.bf16.mxu0 %v665
    %928 = vmatpush2.bf16.msra.mxu0 %v664
    %929 = vmatprep.subr.bf16.mxu0 %v657
    %930 = vmatpush2.bf16.msra.mxu0 %v656
    %931 = vmatprep.mubr.bf16.mxu0 %v199
    %932 = vmatmul.mubr.bf16.gmra.mxu0 %v198
    %v933 = vpop.f32.mrf.mxu0
    %v934 = vadd.f32 0.0, %v933
    %v935 = vpop.f32.mrf.mxu0
    %v936 = vadd.f32 0.0, %v935
    %v937 = vpop.f32.mrf.mxu0
    %v938 = vadd.f32 0.0, %v937
    %v939 = vpop.f32.mrf.mxu0
    %v940 = vadd.f32 0.0, %v939
    %941 = vmatprep.mubr.bf16.mxu0 %v201
    %942 = vmatmul.mubr.bf16.gmra.mxu0 %v200
    %v943 = vpop.f32.mrf.mxu0
    %v944 = vadd.f32 0.0, %v943
    %v945 = vpop.f32.mrf.mxu0
    %v946 = vadd.f32 0.0, %v945
    %v947 = vpop.f32.mrf.mxu0
    %v948 = vadd.f32 0.0, %v947
    %v949 = vpop.f32.mrf.mxu0
    %v950 = vadd.f32 0.0, %v949
    %951 = vdwg.mxu0
    %952 = vmatprep.subr.bf16.mxu0 %v651
    %953 = vmatpush1.bf16.msra.mxu0 %v650
    %954 = vmatprep.subr.bf16.mxu0 %v643
    %955 = vmatpush1.bf16.msra.mxu0 %v642
    %956 = vmatprep.subr.bf16.mxu0 %v635
    %957 = vmatpush1.bf16.msra.mxu0 %v634
    %958 = vmatprep.subr.bf16.mxu0 %v627
    %959 = vmatpush1.bf16.msra.mxu0 %v626
    %960 = vmatprep.subr.bf16.mxu0 %v619
    %961 = vmatpush1.bf16.msra.mxu0 %v618
    %962 = vmatprep.subr.bf16.mxu0 %v611
    %963 = vmatpush1.bf16.msra.mxu0 %v610
    %964 = vmatprep.subr.bf16.mxu0 %v603
    %965 = vmatpush1.bf16.msra.mxu0 %v602
    %966 = vmatprep.subr.bf16.mxu0 %v595
    %967 = vmatpush1.bf16.msra.mxu0 %v594
    %968 = vmatprep.subr.bf16.mxu0 %v715
    %969 = vmatpush2.bf16.msra.mxu0 %v714
    %970 = vmatprep.subr.bf16.mxu0 %v707
    %971 = vmatpush2.bf16.msra.mxu0 %v706
    %972 = vmatprep.subr.bf16.mxu0 %v699
    %973 = vmatpush2.bf16.msra.mxu0 %v698
    %974 = vmatprep.subr.bf16.mxu0 %v691
    %975 = vmatpush2.bf16.msra.mxu0 %v690
    %976 = vmatprep.subr.bf16.mxu0 %v683
    %977 = vmatpush2.bf16.msra.mxu0 %v682
    %978 = vmatprep.subr.bf16.mxu0 %v675
    %979 = vmatpush2.bf16.msra.mxu0 %v674
    %980 = vmatprep.subr.bf16.mxu0 %v667
    %981 = vmatpush2.bf16.msra.mxu0 %v666
    %982 = vmatprep.subr.bf16.mxu0 %v659
    %983 = vmatpush2.bf16.msra.mxu0 %v658
    %984 = vmatprep.mubr.bf16.mxu0 %v199
    %985 = vmatmul.mubr.bf16.gmra.mxu0 %v198
    %v986 = vpop.f32.mrf.mxu0
    %v987 = vadd.f32 0.0, %v986
    %v988 = vpop.f32.mrf.mxu0
    %v989 = vadd.f32 0.0, %v988
    %v990 = vpop.f32.mrf.mxu0
    %v991 = vadd.f32 0.0, %v990
    %v992 = vpop.f32.mrf.mxu0
    %v993 = vadd.f32 0.0, %v992
    %994 = vmatprep.mubr.bf16.mxu0 %v201
    %995 = vmatmul.mubr.bf16.gmra.mxu0 %v200
    %v996 = vpop.f32.mrf.mxu0
    %v997 = vadd.f32 0.0, %v996
    %v998 = vpop.f32.mrf.mxu0
    %v999 = vadd.f32 0.0, %v998
    %v1000 = vpop.f32.mrf.mxu0
    %v1001 = vadd.f32 0.0, %v1000
    %v1002 = vpop.f32.mrf.mxu0
    %v1003 = vadd.f32 0.0, %v1002
    %1004 = vdwg.mxu0
    %1005 = vmatprep.subr.bf16.mxu0 %v653
    %1006 = vmatpush1.bf16.msra.mxu0 %v652
    %1007 = vmatprep.subr.bf16.mxu0 %v645
    %1008 = vmatpush1.bf16.msra.mxu0 %v644
    %1009 = vmatprep.subr.bf16.mxu0 %v637
    %1010 = vmatpush1.bf16.msra.mxu0 %v636
    %1011 = vmatprep.subr.bf16.mxu0 %v629
    %1012 = vmatpush1.bf16.msra.mxu0 %v628
    %1013 = vmatprep.subr.bf16.mxu0 %v621
    %1014 = vmatpush1.bf16.msra.mxu0 %v620
    %1015 = vmatprep.subr.bf16.mxu0 %v613
    %1016 = vmatpush1.bf16.msra.mxu0 %v612
    %1017 = vmatprep.subr.bf16.mxu0 %v605
    %1018 = vmatpush1.bf16.msra.mxu0 %v604
    %1019 = vmatprep.subr.bf16.mxu0 %v597
    %1020 = vmatpush1.bf16.msra.mxu0 %v596
    %1021 = vmatprep.subr.bf16.mxu0 %v717
    %1022 = vmatpush2.bf16.msra.mxu0 %v716
    %1023 = vmatprep.subr.bf16.mxu0 %v709
    %1024 = vmatpush2.bf16.msra.mxu0 %v708
    %1025 = vmatprep.subr.bf16.mxu0 %v701
    %1026 = vmatpush2.bf16.msra.mxu0 %v700
    %1027 = vmatprep.subr.bf16.mxu0 %v693
    %1028 = vmatpush2.bf16.msra.mxu0 %v692
    %1029 = vmatprep.subr.bf16.mxu0 %v685
    %1030 = vmatpush2.bf16.msra.mxu0 %v684
    %1031 = vmatprep.subr.bf16.mxu0 %v677
    %1032 = vmatpush2.bf16.msra.mxu0 %v676
    %1033 = vmatprep.subr.bf16.mxu0 %v669
    %1034 = vmatpush2.bf16.msra.mxu0 %v668
    %1035 = vmatprep.subr.bf16.mxu0 %v661
    %1036 = vmatpush2.bf16.msra.mxu0 %v660
    %1037 = vmatprep.mubr.bf16.mxu0 %v199
    %1038 = vmatmul.mubr.bf16.gmra.mxu0 %v198
    %v1039 = vpop.f32.mrf.mxu0
    %v1040 = vadd.f32 0.0, %v1039
    %v1041 = vpop.f32.mrf.mxu0
    %v1042 = vadd.f32 0.0, %v1041
    %v1043 = vpop.f32.mrf.mxu0
    %v1044 = vadd.f32 0.0, %v1043
    %v1045 = vpop.f32.mrf.mxu0
    %v1046 = vadd.f32 0.0, %v1045
    %1047 = vmatprep.mubr.bf16.mxu0 %v201
    %1048 = vmatmul.mubr.bf16.gmra.mxu0 %v200
    %v1049 = vpop.f32.mrf.mxu0
    %v1050 = vadd.f32 0.0, %v1049
    %v1051 = vpop.f32.mrf.mxu0
    %v1052 = vadd.f32 0.0, %v1051
    %v1053 = vpop.f32.mrf.mxu0
    %v1054 = vadd.f32 0.0, %v1053
    %v1055 = vpop.f32.mrf.mxu0
    %v1056 = vadd.f32 0.0, %v1055
    %1057 = vdwg.mxu0
    %v1058 = vlaneseq
    %v1059 = vshrl.u32 %v1058, 7
    %v1060 = vadd.s32 %v1059, 8
    %v1061 = vadd.s32 %v1059, 16
    %v1062 = vadd.s32 %v1059, 24
    %vm1063 = vcmp.lt.s32.totalorder %v1059, 0
    %v1064 = vsub.s32 0, %v1059
    %v1065 = vsel %vm1063, %v1064, %v1059
    %v1066 = vshrl.u32 %v1065, 4
    %v1067 = vand.u32 %v1065, 15
    %v1068 = vsub.s32 0, %v1067
    %v1069 = vsel %vm1063, %v1068, %v1067
    %vm1070 = vcmp.lt.s32.totalorder %v1060, 0
    %v1071 = vsub.s32 0, %v1060
    %v1072 = vsel %vm1070, %v1071, %v1060
    %v1073 = vshrl.u32 %v1072, 4
    %v1074 = vand.u32 %v1072, 15
    %v1075 = vsub.s32 0, %v1074
    %v1076 = vsel %vm1070, %v1075, %v1074
    %vm1077 = vcmp.lt.s32.totalorder %v1061, 0
    %v1078 = vsub.s32 0, %v1061
    %v1079 = vsel %vm1077, %v1078, %v1061
    %v1080 = vshrl.u32 %v1079, 4
    %v1081 = vand.u32 %v1079, 15
    %v1082 = vsub.s32 0, %v1081
    %v1083 = vsel %vm1077, %v1082, %v1081
    %vm1084 = vcmp.lt.s32.totalorder %v1062, 0
    %v1085 = vsub.s32 0, %v1062
    %v1086 = vsel %vm1084, %v1085, %v1062
    %v1087 = vshrl.u32 %v1086, 4
    %v1088 = vand.u32 %v1086, 15
    %v1089 = vsub.s32 0, %v1088
    %v1090 = vsel %vm1084, %v1089, %v1088
    %vm1091 = vcmp.ne.s32.totalorder %v1069, 0
    %vm1092 = vcmp.ne.s32.totalorder %v1076, 0
    %vm1093 = vcmp.ne.s32.totalorder %v1083, 0
    %vm1094 = vcmp.ne.s32.totalorder %v1090, 0
    %vm1095 = vcmp.lt.s32.totalorder %v1069, 0
    %vm1096 = vcmp.lt.s32.totalorder %v1076, 0
    %vm1097 = vcmp.lt.s32.totalorder %v1083, 0
    %vm1098 = vcmp.lt.s32.totalorder %v1090, 0
    %vm1099 = vmand %vm1095, %vm1091
    %vm1100 = vmand %vm1096, %vm1092
    %vm1101 = vmand %vm1097, %vm1093
    %vm1102 = vmand %vm1098, %vm1094
    %v1103 = vadd.s32 %v1069, 16
    %v1104 = vadd.s32 %v1076, 16
    %v1105 = vadd.s32 %v1083, 16
    %v1106 = vadd.s32 %v1090, 16
    %v1107 = vsel %vm1099, %v1103, %v1069
    %v1108 = vsel %vm1100, %v1104, %v1076
    %v1109 = vsel %vm1101, %v1105, %v1083
    %v1110 = vsel %vm1102, %v1106, %v1090
    %vm1111 = vcmp.ne.s32.totalorder %v1107, 0
    %vm1112 = vcmp.ne.s32.totalorder %v1108, 0
    %vm1113 = vcmp.ne.s32.totalorder %v1109, 0
    %vm1114 = vcmp.ne.s32.totalorder %v1110, 0
    %v1117 = vrot.slane %v1001, 7
    %v1118 = vrot.slane %v1003, 7
    %vm1127 = vcmask 1040384
    %v1128 = vrot.slane %v987, 7
    %v1129 = vrot.slane %v989, 7
    %v1130 = vrot.slane %v991, 7
    %v1131 = vsel %vm1127, %v1128, %v1130
    %v1132 = vrot.slane %v993, 7
    %v1133 = vsel %vm1127, %v1129, %v1132
    %v1134 = vrot.slane %v997, 7
    %v1135 = vsel %vm1127, %v1130, %v1134
    %v1136 = vrot.slane %v999, 7
    %v1137 = vsel %vm1127, %v1132, %v1136
    %v1138 = vsel %vm1127, %v1134, %v1117
    %v1139 = vsel %vm1127, %v1136, %v1118
    %v1148 = vsel %vm1127, %v1117, %v1128
    %v1149 = vsel %vm1127, %v1118, %v1129
    %v1150 = vsel %vm1111, %v1148, 0.0
    %v1151 = vsel %vm1111, %v1149, 0.0
    %v1152 = vsel %vm1112, %v1131, 0.0
    %v1153 = vsel %vm1112, %v1133, 0.0
    %v1154 = vsel %vm1113, %v1135, 0.0
    %v1155 = vsel %vm1113, %v1137, 0.0
    %v1156 = vsel %vm1114, %v1138, 0.0
    %v1157 = vsel %vm1114, %v1139, 0.0
    %vm1158 = vcmp.ne.s32.totalorder %v1107, 15
    %vm1159 = vcmp.ne.s32.totalorder %v1108, 15
    %vm1160 = vcmp.ne.s32.totalorder %v1109, 15
    %vm1161 = vcmp.ne.s32.totalorder %v1110, 15
    %vm1170 = vcmask 1046528
    %v1171 = vrot.slane %v1040, 1
    %v1172 = vrot.slane %v1044, 1
    %v1173 = vsel %vm1170, %v1171, %v1172
    %v1174 = vrot.slane %v1042, 1
    %v1175 = vrot.slane %v1046, 1
    %v1176 = vsel %vm1170, %v1174, %v1175
    %v1177 = vrot.slane %v1050, 1
    %v1178 = vsel %vm1170, %v1172, %v1177
    %v1179 = vrot.slane %v1052, 1
    %v1180 = vsel %vm1170, %v1175, %v1179
    %v1181 = vrot.slane %v1054, 1
    %v1182 = vsel %vm1170, %v1177, %v1181
    %v1183 = vrot.slane %v1056, 1
    %v1184 = vsel %vm1170, %v1179, %v1183
    %v1195 = vsel %vm1170, %v1181, %v1171
    %v1196 = vsel %vm1170, %v1183, %v1174
    %v1197 = vsel %vm1158, %v1173, 0.0
    %v1198 = vsel %vm1158, %v1176, 0.0
    %v1199 = vsel %vm1159, %v1178, 0.0
    %v1200 = vsel %vm1159, %v1180, 0.0
    %v1201 = vsel %vm1160, %v1182, 0.0
    %v1202 = vsel %vm1160, %v1184, 0.0
    %v1203 = vsel %vm1161, %v1195, 0.0
    %v1204 = vsel %vm1161, %v1196, 0.0
    %v1205 = vadd.f32 %v881, %v1150
    %v1206 = vadd.f32 %v883, %v1151
    %v1207 = vadd.f32 %v934, %v1197
    %v1208 = vadd.f32 %v936, %v1198
    %v1209 = vadd.f32 %v885, %v1152
    %v1210 = vadd.f32 %v887, %v1153
    %v1211 = vadd.f32 %v938, %v1199
    %v1212 = vadd.f32 %v940, %v1200
    %v1213 = vadd.f32 %v891, %v1154
    %v1214 = vadd.f32 %v893, %v1155
    %v1215 = vadd.f32 %v944, %v1201
    %v1216 = vadd.f32 %v946, %v1202
    %v1217 = vadd.f32 %v895, %v1156
    %v1218 = vadd.f32 %v897, %v1157
    %v1219 = vadd.f32 %v948, %v1203
    %v1220 = vadd.f32 %v950, %v1204
    %v1221 = vld [vmem:[#allocation4] sm:$0xf]
    %v1222 = vld [vmem:[#allocation6] sm:$0xf]
    %v1223 = vadd.f32 %v1205, %v1209
    %v1224 = vadd.f32 %v1223, %v1213
    %v1225 = vadd.f32 %v1224, %v1217
    %v1226 = vrot.slane %v1225, 4
    %v1227 = vadd.f32 %v1225, %v1226
    %v1228 = vrot.slane %v1227, 2
    %v1229 = vadd.f32 %v1227, %v1228
    %v1230 = vrot.slane %v1229, 1
    %v1231 = vadd.f32 %v1229, %v1230
    %v1232 = vadd.f32 %v1206, %v1210
    %v1233 = vadd.f32 %v1232, %v1214
    %v1234 = vadd.f32 %v1233, %v1218
    %v1235 = vrot.slane %v1234, 4
    %v1236 = vadd.f32 %v1234, %v1235
    %v1237 = vrot.slane %v1236, 2
    %v1238 = vadd.f32 %v1236, %v1237
    %v1239 = vrot.slane %v1238, 1
    %v1240 = vadd.f32 %v1238, %v1239
    %v1241 = vadd.f32 %v1207, %v1211
    %v1242 = vadd.f32 %v1241, %v1215
    %v1243 = vadd.f32 %v1242, %v1219
    %v1244 = vrot.slane %v1243, 4
    %v1245 = vadd.f32 %v1243, %v1244
    %v1246 = vrot.slane %v1245, 2
    %v1247 = vadd.f32 %v1245, %v1246
    %v1248 = vrot.slane %v1247, 1
    %v1249 = vadd.f32 %v1247, %v1248
    %v1250 = vadd.f32 %v1208, %v1212
    %v1251 = vadd.f32 %v1250, %v1216
    %v1252 = vadd.f32 %v1251, %v1220
    %v1253 = vrot.slane %v1252, 4
    %v1254 = vadd.f32 %v1252, %v1253
    %v1255 = vrot.slane %v1254, 2
    %v1256 = vadd.f32 %v1254, %v1255
    %v1257 = vrot.slane %v1256, 1
    %v1258 = vadd.f32 %v1256, %v1257
    %v1259 = vmul.f32 %v1205, %v1205
    %v1260 = vmul.f32 %v1206, %v1206
    %v1261 = vmul.f32 %v1207, %v1207
    %v1262 = vmul.f32 %v1208, %v1208
    %v1263 = vmul.f32 %v1209, %v1209
    %v1264 = vmul.f32 %v1210, %v1210
    %v1265 = vmul.f32 %v1211, %v1211
    %v1266 = vmul.f32 %v1212, %v1212
    %v1267 = vmul.f32 %v1213, %v1213
    %v1268 = vmul.f32 %v1214, %v1214
    %v1269 = vmul.f32 %v1215, %v1215
    %v1270 = vmul.f32 %v1216, %v1216
    %v1271 = vmul.f32 %v1217, %v1217
    %v1272 = vmul.f32 %v1218, %v1218
    %v1273 = vmul.f32 %v1219, %v1219
    %v1274 = vmul.f32 %v1220, %v1220
    %v1275 = vadd.f32 %v1259, %v1263
    %v1276 = vadd.f32 %v1275, %v1267
    %v1277 = vadd.f32 %v1276, %v1271
    %v1278 = vrot.slane %v1277, 4
    %v1279 = vadd.f32 %v1277, %v1278
    %v1280 = vrot.slane %v1279, 2
    %v1281 = vadd.f32 %v1279, %v1280
    %v1282 = vrot.slane %v1281, 1
    %v1283 = vadd.f32 %v1281, %v1282
    %v1284 = vadd.f32 %v1260, %v1264
    %v1285 = vadd.f32 %v1284, %v1268
    %v1286 = vadd.f32 %v1285, %v1272
    %v1287 = vrot.slane %v1286, 4
    %v1288 = vadd.f32 %v1286, %v1287
    %v1289 = vrot.slane %v1288, 2
    %v1290 = vadd.f32 %v1288, %v1289
    %v1291 = vrot.slane %v1290, 1
    %v1292 = vadd.f32 %v1290, %v1291
    %v1293 = vadd.f32 %v1261, %v1265
    %v1294 = vadd.f32 %v1293, %v1269
    %v1295 = vadd.f32 %v1294, %v1273
    %v1296 = vrot.slane %v1295, 4
    %v1297 = vadd.f32 %v1295, %v1296
    %v1298 = vrot.slane %v1297, 2
    %v1299 = vadd.f32 %v1297, %v1298
    %v1300 = vrot.slane %v1299, 1
    %v1301 = vadd.f32 %v1299, %v1300
    %v1302 = vadd.f32 %v1262, %v1266
    %v1303 = vadd.f32 %v1302, %v1270
    %v1304 = vadd.f32 %v1303, %v1274
    %v1305 = vrot.slane %v1304, 4
    %v1306 = vadd.f32 %v1304, %v1305
    %v1307 = vrot.slane %v1306, 2
    %v1308 = vadd.f32 %v1306, %v1307
    %v1309 = vrot.slane %v1308, 1
    %v1310 = vadd.f32 %v1308, %v1309
    %v1311 = vsel %vm1127, %v1231, %v1283
    %v1312 = vsel %vm1127, %v1240, %v1292
    %v1313 = vsel %vm1127, %v1249, %v1301
    %v1314 = vsel %vm1127, %v1258, %v1310
    %v1315 = vadd.f32 %v1311, %v1313
    %v1316 = vadd.f32 %v1312, %v1314
    %v1317 = vadd.f32 %v1315, %v1316
    %1318 = vrot.lane.b32.xlu0 %v1317, 64
    %v1319 = vpop.permute.xlu0 %1318
    %v1320 = vlaneseq
    %v1321 = vand.u32 %v1320, 127
    %v1322 = vadd.f32 %v1317, %v1319
    %1323 = vrot.lane.b32.xlu0 %v1322, 32
    %v1324 = vpop.permute.xlu0 %1323
    %v1325 = vadd.f32 %v1322, %v1324
    %1326 = vrot.lane.b32.xlu0 %v1325, 16
    %v1327 = vpop.permute.xlu0 %1326
    %v1328 = vadd.f32 %v1325, %v1327
    %1329 = vrot.lane.b32.xlu0 %v1328, 8
    %v1330 = vpop.permute.xlu0 %1329
    %v1331 = vadd.f32 %v1328, %v1330
    %v1332 = vmul.f32 %v1331, 0.00048828125
    %v1333 = vmul.f32 %v1332, %v1332
    %v1335 = vrot.slane %v1333, 7
    %v1337 = vsub.f32 %v1332, %v1335
    %v1338 = vadd.f32 %v1337, 1e-05
    %v1339 = vrsqrt.pop %v1338
    %v1341 = vcombine.low %v1339, %v1339
    %v1343 = vunpack.c.l.s4 1966171168
    %v1344 = vunpack.c.0.s8 %v1343
    %v1345 = vlaneseq
    %v1346 = vshrl.u32 %v1345, 7
    %v1347 = vsub.s32 %v1344, %v1346
    %v1348 = vrot.slane %v1341, %v1347
    %v1349 = vcombine.high %v1348, %v1348
    %v1351 = vunpack.c.l.s4 1966171168
    %v1352 = vunpack.c.0.s8 %v1351
    %v1353 = vlaneseq
    %v1354 = vshrl.u32 %v1353, 7
    %v1355 = vsub.s32 %v1352, %v1354
    %v1356 = vrot.slane %v1349, %v1355
    %v1358 = vmul.f32 %v1221, %v1356
    %v1360 = vlaneseq
    %v1361 = vshrl.u32 %v1360, 7
    %v1362 = vsub.s32 0, %v1361
    %v1363 = vrot.slane %v1358, %v1362
    %v1364 = vlaneseq
    %v1365 = vshrl.u32 %v1364, 7
    %v1366 = vsub.s32 1, %v1365
    %v1367 = vrot.slane %v1358, %v1366
    %v1368 = vlaneseq
    %v1369 = vshrl.u32 %v1368, 7
    %v1370 = vsub.s32 2, %v1369
    %v1371 = vrot.slane %v1358, %v1370
    %v1372 = vlaneseq
    %v1373 = vshrl.u32 %v1372, 7
    %v1374 = vsub.s32 3, %v1373
    %v1375 = vrot.slane %v1358, %v1374
    %v1380 = vmul.f32 %v1332, %v1363
    %v1381 = vmul.f32 %v1332, %v1367
    %v1382 = vmul.f32 %v1332, %v1371
    %v1383 = vmul.f32 %v1332, %v1375
    %v1388 = vcombine.low %v1380, %v1381
    %v1389 = vcombine.low %v1382, %v1383
    %v1391 = vunpack.c.l.s4 1966171168
    %v1392 = vunpack.c.0.s8 %v1391
    %v1393 = vlaneseq
    %v1394 = vshrl.u32 %v1393, 7
    %v1395 = vsub.s32 %v1392, %v1394
    %v1396 = vrot.slane %v1388, %v1395
    %v1398 = vunpack.c.l.s4 1966171168
    %v1399 = vunpack.c.0.s8 %v1398
    %v1400 = vlaneseq
    %v1401 = vshrl.u32 %v1400, 7
    %v1402 = vsub.s32 %v1399, %v1401
    %v1403 = vrot.slane %v1389, %v1402
    %v1404 = vcombine.low %v1396, %v1403
    %v1406 = vunpack.c.l.s4 1966171168
    %v1407 = vunpack.c.0.s8 %v1406
    %v1408 = vlaneseq
    %v1409 = vshrl.u32 %v1408, 7
    %v1410 = vsub.s32 %v1407, %v1409
    %v1411 = vrot.slane %v1404, %v1410
    %v1413 = vsub.f32 %v1222, %v1411
    %v1414 = vmul.f32 %v1205, %v1363
    %v1415 = vmul.f32 %v1206, %v1367
    %v1416 = vmul.f32 %v1207, %v1371
    %v1417 = vmul.f32 %v1208, %v1375
    %v1418 = vmul.f32 %v1209, %v1363
    %v1419 = vmul.f32 %v1210, %v1367
    %v1420 = vmul.f32 %v1211, %v1371
    %v1421 = vmul.f32 %v1212, %v1375
    %v1422 = vmul.f32 %v1213, %v1363
    %v1423 = vmul.f32 %v1214, %v1367
    %v1424 = vmul.f32 %v1215, %v1371
    %v1425 = vmul.f32 %v1216, %v1375
    %v1426 = vmul.f32 %v1217, %v1363
    %v1427 = vmul.f32 %v1218, %v1367
    %v1428 = vmul.f32 %v1219, %v1371
    %v1429 = vmul.f32 %v1220, %v1375
    %v1431 = vlaneseq
    %v1432 = vshrl.u32 %v1431, 7
    %v1433 = vsub.s32 0, %v1432
    %v1434 = vrot.slane %v1413, %v1433
    %v1435 = vlaneseq
    %v1436 = vshrl.u32 %v1435, 7
    %v1437 = vsub.s32 1, %v1436
    %v1438 = vrot.slane %v1413, %v1437
    %v1439 = vlaneseq
    %v1440 = vshrl.u32 %v1439, 7
    %v1441 = vsub.s32 2, %v1440
    %v1442 = vrot.slane %v1413, %v1441
    %v1443 = vlaneseq
    %v1444 = vshrl.u32 %v1443, 7
    %v1445 = vsub.s32 3, %v1444
    %v1446 = vrot.slane %v1413, %v1445
    %v1451 = vadd.f32 %v1414, %v1434
    %v1452 = vadd.f32 %v1415, %v1438
    %v1453 = vadd.f32 %v1416, %v1442
    %v1454 = vadd.f32 %v1417, %v1446
    %v1455 = vadd.f32 %v1418, %v1434
    %v1456 = vadd.f32 %v1419, %v1438
    %v1457 = vadd.f32 %v1420, %v1442
    %v1458 = vadd.f32 %v1421, %v1446
    %v1459 = vadd.f32 %v1422, %v1434
    %v1460 = vadd.f32 %v1423, %v1438
    %v1461 = vadd.f32 %v1424, %v1442
    %v1462 = vadd.f32 %v1425, %v1446
    %v1463 = vadd.f32 %v1426, %v1434
    %v1464 = vadd.f32 %v1427, %v1438
    %v1465 = vadd.f32 %v1428, %v1442
    %v1466 = vadd.f32 %v1429, %v1446
    %v1467 = vmax.f32 %v1451, 0.0
    %v1468 = vmax.f32 %v1452, 0.0
    %v1469 = vmax.f32 %v1453, 0.0
    %v1470 = vmax.f32 %v1454, 0.0
    %v1471 = vmax.f32 %v1455, 0.0
    %v1472 = vmax.f32 %v1456, 0.0
    %v1473 = vmax.f32 %v1457, 0.0
    %v1474 = vmax.f32 %v1458, 0.0
    %v1475 = vmax.f32 %v1459, 0.0
    %v1476 = vmax.f32 %v1460, 0.0
    %v1477 = vmax.f32 %v1461, 0.0
    %v1478 = vmax.f32 %v1462, 0.0
    %v1479 = vmax.f32 %v1463, 0.0
    %v1480 = vmax.f32 %v1464, 0.0
    %v1481 = vmax.f32 %v1465, 0.0
    %v1482 = vmax.f32 %v1466, 0.0
    %v1483 = vpack.c.bf16 %v1471, %v1467
    %v1484 = vpack.c.bf16 %v1472, %v1468
    %v1485 = vpack.c.bf16 %v1473, %v1469
    %v1486 = vpack.c.bf16 %v1474, %v1470
    %v1487 = vpack.c.bf16 %v1479, %v1475
    %v1488 = vpack.c.bf16 %v1480, %v1476
    %v1489 = vpack.c.bf16 %v1481, %v1477
    %v1490 = vpack.c.bf16 %v1482, %v1478
    %v1499 = vunpack.c.l.b16 %v1483
    %v1500 = vunpack.c.l.b16 %v1484
    %v1501 = vunpack.c.l.b16 %v1485
    %v1502 = vunpack.c.l.b16 %v1486
    %v1503 = vunpack.c.h.b16 %v1483
    %v1504 = vunpack.c.h.b16 %v1484
    %v1505 = vunpack.c.h.b16 %v1485
    %v1506 = vunpack.c.h.b16 %v1486
    %v1507 = vunpack.c.l.b16 %v1487
    %v1508 = vunpack.c.l.b16 %v1488
    %v1509 = vunpack.c.l.b16 %v1489
    %v1510 = vunpack.c.l.b16 %v1490
    %v1511 = vunpack.c.h.b16 %v1487
    %v1512 = vunpack.c.h.b16 %v1488
    %v1513 = vunpack.c.h.b16 %v1489
    %v1514 = vunpack.c.h.b16 %v1490
    %v1515 = vpack.c.b16 %v1500, %v1499
    %v1516 = vpack.c.b16 %v1502, %v1501
    %v1517 = vpack.c.b16 %v1504, %v1503
    %v1518 = vpack.c.b16 %v1506, %v1505
    %v1519 = vpack.c.b16 %v1508, %v1507
    %v1520 = vpack.c.b16 %v1510, %v1509
    %v1521 = vpack.c.b16 %v1512, %v1511
    %v1522 = vpack.c.b16 %v1514, %v1513
    %1531 = vst [vmem:[%s4] sm:$0xff] %v1515
    %1532 = vst [vmem:[%s4 + $0x8] sm:$0xff] %v1516
    %1533 = vst [vmem:[%s4 + $0x10] sm:$0xff] %v1517
    %1534 = vst [vmem:[%s4 + $0x18] sm:$0xff] %v1518
    %1535 = vst [vmem:[%s4 + $0x20] sm:$0xff] %v1519
    %1536 = vst [vmem:[%s4 + $0x28] sm:$0xff] %v1520
    %1537 = vst [vmem:[%s4 + $0x30] sm:$0xff] %v1521
    %1538 = vst [vmem:[%s4 + $0x38] sm:$0xff] %v1522
    // Predicated region
    $region30: #{_lambda_.8} parent=1 // pred_check
      _
    $region31: #{_lambda_.8} parent=1 // pred_check_branch
      %1540 = sbr.rel (0) target = $region33
    $region32: #{_lambda_.8} parent=1 // pred_region
      _
    $region33: #{_lambda_.8} parent=1 // pred_fallthru
      _
    // Predicated region
    $region34: #{_lambda_.8} parent=1 // pred_check
      _
    $region35: #{_lambda_.8} parent=1 // pred_check_branch
      %1542 = sbr.rel (0) target = $region37
    $region36: #{_lambda_.8} parent=1 // pred_region
      _
    $region37: #{_lambda_.8} parent=1 // pred_fallthru
      _
    %1543 = vsyncpa [#allocation3], 1
    %1544 = vsyncpa [#allocation5], 1

// kernel: _lambda_.6
$region0: #{_lambda_.6}
  #allocation0 [shape = 'u32[]', space=smem, size = 0x4, offset = 0x4, fixed_abs, tag = 'smem constant byte address 0x4 - core index']
  #allocation1 [shape = 'u32[144,128]{1,0:T(1,128)}', space=vmem, size = 0x12000, scoped, tag = 'internal scratch']
  %s0 = inlined_call_operand.vmem [shape: bf16[8,256], index: 0, kind: input, shape index: {}]
  %s1 = inlined_call_operand.hbm [shape: bf16[256,1024], index: 1, kind: input, shape index: {}]
  %s2 = inlined_call_operand.hbm [shape: f32[1,512], index: 2, kind: input, shape index: {}]
  %s3 = inlined_call_operand.hbm [shape: f32[1,512], index: 3, kind: input, shape index: {}]
  %s4 = inlined_call_operand.vmem [shape: bf16[8,512], index: 4, kind: output, shape index: {}]
  %s5 = sld [smem:[#allocation0]]
  $region38: #{_lambda_.6} parent=0
    _
  %s7 = ssub.s32 1, %s5
  %s8 = scalar_select 0, %s7, %s5
  $region1: #{_lambda_.6} parent=0
    #allocation2 [shape = 'u8[524288]{0}', space=vmem, size = 0x80000, scoped, tag = 'input window, operand 1, single buffered']
    #allocation3 [shape = 's32[1]{0}', space=sflag, size = 0x4, scoped, tag = 'scoped memory for _lambda_.6']
    #allocation4 [shape = 'u8[2048]{0}', space=vmem, size = 0x800, scoped, tag = 'input window, operand 2, single buffered']
    #allocation5 [shape = 's32[1]{0}', space=sflag, size = 0x4, scoped, tag = 'scoped memory for _lambda_.6']
    #allocation6 [shape = 'u8[2048]{0}', space=vmem, size = 0x800, scoped, tag = 'input window, operand 3, single buffered']
    %9 = vsyncpa [#allocation3], 0
    %10 = vsyncpa [#allocation5], 0
    // Predicated region
    $region2: #{_lambda_.6} parent=1 // pred_check
      _
    $region3: #{_lambda_.6} parent=1 // pred_check_branch
      %12 = sbr.rel (0) target = $region5
    $region4: #{_lambda_.6} parent=1 // pred_region
      _
    $region5: #{_lambda_.6} parent=1 // pred_fallthru
      _
    // Predicated region
    $region6: #{_lambda_.6} parent=1 // pred_check
      _
    $region7: #{_lambda_.6} parent=1 // pred_check_branch
      %14 = sbr.rel (0) target = $region9
    $region8: #{_lambda_.6} parent=1 // pred_region
      %s16 = ssub.s32 16384, 16384
      %17 = vsyncadd [#allocation3], %s16
      %s18 = sshll.u32 [#allocation2], 4
      %s19 = int_to_ptr.vmem [resolvable:$true] %s18
      %24 = dma.hbm_to_vmem [thread:$0]  %s1, 16384, %s19, [#allocation3], 512, 512, 32
    $region9: #{_lambda_.6} parent=1 // pred_fallthru
      _
    // Predicated region
    $region10: #{_lambda_.6} parent=1 // pred_check
      _
    $region11: #{_lambda_.6} parent=1 // pred_check_branch
      %26 = sbr.rel (0) target = $region13
    $region12: #{_lambda_.6} parent=1 // pred_region
      %s28 = ssub.s32 64, 64
      %29 = vsyncadd [#allocation5], %s28
      %s31 = sshll.u32 [#allocation4], 4
      %s32 = int_to_ptr.vmem [resolvable:$true] %s31
      %34 = dma.hbm_to_vmem [thread:$0]  %s2, 64, %s32, [#allocation5]
    $region13: #{_lambda_.6} parent=1 // pred_fallthru
      _
    // Predicated region
    $region14: #{_lambda_.6} parent=1 // pred_check
      _
    $region15: #{_lambda_.6} parent=1 // pred_check_branch
      %36 = sbr.rel (0) target = $region17
    $region16: #{_lambda_.6} parent=1 // pred_region
      %s38 = ssub.s32 64, 64
      %39 = vsyncadd [#allocation5], %s38
      %s41 = sshll.u32 [#allocation6], 4
      %s42 = int_to_ptr.vmem [resolvable:$true] %s41
      %44 = dma.hbm_to_vmem [thread:$0]  %s3, 64, %s42, [#allocation5]
    $region17: #{_lambda_.6} parent=1 // pred_fallthru
      _
    // Predicated region
    $region18: #{_lambda_.6} parent=1 // pred_check
      _
    $region19: #{_lambda_.6} parent=1 // pred_check_branch
      %46 = sbr.rel (0) target = $region21
    $region20: #{_lambda_.6} parent=1 // pred_region
      %47 = dma.done [#allocation3], 16384
    $region21: #{_lambda_.6} parent=1 // pred_fallthru
      _
    // Predicated region
    $region22: #{_lambda_.6} parent=1 // pred_check
      _
    $region23: #{_lambda_.6} parent=1 // pred_check_branch
      %49 = sbr.rel (0) target = $region25
    $region24: #{_lambda_.6} parent=1 // pred_region
      %50 = dma.done [#allocation5], 64
    $region25: #{_lambda_.6} parent=1 // pred_fallthru
      _
    // Predicated region
    $region26: #{_lambda_.6} parent=1 // pred_check
      _
    $region27: #{_lambda_.6} parent=1 // pred_check_branch
      %52 = sbr.rel (0) target = $region29
    $region28: #{_lambda_.6} parent=1 // pred_region
      %53 = dma.done [#allocation5], 64
    $region29: #{_lambda_.6} parent=1 // pred_fallthru
      _
    %v54 = vld [vmem:[%s0] sm:$0xff]
    %v55 = vld [vmem:[#allocation2] sm:$0xff]
    %v56 = vld [vmem:[#allocation2 + $0x8] sm:$0xff]
    %v57 = vld [vmem:[#allocation2 + $0x10] sm:$0xff]
    %v58 = vld [vmem:[#allocation2 + $0x18] sm:$0xff]
    %v59 = vld [vmem:[#allocation2 + $0x20] sm:$0xff]
    %v60 = vld [vmem:[#allocation2 + $0x28] sm:$0xff]
    %v61 = vld [vmem:[#allocation2 + $0x30] sm:$0xff]
    %v62 = vld [vmem:[#allocation2 + $0x38] sm:$0xff]
    %v63 = vld [vmem:[#allocation2 + $0x40] sm:$0xff]
    %v64 = vld [vmem:[#allocation2 + $0x48] sm:$0xff]
    %v65 = vld [vmem:[#allocation2 + $0x50] sm:$0xff]
    %v66 = vld [vmem:[#allocation2 + $0x58] sm:$0xff]
    %v67 = vld [vmem:[#allocation2 + $0x60] sm:$0xff]
    %v68 = vld [vmem:[#allocation2 + $0x68] sm:$0xff]
    %v69 = vld [vmem:[#allocation2 + $0x70] sm:$0xff]
    %v70 = vld [vmem:[#allocation2 + $0x78] sm:$0xff]
    %v71 = vld [vmem:[#allocation2 + $0x80] sm:$0xff]
    %v72 = vld [vmem:[#allocation2 + $0x88] sm:$0xff]
    %v73 = vld [vmem:[#allocation2 + $0x90] sm:$0xff]
    %v74 = vld [vmem:[#allocation2 + $0x98] sm:$0xff]
    %v75 = vld [vmem:[#allocation2 + $0xa0] sm:$0xff]
    %v76 = vld [vmem:[#allocation2 + $0xa8] sm:$0xff]
    %v77 = vld [vmem:[#allocation2 + $0xb0] sm:$0xff]
    %v78 = vld [vmem:[#allocation2 + $0xb8] sm:$0xff]
    %v79 = vld [vmem:[#allocation2 + $0xc0] sm:$0xff]
    %v80 = vld [vmem:[#allocation2 + $0xc8] sm:$0xff]
    %v81 = vld [vmem:[#allocation2 + $0xd0] sm:$0xff]
    %v82 = vld [vmem:[#allocation2 + $0xd8] sm:$0xff]
    %v83 = vld [vmem:[#allocation2 + $0xe0] sm:$0xff]
    %v84 = vld [vmem:[#allocation2 + $0xe8] sm:$0xff]
    %v85 = vld [vmem:[#allocation2 + $0xf0] sm:$0xff]
    %v86 = vld [vmem:[#allocation2 + $0xf8] sm:$0xff]
    %v87 = vld [vmem:[#allocation2 + $0x100] sm:$0xff]
    %v88 = vld [vmem:[#allocation2 + $0x108] sm:$0xff]
    %v89 = vld [vmem:[#allocation2 + $0x110] sm:$0xff]
    %v90 = vld [vmem:[#allocation2 + $0x118] sm:$0xff]
    %v91 = vld [vmem:[#allocation2 + $0x120] sm:$0xff]
    %v92 = vld [vmem:[#allocation2 + $0x128] sm:$0xff]
    %v93 = vld [vmem:[#allocation2 + $0x130] sm:$0xff]
    %v94 = vld [vmem:[#allocation2 + $0x138] sm:$0xff]
    %v95 = vld [vmem:[#allocation2 + $0x140] sm:$0xff]
    %v96 = vld [vmem:[#allocation2 + $0x148] sm:$0xff]
    %v97 = vld [vmem:[#allocation2 + $0x150] sm:$0xff]
    %v98 = vld [vmem:[#allocation2 + $0x158] sm:$0xff]
    %v99 = vld [vmem:[#allocation2 + $0x160] sm:$0xff]
    %v100 = vld [vmem:[#allocation2 + $0x168] sm:$0xff]
    %v101 = vld [vmem:[#allocation2 + $0x170] sm:$0xff]
    %v102 = vld [vmem:[#allocation2 + $0x178] sm:$0xff]
    %v103 = vld [vmem:[#allocation2 + $0x180] sm:$0xff]
    %v104 = vld [vmem:[#allocation2 + $0x188] sm:$0xff]
    %v105 = vld [vmem:[#allocation2 + $0x190] sm:$0xff]
    %v106 = vld [vmem:[#allocation2 + $0x198] sm:$0xff]
    %v107 = vld [vmem:[#allocation2 + $0x1a0] sm:$0xff]
    %v108 = vld [vmem:[#allocation2 + $0x1a8] sm:$0xff]
    %v109 = vld [vmem:[#allocation2 + $0x1b0] sm:$0xff]
    %v110 = vld [vmem:[#allocation2 + $0x1b8] sm:$0xff]
    %v111 = vld [vmem:[#allocation2 + $0x1c0] sm:$0xff]
    %v112 = vld [vmem:[#allocation2 + $0x1c8] sm:$0xff]
    %v113 = vld [vmem:[#allocation2 + $0x1d0] sm:$0xff]
    %v114 = vld [vmem:[#allocation2 + $0x1d8] sm:$0xff]
    %v115 = vld [vmem:[#allocation2 + $0x1e0] sm:$0xff]
    %v116 = vld [vmem:[#allocation2 + $0x1e8] sm:$0xff]
    %v117 = vld [vmem:[#allocation2 + $0x1f0] sm:$0xff]
    %v118 = vld [vmem:[#allocation2 + $0x1f8] sm:$0xff]
    %v119 = vld [vmem:[#allocation2 + $0x200] sm:$0xff]
    %v120 = vld [vmem:[#allocation2 + $0x208] sm:$0xff]
    %v121 = vld [vmem:[#allocation2 + $0x210] sm:$0xff]
    %v122 = vld [vmem:[#allocation2 + $0x218] sm:$0xff]
    %v123 = vld [vmem:[#allocation2 + $0x220] sm:$0xff]
    %v124 = vld [vmem:[#allocation2 + $0x228] sm:$0xff]
    %v125 = vld [vmem:[#allocation2 + $0x230] sm:$0xff]
    %v126 = vld [vmem:[#allocation2 + $0x238] sm:$0xff]
    %v127 = vld [vmem:[#allocation2 + $0x240] sm:$0xff]
    %v128 = vld [vmem:[#allocation2 + $0x248] sm:$0xff]
    %v129 = vld [vmem:[#allocation2 + $0x250] sm:$0xff]
    %v130 = vld [vmem:[#allocation2 + $0x258] sm:$0xff]
    %v131 = vld [vmem:[#allocation2 + $0x260] sm:$0xff]
    %v132 = vld [vmem:[#allocation2 + $0x268] sm:$0xff]
    %v133 = vld [vmem:[#allocation2 + $0x270] sm:$0xff]
    %v134 = vld [vmem:[#allocation2 + $0x278] sm:$0xff]
    %v135 = vld [vmem:[#allocation2 + $0x280] sm:$0xff]
    %v136 = vld [vmem:[#allocation2 + $0x288] sm:$0xff]
    %v137 = vld [vmem:[#allocation2 + $0x290] sm:$0xff]
    %v138 = vld [vmem:[#allocation2 + $0x298] sm:$0xff]
    %v139 = vld [vmem:[#allocation2 + $0x2a0] sm:$0xff]
    %v140 = vld [vmem:[#allocation2 + $0x2a8] sm:$0xff]
    %v141 = vld [vmem:[#allocation2 + $0x2b0] sm:$0xff]
    %v142 = vld [vmem:[#allocation2 + $0x2b8] sm:$0xff]
    %v143 = vld [vmem:[#allocation2 + $0x2c0] sm:$0xff]
    %v144 = vld [vmem:[#allocation2 + $0x2c8] sm:$0xff]
    %v145 = vld [vmem:[#allocation2 + $0x2d0] sm:$0xff]
    %v146 = vld [vmem:[#allocation2 + $0x2d8] sm:$0xff]
    %v147 = vld [vmem:[#allocation2 + $0x2e0] sm:$0xff]
    %v148 = vld [vmem:[#allocation2 + $0x2e8] sm:$0xff]
    %v149 = vld [vmem:[#allocation2 + $0x2f0] sm:$0xff]
    %v150 = vld [vmem:[#allocation2 + $0x2f8] sm:$0xff]
    %v151 = vld [vmem:[#allocation2 + $0x300] sm:$0xff]
    %v152 = vld [vmem:[#allocation2 + $0x308] sm:$0xff]
    %v153 = vld [vmem:[#allocation2 + $0x310] sm:$0xff]
    %v154 = vld [vmem:[#allocation2 + $0x318] sm:$0xff]
    %v155 = vld [vmem:[#allocation2 + $0x320] sm:$0xff]
    %v156 = vld [vmem:[#allocation2 + $0x328] sm:$0xff]
    %v157 = vld [vmem:[#allocation2 + $0x330] sm:$0xff]
    %v158 = vld [vmem:[#allocation2 + $0x338] sm:$0xff]
    %v159 = vld [vmem:[#allocation2 + $0x340] sm:$0xff]
    %v160 = vld [vmem:[#allocation2 + $0x348] sm:$0xff]
    %v161 = vld [vmem:[#allocation2 + $0x350] sm:$0xff]
    %v162 = vld [vmem:[#allocation2 + $0x358] sm:$0xff]
    %v163 = vld [vmem:[#allocation2 + $0x360] sm:$0xff]
    %v164 = vld [vmem:[#allocation2 + $0x368] sm:$0xff]
    %v165 = vld [vmem:[#allocation2 + $0x370] sm:$0xff]
    %v166 = vld [vmem:[#allocation2 + $0x378] sm:$0xff]
    %v167 = vld [vmem:[#allocation2 + $0x380] sm:$0xff]
    %v168 = vld [vmem:[#allocation2 + $0x388] sm:$0xff]
    %v169 = vld [vmem:[#allocation2 + $0x390] sm:$0xff]
    %v170 = vld [vmem:[#allocation2 + $0x398] sm:$0xff]
    %v171 = vld [vmem:[#allocation2 + $0x3a0] sm:$0xff]
    %v172 = vld [vmem:[#allocation2 + $0x3a8] sm:$0xff]
    %v173 = vld [vmem:[#allocation2 + $0x3b0] sm:$0xff]
    %v174 = vld [vmem:[#allocation2 + $0x3b8] sm:$0xff]
    %v175 = vld [vmem:[#allocation2 + $0x3c0] sm:$0xff]
    %v176 = vld [vmem:[#allocation2 + $0x3c8] sm:$0xff]
    %v177 = vld [vmem:[#allocation2 + $0x3d0] sm:$0xff]
    %v178 = vld [vmem:[#allocation2 + $0x3d8] sm:$0xff]
    %v179 = vld [vmem:[#allocation2 + $0x3e0] sm:$0xff]
    %v180 = vld [vmem:[#allocation2 + $0x3e8] sm:$0xff]
    %v181 = vld [vmem:[#allocation2 + $0x3f0] sm:$0xff]
    %v182 = vld [vmem:[#allocation2 + $0x3f8] sm:$0xff]
    %v184 = vunpack.c.l.b16 %v54
    %v185 = vunpack.c.h.b16 %v54
    %v186 = vpack.c.b16 %v184, %v184
    %v187 = vpack.c.b16 %v185, %v185
    %v318 = vunpack.c.l.b16 %v55
    %v319 = vunpack.c.h.b16 %v55
    %v320 = vunpack.c.l.b16 %v56
    %v321 = vunpack.c.h.b16 %v56
    %v322 = vunpack.c.l.b16 %v57
    %v323 = vunpack.c.h.b16 %v57
    %v324 = vunpack.c.l.b16 %v58
    %v325 = vunpack.c.h.b16 %v58
    %v326 = vunpack.c.l.b16 %v59
    %v327 = vunpack.c.h.b16 %v59
    %v328 = vunpack.c.l.b16 %v60
    %v329 = vunpack.c.h.b16 %v60
    %v330 = vunpack.c.l.b16 %v61
    %v331 = vunpack.c.h.b16 %v61
    %v332 = vunpack.c.l.b16 %v62
    %v333 = vunpack.c.h.b16 %v62
    %v334 = vunpack.c.l.b16 %v63
    %v335 = vunpack.c.h.b16 %v63
    %v336 = vunpack.c.l.b16 %v64
    %v337 = vunpack.c.h.b16 %v64
    %v338 = vunpack.c.l.b16 %v65
    %v339 = vunpack.c.h.b16 %v65
    %v340 = vunpack.c.l.b16 %v66
    %v341 = vunpack.c.h.b16 %v66
    %v342 = vunpack.c.l.b16 %v67
    %v343 = vunpack.c.h.b16 %v67
    %v344 = vunpack.c.l.b16 %v68
    %v345 = vunpack.c.h.b16 %v68
    %v346 = vunpack.c.l.b16 %v69
    %v347 = vunpack.c.h.b16 %v69
    %v348 = vunpack.c.l.b16 %v70
    %v349 = vunpack.c.h.b16 %v70
    %v350 = vunpack.c.l.b16 %v71
    %v351 = vunpack.c.h.b16 %v71
    %v352 = vunpack.c.l.b16 %v72
    %v353 = vunpack.c.h.b16 %v72
    %v354 = vunpack.c.l.b16 %v73
    %v355 = vunpack.c.h.b16 %v73
    %v356 = vunpack.c.l.b16 %v74
    %v357 = vunpack.c.h.b16 %v74
    %v358 = vunpack.c.l.b16 %v75
    %v359 = vunpack.c.h.b16 %v75
    %v360 = vunpack.c.l.b16 %v76
    %v361 = vunpack.c.h.b16 %v76
    %v362 = vunpack.c.l.b16 %v77
    %v363 = vunpack.c.h.b16 %v77
    %v364 = vunpack.c.l.b16 %v78
    %v365 = vunpack.c.h.b16 %v78
    %v366 = vunpack.c.l.b16 %v79
    %v367 = vunpack.c.h.b16 %v79
    %v368 = vunpack.c.l.b16 %v80
    %v369 = vunpack.c.h.b16 %v80
    %v370 = vunpack.c.l.b16 %v81
    %v371 = vunpack.c.h.b16 %v81
    %v372 = vunpack.c.l.b16 %v82
    %v373 = vunpack.c.h.b16 %v82
    %v374 = vunpack.c.l.b16 %v83
    %v375 = vunpack.c.h.b16 %v83
    %v376 = vunpack.c.l.b16 %v84
    %v377 = vunpack.c.h.b16 %v84
    %v378 = vunpack.c.l.b16 %v85
    %v379 = vunpack.c.h.b16 %v85
    %v380 = vunpack.c.l.b16 %v86
    %v381 = vunpack.c.h.b16 %v86
    %v382 = vunpack.c.l.b16 %v87
    %v383 = vunpack.c.h.b16 %v87
    %v384 = vunpack.c.l.b16 %v88
    %v385 = vunpack.c.h.b16 %v88
    %v386 = vunpack.c.l.b16 %v89
    %v387 = vunpack.c.h.b16 %v89
    %v388 = vunpack.c.l.b16 %v90
    %v389 = vunpack.c.h.b16 %v90
    %v390 = vunpack.c.l.b16 %v91
    %v391 = vunpack.c.h.b16 %v91
    %v392 = vunpack.c.l.b16 %v92
    %v393 = vunpack.c.h.b16 %v92
    %v394 = vunpack.c.l.b16 %v93
    %v395 = vunpack.c.h.b16 %v93
    %v396 = vunpack.c.l.b16 %v94
    %v397 = vunpack.c.h.b16 %v94
    %v398 = vunpack.c.l.b16 %v95
    %v399 = vunpack.c.h.b16 %v95
    %v400 = vunpack.c.l.b16 %v96
    %v401 = vunpack.c.h.b16 %v96
    %v402 = vunpack.c.l.b16 %v97
    %v403 = vunpack.c.h.b16 %v97
    %v404 = vunpack.c.l.b16 %v98
    %v405 = vunpack.c.h.b16 %v98
    %v406 = vunpack.c.l.b16 %v99
    %v407 = vunpack.c.h.b16 %v99
    %v408 = vunpack.c.l.b16 %v100
    %v409 = vunpack.c.h.b16 %v100
    %v410 = vunpack.c.l.b16 %v101
    %v411 = vunpack.c.h.b16 %v101
    %v412 = vunpack.c.l.b16 %v102
    %v413 = vunpack.c.h.b16 %v102
    %v414 = vunpack.c.l.b16 %v103
    %v415 = vunpack.c.h.b16 %v103
    %v416 = vunpack.c.l.b16 %v104
    %v417 = vunpack.c.h.b16 %v104
    %v418 = vunpack.c.l.b16 %v105
    %v419 = vunpack.c.h.b16 %v105
    %v420 = vunpack.c.l.b16 %v106
    %v421 = vunpack.c.h.b16 %v106
    %v422 = vunpack.c.l.b16 %v107
    %v423 = vunpack.c.h.b16 %v107
    %v424 = vunpack.c.l.b16 %v108
    %v425 = vunpack.c.h.b16 %v108
    %v426 = vunpack.c.l.b16 %v109
    %v427 = vunpack.c.h.b16 %v109
    %v428 = vunpack.c.l.b16 %v110
    %v429 = vunpack.c.h.b16 %v110
    %v430 = vunpack.c.l.b16 %v111
    %v431 = vunpack.c.h.b16 %v111
    %v432 = vunpack.c.l.b16 %v112
    %v433 = vunpack.c.h.b16 %v112
    %v434 = vunpack.c.l.b16 %v113
    %v435 = vunpack.c.h.b16 %v113
    %v436 = vunpack.c.l.b16 %v114
    %v437 = vunpack.c.h.b16 %v114
    %v438 = vunpack.c.l.b16 %v115
    %v439 = vunpack.c.h.b16 %v115
    %v440 = vunpack.c.l.b16 %v116
    %v441 = vunpack.c.h.b16 %v116
    %v442 = vunpack.c.l.b16 %v117
    %v443 = vunpack.c.h.b16 %v117
    %v444 = vunpack.c.l.b16 %v118
    %v445 = vunpack.c.h.b16 %v118
    %v446 = vunpack.c.l.b16 %v119
    %v447 = vunpack.c.h.b16 %v119
    %v448 = vunpack.c.l.b16 %v120
    %v449 = vunpack.c.h.b16 %v120
    %v450 = vunpack.c.l.b16 %v121
    %v451 = vunpack.c.h.b16 %v121
    %v452 = vunpack.c.l.b16 %v122
    %v453 = vunpack.c.h.b16 %v122
    %v454 = vunpack.c.l.b16 %v123
    %v455 = vunpack.c.h.b16 %v123
    %v456 = vunpack.c.l.b16 %v124
    %v457 = vunpack.c.h.b16 %v124
    %v458 = vunpack.c.l.b16 %v125
    %v459 = vunpack.c.h.b16 %v125
    %v460 = vunpack.c.l.b16 %v126
    %v461 = vunpack.c.h.b16 %v126
    %v462 = vunpack.c.l.b16 %v127
    %v463 = vunpack.c.h.b16 %v127
    %v464 = vunpack.c.l.b16 %v128
    %v465 = vunpack.c.h.b16 %v128
    %v466 = vunpack.c.l.b16 %v129
    %v467 = vunpack.c.h.b16 %v129
    %v468 = vunpack.c.l.b16 %v130
    %v469 = vunpack.c.h.b16 %v130
    %v470 = vunpack.c.l.b16 %v131
    %v471 = vunpack.c.h.b16 %v131
    %v472 = vunpack.c.l.b16 %v132
    %v473 = vunpack.c.h.b16 %v132
    %v474 = vunpack.c.l.b16 %v133
    %v475 = vunpack.c.h.b16 %v133
    %v476 = vunpack.c.l.b16 %v134
    %v477 = vunpack.c.h.b16 %v134
    %v478 = vunpack.c.l.b16 %v135
    %v479 = vunpack.c.h.b16 %v135
    %v480 = vunpack.c.l.b16 %v136
    %v481 = vunpack.c.h.b16 %v136
    %v482 = vunpack.c.l.b16 %v137
    %v483 = vunpack.c.h.b16 %v137
    %v484 = vunpack.c.l.b16 %v138
    %v485 = vunpack.c.h.b16 %v138
    %v486 = vunpack.c.l.b16 %v139
    %v487 = vunpack.c.h.b16 %v139
    %v488 = vunpack.c.l.b16 %v140
    %v489 = vunpack.c.h.b16 %v140
    %v490 = vunpack.c.l.b16 %v141
    %v491 = vunpack.c.h.b16 %v141
    %v492 = vunpack.c.l.b16 %v142
    %v493 = vunpack.c.h.b16 %v142
    %v494 = vunpack.c.l.b16 %v143
    %v495 = vunpack.c.h.b16 %v143
    %v496 = vunpack.c.l.b16 %v144
    %v497 = vunpack.c.h.b16 %v144
    %v498 = vunpack.c.l.b16 %v145
    %v499 = vunpack.c.h.b16 %v145
    %v500 = vunpack.c.l.b16 %v146
    %v501 = vunpack.c.h.b16 %v146
    %v502 = vunpack.c.l.b16 %v147
    %v503 = vunpack.c.h.b16 %v147
    %v504 = vunpack.c.l.b16 %v148
    %v505 = vunpack.c.h.b16 %v148
    %v506 = vunpack.c.l.b16 %v149
    %v507 = vunpack.c.h.b16 %v149
    %v508 = vunpack.c.l.b16 %v150
    %v509 = vunpack.c.h.b16 %v150
    %v510 = vunpack.c.l.b16 %v151
    %v511 = vunpack.c.h.b16 %v151
    %v512 = vunpack.c.l.b16 %v152
    %v513 = vunpack.c.h.b16 %v152
    %v514 = vunpack.c.l.b16 %v153
    %v515 = vunpack.c.h.b16 %v153
    %v516 = vunpack.c.l.b16 %v154
    %v517 = vunpack.c.h.b16 %v154
    %v518 = vunpack.c.l.b16 %v155
    %v519 = vunpack.c.h.b16 %v155
    %v520 = vunpack.c.l.b16 %v156
    %v521 = vunpack.c.h.b16 %v156
    %v522 = vunpack.c.l.b16 %v157
    %v523 = vunpack.c.h.b16 %v157
    %v524 = vunpack.c.l.b16 %v158
    %v525 = vunpack.c.h.b16 %v158
    %v526 = vunpack.c.l.b16 %v159
    %v527 = vunpack.c.h.b16 %v159
    %v528 = vunpack.c.l.b16 %v160
    %v529 = vunpack.c.h.b16 %v160
    %v530 = vunpack.c.l.b16 %v161
    %v531 = vunpack.c.h.b16 %v161
    %v532 = vunpack.c.l.b16 %v162
    %v533 = vunpack.c.h.b16 %v162
    %v534 = vunpack.c.l.b16 %v163
    %v535 = vunpack.c.h.b16 %v163
    %v536 = vunpack.c.l.b16 %v164
    %v537 = vunpack.c.h.b16 %v164
    %v538 = vunpack.c.l.b16 %v165
    %v539 = vunpack.c.h.b16 %v165
    %v540 = vunpack.c.l.b16 %v166
    %v541 = vunpack.c.h.b16 %v166
    %v542 = vunpack.c.l.b16 %v167
    %v543 = vunpack.c.h.b16 %v167
    %v544 = vunpack.c.l.b16 %v168
    %v545 = vunpack.c.h.b16 %v168
    %v546 = vunpack.c.l.b16 %v169
    %v547 = vunpack.c.h.b16 %v169
    %v548 = vunpack.c.l.b16 %v170
    %v549 = vunpack.c.h.b16 %v170
    %v550 = vunpack.c.l.b16 %v171
    %v551 = vunpack.c.h.b16 %v171
    %v552 = vunpack.c.l.b16 %v172
    %v553 = vunpack.c.h.b16 %v172
    %v554 = vunpack.c.l.b16 %v173
    %v555 = vunpack.c.h.b16 %v173
    %v556 = vunpack.c.l.b16 %v174
    %v557 = vunpack.c.h.b16 %v174
    %v558 = vunpack.c.l.b16 %v175
    %v559 = vunpack.c.h.b16 %v175
    %v560 = vunpack.c.l.b16 %v176
    %v561 = vunpack.c.h.b16 %v176
    %v562 = vunpack.c.l.b16 %v177
    %v563 = vunpack.c.h.b16 %v177
    %v564 = vunpack.c.l.b16 %v178
    %v565 = vunpack.c.h.b16 %v178
    %v566 = vunpack.c.l.b16 %v179
    %v567 = vunpack.c.h.b16 %v179
    %v568 = vunpack.c.l.b16 %v180
    %v569 = vunpack.c.h.b16 %v180
    %v570 = vunpack.c.l.b16 %v181
    %v571 = vunpack.c.h.b16 %v181
    %v572 = vunpack.c.l.b16 %v182
    %v573 = vunpack.c.h.b16 %v182
    %v574 = vpack.c.b16 %v326, %v318
    %v575 = vpack.c.b16 %v327, %v319
    %v576 = vpack.c.b16 %v328, %v320
    %v577 = vpack.c.b16 %v329, %v321
    %v578 = vpack.c.b16 %v330, %v322
    %v579 = vpack.c.b16 %v331, %v323
    %v580 = vpack.c.b16 %v332, %v324
    %v581 = vpack.c.b16 %v333, %v325
    %v582 = vpack.c.b16 %v342, %v334
    %v583 = vpack.c.b16 %v343, %v335
    %v584 = vpack.c.b16 %v344, %v336
    %v585 = vpack.c.b16 %v345, %v337
    %v586 = vpack.c.b16 %v346, %v338
    %v587 = vpack.c.b16 %v347, %v339
    %v588 = vpack.c.b16 %v348, %v340
    %v589 = vpack.c.b16 %v349, %v341
    %v590 = vpack.c.b16 %v358, %v350
    %v591 = vpack.c.b16 %v359, %v351
    %v592 = vpack.c.b16 %v360, %v352
    %v593 = vpack.c.b16 %v361, %v353
    %v594 = vpack.c.b16 %v362, %v354
    %v595 = vpack.c.b16 %v363, %v355
    %v596 = vpack.c.b16 %v364, %v356
    %v597 = vpack.c.b16 %v365, %v357
    %v598 = vpack.c.b16 %v374, %v366
    %v599 = vpack.c.b16 %v375, %v367
    %v600 = vpack.c.b16 %v376, %v368
    %v601 = vpack.c.b16 %v377, %v369
    %v602 = vpack.c.b16 %v378, %v370
    %v603 = vpack.c.b16 %v379, %v371
    %v604 = vpack.c.b16 %v380, %v372
    %v605 = vpack.c.b16 %v381, %v373
    %v606 = vpack.c.b16 %v390, %v382
    %v607 = vpack.c.b16 %v391, %v383
    %v608 = vpack.c.b16 %v392, %v384
    %v609 = vpack.c.b16 %v393, %v385
    %v610 = vpack.c.b16 %v394, %v386
    %v611 = vpack.c.b16 %v395, %v387
    %v612 = vpack.c.b16 %v396, %v388
    %v613 = vpack.c.b16 %v397, %v389
    %v614 = vpack.c.b16 %v406, %v398
    %v615 = vpack.c.b16 %v407, %v399
    %v616 = vpack.c.b16 %v408, %v400
    %v617 = vpack.c.b16 %v409, %v401
    %v618 = vpack.c.b16 %v410, %v402
    %v619 = vpack.c.b16 %v411, %v403
    %v620 = vpack.c.b16 %v412, %v404
    %v621 = vpack.c.b16 %v413, %v405
    %v622 = vpack.c.b16 %v422, %v414
    %v623 = vpack.c.b16 %v423, %v415
    %v624 = vpack.c.b16 %v424, %v416
    %v625 = vpack.c.b16 %v425, %v417
    %v626 = vpack.c.b16 %v426, %v418
    %v627 = vpack.c.b16 %v427, %v419
    %v628 = vpack.c.b16 %v428, %v420
    %v629 = vpack.c.b16 %v429, %v421
    %v630 = vpack.c.b16 %v438, %v430
    %v631 = vpack.c.b16 %v439, %v431
    %v632 = vpack.c.b16 %v440, %v432
    %v633 = vpack.c.b16 %v441, %v433
    %v634 = vpack.c.b16 %v442, %v434
    %v635 = vpack.c.b16 %v443, %v435
    %v636 = vpack.c.b16 %v444, %v436
    %v637 = vpack.c.b16 %v445, %v437
    %v638 = vpack.c.b16 %v454, %v446
    %v639 = vpack.c.b16 %v455, %v447
    %v640 = vpack.c.b16 %v456, %v448
    %v641 = vpack.c.b16 %v457, %v449
    %v642 = vpack.c.b16 %v458, %v450
    %v643 = vpack.c.b16 %v459, %v451
    %v644 = vpack.c.b16 %v460, %v452
    %v645 = vpack.c.b16 %v461, %v453
    %v646 = vpack.c.b16 %v470, %v462
    %v647 = vpack.c.b16 %v471, %v463
    %v648 = vpack.c.b16 %v472, %v464
    %v649 = vpack.c.b16 %v473, %v465
    %v650 = vpack.c.b16 %v474, %v466
    %v651 = vpack.c.b16 %v475, %v467
    %v652 = vpack.c.b16 %v476, %v468
    %v653 = vpack.c.b16 %v477, %v469
    %v654 = vpack.c.b16 %v486, %v478
    %v655 = vpack.c.b16 %v487, %v479
    %v656 = vpack.c.b16 %v488, %v480
    %v657 = vpack.c.b16 %v489, %v481
    %v658 = vpack.c.b16 %v490, %v482
    %v659 = vpack.c.b16 %v491, %v483
    %v660 = vpack.c.b16 %v492, %v484
    %v661 = vpack.c.b16 %v493, %v485
    %v662 = vpack.c.b16 %v502, %v494
    %v663 = vpack.c.b16 %v503, %v495
    %v664 = vpack.c.b16 %v504, %v496
    %v665 = vpack.c.b16 %v505, %v497
    %v666 = vpack.c.b16 %v506, %v498
    %v667 = vpack.c.b16 %v507, %v499
    %v668 = vpack.c.b16 %v508, %v500
    %v669 = vpack.c.b16 %v509, %v501
    %v670 = vpack.c.b16 %v518, %v510
    %v671 = vpack.c.b16 %v519, %v511
    %v672 = vpack.c.b16 %v520, %v512
    %v673 = vpack.c.b16 %v521, %v513
    %v674 = vpack.c.b16 %v522, %v514
    %v675 = vpack.c.b16 %v523, %v515
    %v676 = vpack.c.b16 %v524, %v516
    %v677 = vpack.c.b16 %v525, %v517
    %v678 = vpack.c.b16 %v534, %v526
    %v679 = vpack.c.b16 %v535, %v527
    %v680 = vpack.c.b16 %v536, %v528
    %v681 = vpack.c.b16 %v537, %v529
    %v682 = vpack.c.b16 %v538, %v530
    %v683 = vpack.c.b16 %v539, %v531
    %v684 = vpack.c.b16 %v540, %v532
    %v685 = vpack.c.b16 %v541, %v533
    %v686 = vpack.c.b16 %v550, %v542
    %v687 = vpack.c.b16 %v551, %v543
    %v688 = vpack.c.b16 %v552, %v544
    %v689 = vpack.c.b16 %v553, %v545
    %v690 = vpack.c.b16 %v554, %v546
    %v691 = vpack.c.b16 %v555, %v547
    %v692 = vpack.c.b16 %v556, %v548
    %v693 = vpack.c.b16 %v557, %v549
    %v694 = vpack.c.b16 %v566, %v558
    %v695 = vpack.c.b16 %v567, %v559
    %v696 = vpack.c.b16 %v568, %v560
    %v697 = vpack.c.b16 %v569, %v561
    %v698 = vpack.c.b16 %v570, %v562
    %v699 = vpack.c.b16 %v571, %v563
    %v700 = vpack.c.b16 %v572, %v564
    %v701 = vpack.c.b16 %v573, %v565
    %830 = vmatprep.subr.bf16.mxu0 %v631
    %831 = vmatpush1.bf16.msra.mxu0 %v630
    %832 = vmatprep.subr.bf16.mxu0 %v623
    %833 = vmatpush1.bf16.msra.mxu0 %v622
    %834 = vmatprep.subr.bf16.mxu0 %v615
    %835 = vmatpush1.bf16.msra.mxu0 %v614
    %836 = vmatprep.subr.bf16.mxu0 %v607
    %837 = vmatpush1.bf16.msra.mxu0 %v606
    %838 = vmatprep.subr.bf16.mxu0 %v599
    %839 = vmatpush1.bf16.msra.mxu0 %v598
    %840 = vmatprep.subr.bf16.mxu0 %v591
    %841 = vmatpush1.bf16.msra.mxu0 %v590
    %842 = vmatprep.subr.bf16.mxu0 %v583
    %843 = vmatpush1.bf16.msra.mxu0 %v582
    %844 = vmatprep.subr.bf16.mxu0 %v575
    %845 = vmatpush1.bf16.msra.mxu0 %v574
    %846 = vmatprep.subr.bf16.mxu0 %v695
    %847 = vmatpush2.bf16.msra.mxu0 %v694
    %848 = vmatprep.subr.bf16.mxu0 %v687
    %849 = vmatpush2.bf16.msra.mxu0 %v686
    %850 = vmatprep.subr.bf16.mxu0 %v679
    %851 = vmatpush2.bf16.msra.mxu0 %v678
    %852 = vmatprep.subr.bf16.mxu0 %v671
    %853 = vmatpush2.bf16.msra.mxu0 %v670
    %854 = vmatprep.subr.bf16.mxu0 %v663
    %855 = vmatpush2.bf16.msra.mxu0 %v662
    %856 = vmatprep.subr.bf16.mxu0 %v655
    %857 = vmatpush2.bf16.msra.mxu0 %v654
    %858 = vmatprep.subr.bf16.mxu0 %v647
    %859 = vmatpush2.bf16.msra.mxu0 %v646
    %860 = vmatprep.subr.bf16.mxu0 %v639
    %861 = vmatpush2.bf16.msra.mxu0 %v638
    %862 = vmatprep.mubr.bf16.mxu0 %v187
    %863 = vmatmul.mubr.bf16.gmra.mxu0 %v186
    %v864 = vpop.f32.mrf.mxu0
    %v865 = vadd.f32 0.0, %v864
    %v866 = vpop.f32.mrf.mxu0
    %v867 = vadd.f32 0.0, %v866
    %v868 = vpop.f32.mrf.mxu0
    %v869 = vpop.f32.mrf.mxu0
    %870 = vdwg.mxu0
    %871 = vmatprep.subr.bf16.mxu0 %v633
    %872 = vmatpush1.bf16.msra.mxu0 %v632
    %873 = vmatprep.subr.bf16.mxu0 %v625
    %874 = vmatpush1.bf16.msra.mxu0 %v624
    %875 = vmatprep.subr.bf16.mxu0 %v617
    %876 = vmatpush1.bf16.msra.mxu0 %v616
    %877 = vmatprep.subr.bf16.mxu0 %v609
    %878 = vmatpush1.bf16.msra.mxu0 %v608
    %879 = vmatprep.subr.bf16.mxu0 %v601
    %880 = vmatpush1.bf16.msra.mxu0 %v600
    %881 = vmatprep.subr.bf16.mxu0 %v593
    %882 = vmatpush1.bf16.msra.mxu0 %v592
    %883 = vmatprep.subr.bf16.mxu0 %v585
    %884 = vmatpush1.bf16.msra.mxu0 %v584
    %885 = vmatprep.subr.bf16.mxu0 %v577
    %886 = vmatpush1.bf16.msra.mxu0 %v576
    %887 = vmatprep.subr.bf16.mxu0 %v697
    %888 = vmatpush2.bf16.msra.mxu0 %v696
    %889 = vmatprep.subr.bf16.mxu0 %v689
    %890 = vmatpush2.bf16.msra.mxu0 %v688
    %891 = vmatprep.subr.bf16.mxu0 %v681
    %892 = vmatpush2.bf16.msra.mxu0 %v680
    %893 = vmatprep.subr.bf16.mxu0 %v673
    %894 = vmatpush2.bf16.msra.mxu0 %v672
    %895 = vmatprep.subr.bf16.mxu0 %v665
    %896 = vmatpush2.bf16.msra.mxu0 %v664
    %897 = vmatprep.subr.bf16.mxu0 %v657
    %898 = vmatpush2.bf16.msra.mxu0 %v656
    %899 = vmatprep.subr.bf16.mxu0 %v649
    %900 = vmatpush2.bf16.msra.mxu0 %v648
    %901 = vmatprep.subr.bf16.mxu0 %v641
    %902 = vmatpush2.bf16.msra.mxu0 %v640
    %903 = vmatprep.mubr.bf16.mxu0 %v187
    %904 = vmatmul.mubr.bf16.gmra.mxu0 %v186
    %v905 = vpop.f32.mrf.mxu0
    %v906 = vadd.f32 0.0, %v905
    %v907 = vpop.f32.mrf.mxu0
    %v908 = vadd.f32 0.0, %v907
    %v909 = vpop.f32.mrf.mxu0
    %v910 = vpop.f32.mrf.mxu0
    %911 = vdwg.mxu0
    %912 = vmatprep.subr.bf16.mxu0 %v635
    %913 = vmatpush1.bf16.msra.mxu0 %v634
    %914 = vmatprep.subr.bf16.mxu0 %v627
    %915 = vmatpush1.bf16.msra.mxu0 %v626
    %916 = vmatprep.subr.bf16.mxu0 %v619
    %917 = vmatpush1.bf16.msra.mxu0 %v618
    %918 = vmatprep.subr.bf16.mxu0 %v611
    %919 = vmatpush1.bf16.msra.mxu0 %v610
    %920 = vmatprep.subr.bf16.mxu0 %v603
    %921 = vmatpush1.bf16.msra.mxu0 %v602
    %922 = vmatprep.subr.bf16.mxu0 %v595
    %923 = vmatpush1.bf16.msra.mxu0 %v594
    %924 = vmatprep.subr.bf16.mxu0 %v587
    %925 = vmatpush1.bf16.msra.mxu0 %v586
    %926 = vmatprep.subr.bf16.mxu0 %v579
    %927 = vmatpush1.bf16.msra.mxu0 %v578
    %928 = vmatprep.subr.bf16.mxu0 %v699
    %929 = vmatpush2.bf16.msra.mxu0 %v698
    %930 = vmatprep.subr.bf16.mxu0 %v691
    %931 = vmatpush2.bf16.msra.mxu0 %v690
    %932 = vmatprep.subr.bf16.mxu0 %v683
    %933 = vmatpush2.bf16.msra.mxu0 %v682
    %934 = vmatprep.subr.bf16.mxu0 %v675
    %935 = vmatpush2.bf16.msra.mxu0 %v674
    %936 = vmatprep.subr.bf16.mxu0 %v667
    %937 = vmatpush2.bf16.msra.mxu0 %v666
    %938 = vmatprep.subr.bf16.mxu0 %v659
    %939 = vmatpush2.bf16.msra.mxu0 %v658
    %940 = vmatprep.subr.bf16.mxu0 %v651
    %941 = vmatpush2.bf16.msra.mxu0 %v650
    %942 = vmatprep.subr.bf16.mxu0 %v643
    %943 = vmatpush2.bf16.msra.mxu0 %v642
    %944 = vmatprep.mubr.bf16.mxu0 %v187
    %945 = vmatmul.mubr.bf16.gmra.mxu0 %v186
    %v946 = vpop.f32.mrf.mxu0
    %v947 = vadd.f32 0.0, %v946
    %v948 = vpop.f32.mrf.mxu0
    %v949 = vadd.f32 0.0, %v948
    %v950 = vpop.f32.mrf.mxu0
    %v951 = vpop.f32.mrf.mxu0
    %952 = vdwg.mxu0
    %953 = vmatprep.subr.bf16.mxu0 %v637
    %954 = vmatpush1.bf16.msra.mxu0 %v636
    %955 = vmatprep.subr.bf16.mxu0 %v629
    %956 = vmatpush1.bf16.msra.mxu0 %v628
    %957 = vmatprep.subr.bf16.mxu0 %v621
    %958 = vmatpush1.bf16.msra.mxu0 %v620
    %959 = vmatprep.subr.bf16.mxu0 %v613
    %960 = vmatpush1.bf16.msra.mxu0 %v612
    %961 = vmatprep.subr.bf16.mxu0 %v605
    %962 = vmatpush1.bf16.msra.mxu0 %v604
    %963 = vmatprep.subr.bf16.mxu0 %v597
    %964 = vmatpush1.bf16.msra.mxu0 %v596
    %965 = vmatprep.subr.bf16.mxu0 %v589
    %966 = vmatpush1.bf16.msra.mxu0 %v588
    %967 = vmatprep.subr.bf16.mxu0 %v581
    %968 = vmatpush1.bf16.msra.mxu0 %v580
    %969 = vmatprep.subr.bf16.mxu0 %v701
    %970 = vmatpush2.bf16.msra.mxu0 %v700
    %971 = vmatprep.subr.bf16.mxu0 %v693
    %972 = vmatpush2.bf16.msra.mxu0 %v692
    %973 = vmatprep.subr.bf16.mxu0 %v685
    %974 = vmatpush2.bf16.msra.mxu0 %v684
    %975 = vmatprep.subr.bf16.mxu0 %v677
    %976 = vmatpush2.bf16.msra.mxu0 %v676
    %977 = vmatprep.subr.bf16.mxu0 %v669
    %978 = vmatpush2.bf16.msra.mxu0 %v668
    %979 = vmatprep.subr.bf16.mxu0 %v661
    %980 = vmatpush2.bf16.msra.mxu0 %v660
    %981 = vmatprep.subr.bf16.mxu0 %v653
    %982 = vmatpush2.bf16.msra.mxu0 %v652
    %983 = vmatprep.subr.bf16.mxu0 %v645
    %984 = vmatpush2.bf16.msra.mxu0 %v644
    %985 = vmatprep.mubr.bf16.mxu0 %v187
    %986 = vmatmul.mubr.bf16.gmra.mxu0 %v186
    %v987 = vpop.f32.mrf.mxu0
    %v988 = vadd.f32 0.0, %v987
    %v989 = vpop.f32.mrf.mxu0
    %v990 = vadd.f32 0.0, %v989
    %v991 = vpop.f32.mrf.mxu0
    %v992 = vpop.f32.mrf.mxu0
    %993 = vdwg.mxu0
    %v994 = vlaneseq
    %v995 = vshrl.u32 %v994, 7
    %vm996 = vcmp.lt.s32.totalorder %v995, 0
    %v997 = vsub.s32 0, %v995
    %v998 = vsel %vm996, %v997, %v995
    %v999 = vshrl.u32 %v998, 2
    %v1000 = vand.u32 %v998, 3
    %v1001 = vsub.s32 0, %v1000
    %v1002 = vsel %vm996, %v1001, %v1000
    %vm1003 = vcmp.ne.s32.totalorder %v1002, 0
    %vm1004 = vcmp.lt.s32.totalorder %v1002, 0
    %vm1005 = vmand %vm1004, %vm1003
    %v1006 = vadd.s32 %v1002, 4
    %v1007 = vsel %vm1005, %v1006, %v1002
    %vm1008 = vcmp.ne.s32.totalorder %v1007, 0
    %v1011 = vrot.slane %v947, 7
    %v1012 = vrot.slane %v949, 7
    %vm1015 = vcmask 1040384
    %v1016 = vsel %vm1015, %v1011, %v1011
    %v1017 = vsel %vm1015, %v1012, %v1012
    %v1018 = vsel %vm1008, %v1016, 0.0
    %v1019 = vsel %vm1008, %v1017, 0.0
    %vm1020 = vcmp.ne.s32.totalorder %v1007, 3
    %v1023 = vrot.slane %v988, 1
    %v1024 = vrot.slane %v990, 1
    %vm1027 = vcmask 1046528
    %v1028 = vsel %vm1027, %v1023, %v1023
    %v1029 = vsel %vm1027, %v1024, %v1024
    %v1030 = vsel %vm1020, %v1028, 0.0
    %v1031 = vsel %vm1020, %v1029, 0.0
    %v1032 = vadd.f32 %v865, %v1018
    %v1033 = vadd.f32 %v867, %v1019
    %v1034 = vadd.f32 %v906, %v1030
    %v1035 = vadd.f32 %v908, %v1031
    %v1036 = vld [vmem:[#allocation4] sm:$0xf]
    %v1037 = vld [vmem:[#allocation6] sm:$0xf]
    %v1038 = vrot.slane %v1032, 4
    %v1039 = vadd.f32 %v1032, %v1038
    %v1040 = vrot.slane %v1039, 2
    %v1041 = vadd.f32 %v1039, %v1040
    %v1042 = vrot.slane %v1041, 1
    %v1043 = vadd.f32 %v1041, %v1042
    %v1044 = vrot.slane %v1033, 4
    %v1045 = vadd.f32 %v1033, %v1044
    %v1046 = vrot.slane %v1045, 2
    %v1047 = vadd.f32 %v1045, %v1046
    %v1048 = vrot.slane %v1047, 1
    %v1049 = vadd.f32 %v1047, %v1048
    %v1050 = vrot.slane %v1034, 4
    %v1051 = vadd.f32 %v1034, %v1050
    %v1052 = vrot.slane %v1051, 2
    %v1053 = vadd.f32 %v1051, %v1052
    %v1054 = vrot.slane %v1053, 1
    %v1055 = vadd.f32 %v1053, %v1054
    %v1056 = vrot.slane %v1035, 4
    %v1057 = vadd.f32 %v1035, %v1056
    %v1058 = vrot.slane %v1057, 2
    %v1059 = vadd.f32 %v1057, %v1058
    %v1060 = vrot.slane %v1059, 1
    %v1061 = vadd.f32 %v1059, %v1060
    %v1062 = vmul.f32 %v1032, %v1032
    %v1063 = vmul.f32 %v1033, %v1033
    %v1064 = vmul.f32 %v1034, %v1034
    %v1065 = vmul.f32 %v1035, %v1035
    %v1066 = vrot.slane %v1062, 4
    %v1067 = vadd.f32 %v1062, %v1066
    %v1068 = vrot.slane %v1067, 2
    %v1069 = vadd.f32 %v1067, %v1068
    %v1070 = vrot.slane %v1069, 1
    %v1071 = vadd.f32 %v1069, %v1070
    %v1072 = vrot.slane %v1063, 4
    %v1073 = vadd.f32 %v1063, %v1072
    %v1074 = vrot.slane %v1073, 2
    %v1075 = vadd.f32 %v1073, %v1074
    %v1076 = vrot.slane %v1075, 1
    %v1077 = vadd.f32 %v1075, %v1076
    %v1078 = vrot.slane %v1064, 4
    %v1079 = vadd.f32 %v1064, %v1078
    %v1080 = vrot.slane %v1079, 2
    %v1081 = vadd.f32 %v1079, %v1080
    %v1082 = vrot.slane %v1081, 1
    %v1083 = vadd.f32 %v1081, %v1082
    %v1084 = vrot.slane %v1065, 4
    %v1085 = vadd.f32 %v1065, %v1084
    %v1086 = vrot.slane %v1085, 2
    %v1087 = vadd.f32 %v1085, %v1086
    %v1088 = vrot.slane %v1087, 1
    %v1089 = vadd.f32 %v1087, %v1088
    %v1090 = vsel %vm1015, %v1043, %v1071
    %v1091 = vsel %vm1015, %v1049, %v1077
    %v1092 = vsel %vm1015, %v1055, %v1083
    %v1093 = vsel %vm1015, %v1061, %v1089
    %v1094 = vadd.f32 %v1090, %v1092
    %v1095 = vadd.f32 %v1091, %v1093
    %v1096 = vadd.f32 %v1094, %v1095
    %1097 = vrot.lane.b32.xlu0 %v1096, 64
    %v1098 = vpop.permute.xlu0 %1097
    %v1099 = vlaneseq
    %v1100 = vand.u32 %v1099, 127
    %v1101 = vadd.f32 %v1096, %v1098
    %1102 = vrot.lane.b32.xlu0 %v1101, 32
    %v1103 = vpop.permute.xlu0 %1102
    %v1104 = vadd.f32 %v1101, %v1103
    %v1105 = vmul.f32 %v1104, 0.0078125
    %v1106 = vmul.f32 %v1105, %v1105
    %v1108 = vrot.slane %v1106, 7
    %v1110 = vsub.f32 %v1105, %v1108
    %v1111 = vadd.f32 %v1110, 1e-05
    %v1112 = vrsqrt.pop %v1111
    %v1114 = vcombine.low %v1112, %v1112
    %v1116 = vunpack.c.l.s4 1966171168
    %v1117 = vunpack.c.0.s8 %v1116
    %v1118 = vlaneseq
    %v1119 = vshrl.u32 %v1118, 7
    %v1120 = vsub.s32 %v1117, %v1119
    %v1121 = vrot.slane %v1114, %v1120
    %v1122 = vcombine.high %v1121, %v1121
    %v1124 = vunpack.c.l.s4 1966171168
    %v1125 = vunpack.c.0.s8 %v1124
    %v1126 = vlaneseq
    %v1127 = vshrl.u32 %v1126, 7
    %v1128 = vsub.s32 %v1125, %v1127
    %v1129 = vrot.slane %v1122, %v1128
    %v1131 = vmul.f32 %v1036, %v1129
    %v1133 = vlaneseq
    %v1134 = vshrl.u32 %v1133, 7
    %v1135 = vsub.s32 0, %v1134
    %v1136 = vrot.slane %v1131, %v1135
    %v1137 = vlaneseq
    %v1138 = vshrl.u32 %v1137, 7
    %v1139 = vsub.s32 1, %v1138
    %v1140 = vrot.slane %v1131, %v1139
    %v1141 = vlaneseq
    %v1142 = vshrl.u32 %v1141, 7
    %v1143 = vsub.s32 2, %v1142
    %v1144 = vrot.slane %v1131, %v1143
    %v1145 = vlaneseq
    %v1146 = vshrl.u32 %v1145, 7
    %v1147 = vsub.s32 3, %v1146
    %v1148 = vrot.slane %v1131, %v1147
    %v1153 = vmul.f32 %v1105, %v1136
    %v1154 = vmul.f32 %v1105, %v1140
    %v1155 = vmul.f32 %v1105, %v1144
    %v1156 = vmul.f32 %v1105, %v1148
    %v1161 = vcombine.low %v1153, %v1154
    %v1162 = vcombine.low %v1155, %v1156
    %v1164 = vunpack.c.l.s4 1966171168
    %v1165 = vunpack.c.0.s8 %v1164
    %v1166 = vlaneseq
    %v1167 = vshrl.u32 %v1166, 7
    %v1168 = vsub.s32 %v1165, %v1167
    %v1169 = vrot.slane %v1161, %v1168
    %v1171 = vunpack.c.l.s4 1966171168
    %v1172 = vunpack.c.0.s8 %v1171
    %v1173 = vlaneseq
    %v1174 = vshrl.u32 %v1173, 7
    %v1175 = vsub.s32 %v1172, %v1174
    %v1176 = vrot.slane %v1162, %v1175
    %v1177 = vcombine.low %v1169, %v1176
    %v1179 = vunpack.c.l.s4 1966171168
    %v1180 = vunpack.c.0.s8 %v1179
    %v1181 = vlaneseq
    %v1182 = vshrl.u32 %v1181, 7
    %v1183 = vsub.s32 %v1180, %v1182
    %v1184 = vrot.slane %v1177, %v1183
    %v1186 = vsub.f32 %v1037, %v1184
    %v1187 = vmul.f32 %v1032, %v1136
    %v1188 = vmul.f32 %v1033, %v1140
    %v1189 = vmul.f32 %v1034, %v1144
    %v1190 = vmul.f32 %v1035, %v1148
    %v1192 = vlaneseq
    %v1193 = vshrl.u32 %v1192, 7
    %v1194 = vsub.s32 0, %v1193
    %v1195 = vrot.slane %v1186, %v1194
    %v1196 = vlaneseq
    %v1197 = vshrl.u32 %v1196, 7
    %v1198 = vsub.s32 1, %v1197
    %v1199 = vrot.slane %v1186, %v1198
    %v1200 = vlaneseq
    %v1201 = vshrl.u32 %v1200, 7
    %v1202 = vsub.s32 2, %v1201
    %v1203 = vrot.slane %v1186, %v1202
    %v1204 = vlaneseq
    %v1205 = vshrl.u32 %v1204, 7
    %v1206 = vsub.s32 3, %v1205
    %v1207 = vrot.slane %v1186, %v1206
    %v1212 = vadd.f32 %v1187, %v1195
    %v1213 = vadd.f32 %v1188, %v1199
    %v1214 = vadd.f32 %v1189, %v1203
    %v1215 = vadd.f32 %v1190, %v1207
    %v1216 = vmax.f32 %v1212, 0.0
    %v1217 = vmax.f32 %v1213, 0.0
    %v1218 = vmax.f32 %v1214, 0.0
    %v1219 = vmax.f32 %v1215, 0.0
    %v1220 = vpack.c.bf16 %v1216, %v1216
    %v1221 = vpack.c.bf16 %v1217, %v1217
    %v1222 = vpack.c.bf16 %v1218, %v1218
    %v1223 = vpack.c.bf16 %v1219, %v1219
    %v1228 = vunpack.c.l.b16 %v1220
    %v1229 = vunpack.c.l.b16 %v1221
    %v1230 = vunpack.c.l.b16 %v1222
    %v1231 = vunpack.c.l.b16 %v1223
    %v1232 = vpack.c.b16 %v1229, %v1228
    %v1233 = vpack.c.b16 %v1231, %v1230
    %1236 = vst [vmem:[%s4] sm:$0xff] %v1232
    %1237 = vst [vmem:[%s4 + $0x8] sm:$0xff] %v1233
    // Predicated region
    $region30: #{_lambda_.6} parent=1 // pred_check
      _
    $region31: #{_lambda_.6} parent=1 // pred_check_branch
      %1239 = sbr.rel (0) target = $region33
    $region32: #{_lambda_.6} parent=1 // pred_region
      _
    $region33: #{_lambda_.6} parent=1 // pred_fallthru
      _
    // Predicated region
    $region34: #{_lambda_.6} parent=1 // pred_check
      _
    $region35: #{_lambda_.6} parent=1 // pred_check_branch
      %1241 = sbr.rel (0) target = $region37
    $region36: #{_lambda_.6} parent=1 // pred_region
      _
    $region37: #{_lambda_.6} parent=1 // pred_fallthru
      _
    %1242 = vsyncpa [#allocation3], 1
    %1243 = vsyncpa [#allocation5], 1

// kernel: _lambda_.7
$region0: #{_lambda_.7}
  #allocation0 [shape = 'u32[]', space=smem, size = 0x4, offset = 0x4, fixed_abs, tag = 'smem constant byte address 0x4 - core index']
  #allocation1 [shape = 'u32[144,128]{1,0:T(1,128)}', space=vmem, size = 0x12000, scoped, tag = 'internal scratch']
  %s0 = inlined_call_operand.vmem [shape: bf16[16,256], index: 0, kind: input, shape index: {}]
  %s1 = inlined_call_operand.hbm [shape: bf16[256,1024], index: 1, kind: input, shape index: {}]
  %s2 = inlined_call_operand.hbm [shape: f32[1,512], index: 2, kind: input, shape index: {}]
  %s3 = inlined_call_operand.hbm [shape: f32[1,512], index: 3, kind: input, shape index: {}]
  %s4 = inlined_call_operand.vmem [shape: bf16[16,512], index: 4, kind: output, shape index: {}]
  %s5 = sld [smem:[#allocation0]]
  $region38: #{_lambda_.7} parent=0
    _
  %s7 = ssub.s32 1, %s5
  %s8 = scalar_select 0, %s7, %s5
  $region1: #{_lambda_.7} parent=0
    #allocation2 [shape = 'u8[524288]{0}', space=vmem, size = 0x80000, scoped, tag = 'input window, operand 1, single buffered']
    #allocation3 [shape = 's32[1]{0}', space=sflag, size = 0x4, scoped, tag = 'scoped memory for _lambda_.7']
    #allocation4 [shape = 'u8[2048]{0}', space=vmem, size = 0x800, scoped, tag = 'input window, operand 2, single buffered']
    #allocation5 [shape = 's32[1]{0}', space=sflag, size = 0x4, scoped, tag = 'scoped memory for _lambda_.7']
    #allocation6 [shape = 'u8[2048]{0}', space=vmem, size = 0x800, scoped, tag = 'input window, operand 3, single buffered']
    %9 = vsyncpa [#allocation3], 0
    %10 = vsyncpa [#allocation5], 0
    // Predicated region
    $region2: #{_lambda_.7} parent=1 // pred_check
      _
    $region3: #{_lambda_.7} parent=1 // pred_check_branch
      %12 = sbr.rel (0) target = $region5
    $region4: #{_lambda_.7} parent=1 // pred_region
      _
    $region5: #{_lambda_.7} parent=1 // pred_fallthru
      _
    // Predicated region
    $region6: #{_lambda_.7} parent=1 // pred_check
      _
    $region7: #{_lambda_.7} parent=1 // pred_check_branch
      %14 = sbr.rel (0) target = $region9
    $region8: #{_lambda_.7} parent=1 // pred_region
      %s16 = ssub.s32 16384, 16384
      %17 = vsyncadd [#allocation3], %s16
      %s18 = sshll.u32 [#allocation2], 4
      %s19 = int_to_ptr.vmem [resolvable:$true] %s18
      %24 = dma.hbm_to_vmem [thread:$0]  %s1, 16384, %s19, [#allocation3], 512, 512, 32
    $region9: #{_lambda_.7} parent=1 // pred_fallthru
      _
    // Predicated region
    $region10: #{_lambda_.7} parent=1 // pred_check
      _
    $region11: #{_lambda_.7} parent=1 // pred_check_branch
      %26 = sbr.rel (0) target = $region13
    $region12: #{_lambda_.7} parent=1 // pred_region
      %s28 = ssub.s32 64, 64
      %29 = vsyncadd [#allocation5], %s28
      %s31 = sshll.u32 [#allocation4], 4
      %s32 = int_to_ptr.vmem [resolvable:$true] %s31
      %34 = dma.hbm_to_vmem [thread:$0]  %s2, 64, %s32, [#allocation5]
    $region13: #{_lambda_.7} parent=1 // pred_fallthru
      _
    // Predicated region
    $region14: #{_lambda_.7} parent=1 // pred_check
      _
    $region15: #{_lambda_.7} parent=1 // pred_check_branch
      %36 = sbr.rel (0) target = $region17
    $region16: #{_lambda_.7} parent=1 // pred_region
      %s38 = ssub.s32 64, 64
      %39 = vsyncadd [#allocation5], %s38
      %s41 = sshll.u32 [#allocation6], 4
      %s42 = int_to_ptr.vmem [resolvable:$true] %s41
      %44 = dma.hbm_to_vmem [thread:$0]  %s3, 64, %s42, [#allocation5]
    $region17: #{_lambda_.7} parent=1 // pred_fallthru
      _
    // Predicated region
    $region18: #{_lambda_.7} parent=1 // pred_check
      _
    $region19: #{_lambda_.7} parent=1 // pred_check_branch
      %46 = sbr.rel (0) target = $region21
    $region20: #{_lambda_.7} parent=1 // pred_region
      %47 = dma.done [#allocation3], 16384
    $region21: #{_lambda_.7} parent=1 // pred_fallthru
      _
    // Predicated region
    $region22: #{_lambda_.7} parent=1 // pred_check
      _
    $region23: #{_lambda_.7} parent=1 // pred_check_branch
      %49 = sbr.rel (0) target = $region25
    $region24: #{_lambda_.7} parent=1 // pred_region
      %50 = dma.done [#allocation5], 64
    $region25: #{_lambda_.7} parent=1 // pred_fallthru
      _
    // Predicated region
    $region26: #{_lambda_.7} parent=1 // pred_check
      _
    $region27: #{_lambda_.7} parent=1 // pred_check_branch
      %52 = sbr.rel (0) target = $region29
    $region28: #{_lambda_.7} parent=1 // pred_region
      %53 = dma.done [#allocation5], 64
    $region29: #{_lambda_.7} parent=1 // pred_fallthru
      _
    %v54 = vld [vmem:[%s0] sm:$0xff]
    %v55 = vld [vmem:[%s0 + $0x8] sm:$0xff]
    %v56 = vld [vmem:[#allocation2] sm:$0xff]
    %v57 = vld [vmem:[#allocation2 + $0x8] sm:$0xff]
    %v58 = vld [vmem:[#allocation2 + $0x10] sm:$0xff]
    %v59 = vld [vmem:[#allocation2 + $0x18] sm:$0xff]
    %v60 = vld [vmem:[#allocation2 + $0x20] sm:$0xff]
    %v61 = vld [vmem:[#allocation2 + $0x28] sm:$0xff]
    %v62 = vld [vmem:[#allocation2 + $0x30] sm:$0xff]
    %v63 = vld [vmem:[#allocation2 + $0x38] sm:$0xff]
    %v64 = vld [vmem:[#allocation2 + $0x40] sm:$0xff]
    %v65 = vld [vmem:[#allocation2 + $0x48] sm:$0xff]
    %v66 = vld [vmem:[#allocation2 + $0x50] sm:$0xff]
    %v67 = vld [vmem:[#allocation2 + $0x58] sm:$0xff]
    %v68 = vld [vmem:[#allocation2 + $0x60] sm:$0xff]
    %v69 = vld [vmem:[#allocation2 + $0x68] sm:$0xff]
    %v70 = vld [vmem:[#allocation2 + $0x70] sm:$0xff]
    %v71 = vld [vmem:[#allocation2 + $0x78] sm:$0xff]
    %v72 = vld [vmem:[#allocation2 + $0x80] sm:$0xff]
    %v73 = vld [vmem:[#allocation2 + $0x88] sm:$0xff]
    %v74 = vld [vmem:[#allocation2 + $0x90] sm:$0xff]
    %v75 = vld [vmem:[#allocation2 + $0x98] sm:$0xff]
    %v76 = vld [vmem:[#allocation2 + $0xa0] sm:$0xff]
    %v77 = vld [vmem:[#allocation2 + $0xa8] sm:$0xff]
    %v78 = vld [vmem:[#allocation2 + $0xb0] sm:$0xff]
    %v79 = vld [vmem:[#allocation2 + $0xb8] sm:$0xff]
    %v80 = vld [vmem:[#allocation2 + $0xc0] sm:$0xff]
    %v81 = vld [vmem:[#allocation2 + $0xc8] sm:$0xff]
    %v82 = vld [vmem:[#allocation2 + $0xd0] sm:$0xff]
    %v83 = vld [vmem:[#allocation2 + $0xd8] sm:$0xff]
    %v84 = vld [vmem:[#allocation2 + $0xe0] sm:$0xff]
    %v85 = vld [vmem:[#allocation2 + $0xe8] sm:$0xff]
    %v86 = vld [vmem:[#allocation2 + $0xf0] sm:$0xff]
    %v87 = vld [vmem:[#allocation2 + $0xf8] sm:$0xff]
    %v88 = vld [vmem:[#allocation2 + $0x100] sm:$0xff]
    %v89 = vld [vmem:[#allocation2 + $0x108] sm:$0xff]
    %v90 = vld [vmem:[#allocation2 + $0x110] sm:$0xff]
    %v91 = vld [vmem:[#allocation2 + $0x118] sm:$0xff]
    %v92 = vld [vmem:[#allocation2 + $0x120] sm:$0xff]
    %v93 = vld [vmem:[#allocation2 + $0x128] sm:$0xff]
    %v94 = vld [vmem:[#allocation2 + $0x130] sm:$0xff]
    %v95 = vld [vmem:[#allocation2 + $0x138] sm:$0xff]
    %v96 = vld [vmem:[#allocation2 + $0x140] sm:$0xff]
    %v97 = vld [vmem:[#allocation2 + $0x148] sm:$0xff]
    %v98 = vld [vmem:[#allocation2 + $0x150] sm:$0xff]
    %v99 = vld [vmem:[#allocation2 + $0x158] sm:$0xff]
    %v100 = vld [vmem:[#allocation2 + $0x160] sm:$0xff]
    %v101 = vld [vmem:[#allocation2 + $0x168] sm:$0xff]
    %v102 = vld [vmem:[#allocation2 + $0x170] sm:$0xff]
    %v103 = vld [vmem:[#allocation2 + $0x178] sm:$0xff]
    %v104 = vld [vmem:[#allocation2 + $0x180] sm:$0xff]
    %v105 = vld [vmem:[#allocation2 + $0x188] sm:$0xff]
    %v106 = vld [vmem:[#allocation2 + $0x190] sm:$0xff]
    %v107 = vld [vmem:[#allocation2 + $0x198] sm:$0xff]
    %v108 = vld [vmem:[#allocation2 + $0x1a0] sm:$0xff]
    %v109 = vld [vmem:[#allocation2 + $0x1a8] sm:$0xff]
    %v110 = vld [vmem:[#allocation2 + $0x1b0] sm:$0xff]
    %v111 = vld [vmem:[#allocation2 + $0x1b8] sm:$0xff]
    %v112 = vld [vmem:[#allocation2 + $0x1c0] sm:$0xff]
    %v113 = vld [vmem:[#allocation2 + $0x1c8] sm:$0xff]
    %v114 = vld [vmem:[#allocation2 + $0x1d0] sm:$0xff]
    %v115 = vld [vmem:[#allocation2 + $0x1d8] sm:$0xff]
    %v116 = vld [vmem:[#allocation2 + $0x1e0] sm:$0xff]
    %v117 = vld [vmem:[#allocation2 + $0x1e8] sm:$0xff]
    %v118 = vld [vmem:[#allocation2 + $0x1f0] sm:$0xff]
    %v119 = vld [vmem:[#allocation2 + $0x1f8] sm:$0xff]
    %v120 = vld [vmem:[#allocation2 + $0x200] sm:$0xff]
    %v121 = vld [vmem:[#allocation2 + $0x208] sm:$0xff]
    %v122 = vld [vmem:[#allocation2 + $0x210] sm:$0xff]
    %v123 = vld [vmem:[#allocation2 + $0x218] sm:$0xff]
    %v124 = vld [vmem:[#allocation2 + $0x220] sm:$0xff]
    %v125 = vld [vmem:[#allocation2 + $0x228] sm:$0xff]
    %v126 = vld [vmem:[#allocation2 + $0x230] sm:$0xff]
    %v127 = vld [vmem:[#allocation2 + $0x238] sm:$0xff]
    %v128 = vld [vmem:[#allocation2 + $0x240] sm:$0xff]
    %v129 = vld [vmem:[#allocation2 + $0x248] sm:$0xff]
    %v130 = vld [vmem:[#allocation2 + $0x250] sm:$0xff]
    %v131 = vld [vmem:[#allocation2 + $0x258] sm:$0xff]
    %v132 = vld [vmem:[#allocation2 + $0x260] sm:$0xff]
    %v133 = vld [vmem:[#allocation2 + $0x268] sm:$0xff]
    %v134 = vld [vmem:[#allocation2 + $0x270] sm:$0xff]
    %v135 = vld [vmem:[#allocation2 + $0x278] sm:$0xff]
    %v136 = vld [vmem:[#allocation2 + $0x280] sm:$0xff]
    %v137 = vld [vmem:[#allocation2 + $0x288] sm:$0xff]
    %v138 = vld [vmem:[#allocation2 + $0x290] sm:$0xff]
    %v139 = vld [vmem:[#allocation2 + $0x298] sm:$0xff]
    %v140 = vld [vmem:[#allocation2 + $0x2a0] sm:$0xff]
    %v141 = vld [vmem:[#allocation2 + $0x2a8] sm:$0xff]
    %v142 = vld [vmem:[#allocation2 + $0x2b0] sm:$0xff]
    %v143 = vld [vmem:[#allocation2 + $0x2b8] sm:$0xff]
    %v144 = vld [vmem:[#allocation2 + $0x2c0] sm:$0xff]
    %v145 = vld [vmem:[#allocation2 + $0x2c8] sm:$0xff]
    %v146 = vld [vmem:[#allocation2 + $0x2d0] sm:$0xff]
    %v147 = vld [vmem:[#allocation2 + $0x2d8] sm:$0xff]
    %v148 = vld [vmem:[#allocation2 + $0x2e0] sm:$0xff]
    %v149 = vld [vmem:[#allocation2 + $0x2e8] sm:$0xff]
    %v150 = vld [vmem:[#allocation2 + $0x2f0] sm:$0xff]
    %v151 = vld [vmem:[#allocation2 + $0x2f8] sm:$0xff]
    %v152 = vld [vmem:[#allocation2 + $0x300] sm:$0xff]
    %v153 = vld [vmem:[#allocation2 + $0x308] sm:$0xff]
    %v154 = vld [vmem:[#allocation2 + $0x310] sm:$0xff]
    %v155 = vld [vmem:[#allocation2 + $0x318] sm:$0xff]
    %v156 = vld [vmem:[#allocation2 + $0x320] sm:$0xff]
    %v157 = vld [vmem:[#allocation2 + $0x328] sm:$0xff]
    %v158 = vld [vmem:[#allocation2 + $0x330] sm:$0xff]
    %v159 = vld [vmem:[#allocation2 + $0x338] sm:$0xff]
    %v160 = vld [vmem:[#allocation2 + $0x340] sm:$0xff]
    %v161 = vld [vmem:[#allocation2 + $0x348] sm:$0xff]
    %v162 = vld [vmem:[#allocation2 + $0x350] sm:$0xff]
    %v163 = vld [vmem:[#allocation2 + $0x358] sm:$0xff]
    %v164 = vld [vmem:[#allocation2 + $0x360] sm:$0xff]
    %v165 = vld [vmem:[#allocation2 + $0x368] sm:$0xff]
    %v166 = vld [vmem:[#allocation2 + $0x370] sm:$0xff]
    %v167 = vld [vmem:[#allocation2 + $0x378] sm:$0xff]
    %v168 = vld [vmem:[#allocation2 + $0x380] sm:$0xff]
    %v169 = vld [vmem:[#allocation2 + $0x388] sm:$0xff]
    %v170 = vld [vmem:[#allocation2 + $0x390] sm:$0xff]
    %v171 = vld [vmem:[#allocation2 + $0x398] sm:$0xff]
    %v172 = vld [vmem:[#allocation2 + $0x3a0] sm:$0xff]
    %v173 = vld [vmem:[#allocation2 + $0x3a8] sm:$0xff]
    %v174 = vld [vmem:[#allocation2 + $0x3b0] sm:$0xff]
    %v175 = vld [vmem:[#allocation2 + $0x3b8] sm:$0xff]
    %v176 = vld [vmem:[#allocation2 + $0x3c0] sm:$0xff]
    %v177 = vld [vmem:[#allocation2 + $0x3c8] sm:$0xff]
    %v178 = vld [vmem:[#allocation2 + $0x3d0] sm:$0xff]
    %v179 = vld [vmem:[#allocation2 + $0x3d8] sm:$0xff]
    %v180 = vld [vmem:[#allocation2 + $0x3e0] sm:$0xff]
    %v181 = vld [vmem:[#allocation2 + $0x3e8] sm:$0xff]
    %v182 = vld [vmem:[#allocation2 + $0x3f0] sm:$0xff]
    %v183 = vld [vmem:[#allocation2 + $0x3f8] sm:$0xff]
    %v186 = vunpack.c.l.b16 %v54
    %v187 = vunpack.c.h.b16 %v54
    %v188 = vunpack.c.l.b16 %v55
    %v189 = vunpack.c.h.b16 %v55
    %v190 = vpack.c.b16 %v188, %v186
    %v191 = vpack.c.b16 %v189, %v187
    %v322 = vunpack.c.l.b16 %v56
    %v323 = vunpack.c.h.b16 %v56
    %v324 = vunpack.c.l.b16 %v57
    %v325 = vunpack.c.h.b16 %v57
    %v326 = vunpack.c.l.b16 %v58
    %v327 = vunpack.c.h.b16 %v58
    %v328 = vunpack.c.l.b16 %v59
    %v329 = vunpack.c.h.b16 %v59
    %v330 = vunpack.c.l.b16 %v60
    %v331 = vunpack.c.h.b16 %v60
    %v332 = vunpack.c.l.b16 %v61
    %v333 = vunpack.c.h.b16 %v61
    %v334 = vunpack.c.l.b16 %v62
    %v335 = vunpack.c.h.b16 %v62
    %v336 = vunpack.c.l.b16 %v63
    %v337 = vunpack.c.h.b16 %v63
    %v338 = vunpack.c.l.b16 %v64
    %v339 = vunpack.c.h.b16 %v64
    %v340 = vunpack.c.l.b16 %v65
    %v341 = vunpack.c.h.b16 %v65
    %v342 = vunpack.c.l.b16 %v66
    %v343 = vunpack.c.h.b16 %v66
    %v344 = vunpack.c.l.b16 %v67
    %v345 = vunpack.c.h.b16 %v67
    %v346 = vunpack.c.l.b16 %v68
    %v347 = vunpack.c.h.b16 %v68
    %v348 = vunpack.c.l.b16 %v69
    %v349 = vunpack.c.h.b16 %v69
    %v350 = vunpack.c.l.b16 %v70
    %v351 = vunpack.c.h.b16 %v70
    %v352 = vunpack.c.l.b16 %v71
    %v353 = vunpack.c.h.b16 %v71
    %v354 = vunpack.c.l.b16 %v72
    %v355 = vunpack.c.h.b16 %v72
    %v356 = vunpack.c.l.b16 %v73
    %v357 = vunpack.c.h.b16 %v73
    %v358 = vunpack.c.l.b16 %v74
    %v359 = vunpack.c.h.b16 %v74
    %v360 = vunpack.c.l.b16 %v75
    %v361 = vunpack.c.h.b16 %v75
    %v362 = vunpack.c.l.b16 %v76
    %v363 = vunpack.c.h.b16 %v76
    %v364 = vunpack.c.l.b16 %v77
    %v365 = vunpack.c.h.b16 %v77
    %v366 = vunpack.c.l.b16 %v78
    %v367 = vunpack.c.h.b16 %v78
    %v368 = vunpack.c.l.b16 %v79
    %v369 = vunpack.c.h.b16 %v79
    %v370 = vunpack.c.l.b16 %v80
    %v371 = vunpack.c.h.b16 %v80
    %v372 = vunpack.c.l.b16 %v81
    %v373 = vunpack.c.h.b16 %v81
    %v374 = vunpack.c.l.b16 %v82
    %v375 = vunpack.c.h.b16 %v82
    %v376 = vunpack.c.l.b16 %v83
    %v377 = vunpack.c.h.b16 %v83
    %v378 = vunpack.c.l.b16 %v84
    %v379 = vunpack.c.h.b16 %v84
    %v380 = vunpack.c.l.b16 %v85
    %v381 = vunpack.c.h.b16 %v85
    %v382 = vunpack.c.l.b16 %v86
    %v383 = vunpack.c.h.b16 %v86
    %v384 = vunpack.c.l.b16 %v87
    %v385 = vunpack.c.h.b16 %v87
    %v386 = vunpack.c.l.b16 %v88
    %v387 = vunpack.c.h.b16 %v88
    %v388 = vunpack.c.l.b16 %v89
    %v389 = vunpack.c.h.b16 %v89
    %v390 = vunpack.c.l.b16 %v90
    %v391 = vunpack.c.h.b16 %v90
    %v392 = vunpack.c.l.b16 %v91
    %v393 = vunpack.c.h.b16 %v91
    %v394 = vunpack.c.l.b16 %v92
    %v395 = vunpack.c.h.b16 %v92
    %v396 = vunpack.c.l.b16 %v93
    %v397 = vunpack.c.h.b16 %v93
    %v398 = vunpack.c.l.b16 %v94
    %v399 = vunpack.c.h.b16 %v94
    %v400 = vunpack.c.l.b16 %v95
    %v401 = vunpack.c.h.b16 %v95
    %v402 = vunpack.c.l.b16 %v96
    %v403 = vunpack.c.h.b16 %v96
    %v404 = vunpack.c.l.b16 %v97
    %v405 = vunpack.c.h.b16 %v97
    %v406 = vunpack.c.l.b16 %v98
    %v407 = vunpack.c.h.b16 %v98
    %v408 = vunpack.c.l.b16 %v99
    %v409 = vunpack.c.h.b16 %v99
    %v410 = vunpack.c.l.b16 %v100
    %v411 = vunpack.c.h.b16 %v100
    %v412 = vunpack.c.l.b16 %v101
    %v413 = vunpack.c.h.b16 %v101
    %v414 = vunpack.c.l.b16 %v102
    %v415 = vunpack.c.h.b16 %v102
    %v416 = vunpack.c.l.b16 %v103
    %v417 = vunpack.c.h.b16 %v103
    %v418 = vunpack.c.l.b16 %v104
    %v419 = vunpack.c.h.b16 %v104
    %v420 = vunpack.c.l.b16 %v105
    %v421 = vunpack.c.h.b16 %v105
    %v422 = vunpack.c.l.b16 %v106
    %v423 = vunpack.c.h.b16 %v106
    %v424 = vunpack.c.l.b16 %v107
    %v425 = vunpack.c.h.b16 %v107
    %v426 = vunpack.c.l.b16 %v108
    %v427 = vunpack.c.h.b16 %v108
    %v428 = vunpack.c.l.b16 %v109
    %v429 = vunpack.c.h.b16 %v109
    %v430 = vunpack.c.l.b16 %v110
    %v431 = vunpack.c.h.b16 %v110
    %v432 = vunpack.c.l.b16 %v111
    %v433 = vunpack.c.h.b16 %v111
    %v434 = vunpack.c.l.b16 %v112
    %v435 = vunpack.c.h.b16 %v112
    %v436 = vunpack.c.l.b16 %v113
    %v437 = vunpack.c.h.b16 %v113
    %v438 = vunpack.c.l.b16 %v114
    %v439 = vunpack.c.h.b16 %v114
    %v440 = vunpack.c.l.b16 %v115
    %v441 = vunpack.c.h.b16 %v115
    %v442 = vunpack.c.l.b16 %v116
    %v443 = vunpack.c.h.b16 %v116
    %v444 = vunpack.c.l.b16 %v117
    %v445 = vunpack.c.h.b16 %v117
    %v446 = vunpack.c.l.b16 %v118
    %v447 = vunpack.c.h.b16 %v118
    %v448 = vunpack.c.l.b16 %v119
    %v449 = vunpack.c.h.b16 %v119
    %v450 = vunpack.c.l.b16 %v120
    %v451 = vunpack.c.h.b16 %v120
    %v452 = vunpack.c.l.b16 %v121
    %v453 = vunpack.c.h.b16 %v121
    %v454 = vunpack.c.l.b16 %v122
    %v455 = vunpack.c.h.b16 %v122
    %v456 = vunpack.c.l.b16 %v123
    %v457 = vunpack.c.h.b16 %v123
    %v458 = vunpack.c.l.b16 %v124
    %v459 = vunpack.c.h.b16 %v124
    %v460 = vunpack.c.l.b16 %v125
    %v461 = vunpack.c.h.b16 %v125
    %v462 = vunpack.c.l.b16 %v126
    %v463 = vunpack.c.h.b16 %v126
    %v464 = vunpack.c.l.b16 %v127
    %v465 = vunpack.c.h.b16 %v127
    %v466 = vunpack.c.l.b16 %v128
    %v467 = vunpack.c.h.b16 %v128
    %v468 = vunpack.c.l.b16 %v129
    %v469 = vunpack.c.h.b16 %v129
    %v470 = vunpack.c.l.b16 %v130
    %v471 = vunpack.c.h.b16 %v130
    %v472 = vunpack.c.l.b16 %v131
    %v473 = vunpack.c.h.b16 %v131
    %v474 = vunpack.c.l.b16 %v132
    %v475 = vunpack.c.h.b16 %v132
    %v476 = vunpack.c.l.b16 %v133
    %v477 = vunpack.c.h.b16 %v133
    %v478 = vunpack.c.l.b16 %v134
    %v479 = vunpack.c.h.b16 %v134
    %v480 = vunpack.c.l.b16 %v135
    %v481 = vunpack.c.h.b16 %v135
    %v482 = vunpack.c.l.b16 %v136
    %v483 = vunpack.c.h.b16 %v136
    %v484 = vunpack.c.l.b16 %v137
    %v485 = vunpack.c.h.b16 %v137
    %v486 = vunpack.c.l.b16 %v138
    %v487 = vunpack.c.h.b16 %v138
    %v488 = vunpack.c.l.b16 %v139
    %v489 = vunpack.c.h.b16 %v139
    %v490 = vunpack.c.l.b16 %v140
    %v491 = vunpack.c.h.b16 %v140
    %v492 = vunpack.c.l.b16 %v141
    %v493 = vunpack.c.h.b16 %v141
    %v494 = vunpack.c.l.b16 %v142
    %v495 = vunpack.c.h.b16 %v142
    %v496 = vunpack.c.l.b16 %v143
    %v497 = vunpack.c.h.b16 %v143
    %v498 = vunpack.c.l.b16 %v144
    %v499 = vunpack.c.h.b16 %v144
    %v500 = vunpack.c.l.b16 %v145
    %v501 = vunpack.c.h.b16 %v145
    %v502 = vunpack.c.l.b16 %v146
    %v503 = vunpack.c.h.b16 %v146
    %v504 = vunpack.c.l.b16 %v147
    %v505 = vunpack.c.h.b16 %v147
    %v506 = vunpack.c.l.b16 %v148
    %v507 = vunpack.c.h.b16 %v148
    %v508 = vunpack.c.l.b16 %v149
    %v509 = vunpack.c.h.b16 %v149
    %v510 = vunpack.c.l.b16 %v150
    %v511 = vunpack.c.h.b16 %v150
    %v512 = vunpack.c.l.b16 %v151
    %v513 = vunpack.c.h.b16 %v151
    %v514 = vunpack.c.l.b16 %v152
    %v515 = vunpack.c.h.b16 %v152
    %v516 = vunpack.c.l.b16 %v153
    %v517 = vunpack.c.h.b16 %v153
    %v518 = vunpack.c.l.b16 %v154
    %v519 = vunpack.c.h.b16 %v154
    %v520 = vunpack.c.l.b16 %v155
    %v521 = vunpack.c.h.b16 %v155
    %v522 = vunpack.c.l.b16 %v156
    %v523 = vunpack.c.h.b16 %v156
    %v524 = vunpack.c.l.b16 %v157
    %v525 = vunpack.c.h.b16 %v157
    %v526 = vunpack.c.l.b16 %v158
    %v527 = vunpack.c.h.b16 %v158
    %v528 = vunpack.c.l.b16 %v159
    %v529 = vunpack.c.h.b16 %v159
    %v530 = vunpack.c.l.b16 %v160
    %v531 = vunpack.c.h.b16 %v160
    %v532 = vunpack.c.l.b16 %v161
    %v533 = vunpack.c.h.b16 %v161
    %v534 = vunpack.c.l.b16 %v162
    %v535 = vunpack.c.h.b16 %v162
    %v536 = vunpack.c.l.b16 %v163
    %v537 = vunpack.c.h.b16 %v163
    %v538 = vunpack.c.l.b16 %v164
    %v539 = vunpack.c.h.b16 %v164
    %v540 = vunpack.c.l.b16 %v165
    %v541 = vunpack.c.h.b16 %v165
    %v542 = vunpack.c.l.b16 %v166
    %v543 = vunpack.c.h.b16 %v166
    %v544 = vunpack.c.l.b16 %v167
    %v545 = vunpack.c.h.b16 %v167
    %v546 = vunpack.c.l.b16 %v168
    %v547 = vunpack.c.h.b16 %v168
    %v548 = vunpack.c.l.b16 %v169
    %v549 = vunpack.c.h.b16 %v169
    %v550 = vunpack.c.l.b16 %v170
    %v551 = vunpack.c.h.b16 %v170
    %v552 = vunpack.c.l.b16 %v171
    %v553 = vunpack.c.h.b16 %v171
    %v554 = vunpack.c.l.b16 %v172
    %v555 = vunpack.c.h.b16 %v172
    %v556 = vunpack.c.l.b16 %v173
    %v557 = vunpack.c.h.b16 %v173
    %v558 = vunpack.c.l.b16 %v174
    %v559 = vunpack.c.h.b16 %v174
    %v560 = vunpack.c.l.b16 %v175
    %v561 = vunpack.c.h.b16 %v175
    %v562 = vunpack.c.l.b16 %v176
    %v563 = vunpack.c.h.b16 %v176
    %v564 = vunpack.c.l.b16 %v177
    %v565 = vunpack.c.h.b16 %v177
    %v566 = vunpack.c.l.b16 %v178
    %v567 = vunpack.c.h.b16 %v178
    %v568 = vunpack.c.l.b16 %v179
    %v569 = vunpack.c.h.b16 %v179
    %v570 = vunpack.c.l.b16 %v180
    %v571 = vunpack.c.h.b16 %v180
    %v572 = vunpack.c.l.b16 %v181
    %v573 = vunpack.c.h.b16 %v181
    %v574 = vunpack.c.l.b16 %v182
    %v575 = vunpack.c.h.b16 %v182
    %v576 = vunpack.c.l.b16 %v183
    %v577 = vunpack.c.h.b16 %v183
    %v578 = vpack.c.b16 %v330, %v322
    %v579 = vpack.c.b16 %v331, %v323
    %v580 = vpack.c.b16 %v332, %v324
    %v581 = vpack.c.b16 %v333, %v325
    %v582 = vpack.c.b16 %v334, %v326
    %v583 = vpack.c.b16 %v335, %v327
    %v584 = vpack.c.b16 %v336, %v328
    %v585 = vpack.c.b16 %v337, %v329
    %v586 = vpack.c.b16 %v346, %v338
    %v587 = vpack.c.b16 %v347, %v339
    %v588 = vpack.c.b16 %v348, %v340
    %v589 = vpack.c.b16 %v349, %v341
    %v590 = vpack.c.b16 %v350, %v342
    %v591 = vpack.c.b16 %v351, %v343
    %v592 = vpack.c.b16 %v352, %v344
    %v593 = vpack.c.b16 %v353, %v345
    %v594 = vpack.c.b16 %v362, %v354
    %v595 = vpack.c.b16 %v363, %v355
    %v596 = vpack.c.b16 %v364, %v356
    %v597 = vpack.c.b16 %v365, %v357
    %v598 = vpack.c.b16 %v366, %v358
    %v599 = vpack.c.b16 %v367, %v359
    %v600 = vpack.c.b16 %v368, %v360
    %v601 = vpack.c.b16 %v369, %v361
    %v602 = vpack.c.b16 %v378, %v370
    %v603 = vpack.c.b16 %v379, %v371
    %v604 = vpack.c.b16 %v380, %v372
    %v605 = vpack.c.b16 %v381, %v373
    %v606 = vpack.c.b16 %v382, %v374
    %v607 = vpack.c.b16 %v383, %v375
    %v608 = vpack.c.b16 %v384, %v376
    %v609 = vpack.c.b16 %v385, %v377
    %v610 = vpack.c.b16 %v394, %v386
    %v611 = vpack.c.b16 %v395, %v387
    %v612 = vpack.c.b16 %v396, %v388
    %v613 = vpack.c.b16 %v397, %v389
    %v614 = vpack.c.b16 %v398, %v390
    %v615 = vpack.c.b16 %v399, %v391
    %v616 = vpack.c.b16 %v400, %v392
    %v617 = vpack.c.b16 %v401, %v393
    %v618 = vpack.c.b16 %v410, %v402
    %v619 = vpack.c.b16 %v411, %v403
    %v620 = vpack.c.b16 %v412, %v404
    %v621 = vpack.c.b16 %v413, %v405
    %v622 = vpack.c.b16 %v414, %v406
    %v623 = vpack.c.b16 %v415, %v407
    %v624 = vpack.c.b16 %v416, %v408
    %v625 = vpack.c.b16 %v417, %v409
    %v626 = vpack.c.b16 %v426, %v418
    %v627 = vpack.c.b16 %v427, %v419
    %v628 = vpack.c.b16 %v428, %v420
    %v629 = vpack.c.b16 %v429, %v421
    %v630 = vpack.c.b16 %v430, %v422
    %v631 = vpack.c.b16 %v431, %v423
    %v632 = vpack.c.b16 %v432, %v424
    %v633 = vpack.c.b16 %v433, %v425
    %v634 = vpack.c.b16 %v442, %v434
    %v635 = vpack.c.b16 %v443, %v435
    %v636 = vpack.c.b16 %v444, %v436
    %v637 = vpack.c.b16 %v445, %v437
    %v638 = vpack.c.b16 %v446, %v438
    %v639 = vpack.c.b16 %v447, %v439
    %v640 = vpack.c.b16 %v448, %v440
    %v641 = vpack.c.b16 %v449, %v441
    %v642 = vpack.c.b16 %v458, %v450
    %v643 = vpack.c.b16 %v459, %v451
    %v644 = vpack.c.b16 %v460, %v452
    %v645 = vpack.c.b16 %v461, %v453
    %v646 = vpack.c.b16 %v462, %v454
    %v647 = vpack.c.b16 %v463, %v455
    %v648 = vpack.c.b16 %v464, %v456
    %v649 = vpack.c.b16 %v465, %v457
    %v650 = vpack.c.b16 %v474, %v466
    %v651 = vpack.c.b16 %v475, %v467
    %v652 = vpack.c.b16 %v476, %v468
    %v653 = vpack.c.b16 %v477, %v469
    %v654 = vpack.c.b16 %v478, %v470
    %v655 = vpack.c.b16 %v479, %v471
    %v656 = vpack.c.b16 %v480, %v472
    %v657 = vpack.c.b16 %v481, %v473
    %v658 = vpack.c.b16 %v490, %v482
    %v659 = vpack.c.b16 %v491, %v483
    %v660 = vpack.c.b16 %v492, %v484
    %v661 = vpack.c.b16 %v493, %v485
    %v662 = vpack.c.b16 %v494, %v486
    %v663 = vpack.c.b16 %v495, %v487
    %v664 = vpack.c.b16 %v496, %v488
    %v665 = vpack.c.b16 %v497, %v489
    %v666 = vpack.c.b16 %v506, %v498
    %v667 = vpack.c.b16 %v507, %v499
    %v668 = vpack.c.b16 %v508, %v500
    %v669 = vpack.c.b16 %v509, %v501
    %v670 = vpack.c.b16 %v510, %v502
    %v671 = vpack.c.b16 %v511, %v503
    %v672 = vpack.c.b16 %v512, %v504
    %v673 = vpack.c.b16 %v513, %v505
    %v674 = vpack.c.b16 %v522, %v514
    %v675 = vpack.c.b16 %v523, %v515
    %v676 = vpack.c.b16 %v524, %v516
    %v677 = vpack.c.b16 %v525, %v517
    %v678 = vpack.c.b16 %v526, %v518
    %v679 = vpack.c.b16 %v527, %v519
    %v680 = vpack.c.b16 %v528, %v520
    %v681 = vpack.c.b16 %v529, %v521
    %v682 = vpack.c.b16 %v538, %v530
    %v683 = vpack.c.b16 %v539, %v531
    %v684 = vpack.c.b16 %v540, %v532
    %v685 = vpack.c.b16 %v541, %v533
    %v686 = vpack.c.b16 %v542, %v534
    %v687 = vpack.c.b16 %v543, %v535
    %v688 = vpack.c.b16 %v544, %v536
    %v689 = vpack.c.b16 %v545, %v537
    %v690 = vpack.c.b16 %v554, %v546
    %v691 = vpack.c.b16 %v555, %v547
    %v692 = vpack.c.b16 %v556, %v548
    %v693 = vpack.c.b16 %v557, %v549
    %v694 = vpack.c.b16 %v558, %v550
    %v695 = vpack.c.b16 %v559, %v551
    %v696 = vpack.c.b16 %v560, %v552
    %v697 = vpack.c.b16 %v561, %v553
    %v698 = vpack.c.b16 %v570, %v562
    %v699 = vpack.c.b16 %v571, %v563
    %v700 = vpack.c.b16 %v572, %v564
    %v701 = vpack.c.b16 %v573, %v565
    %v702 = vpack.c.b16 %v574, %v566
    %v703 = vpack.c.b16 %v575, %v567
    %v704 = vpack.c.b16 %v576, %v568
    %v705 = vpack.c.b16 %v577, %v569
    %834 = vmatprep.subr.bf16.mxu0 %v635
    %835 = vmatpush1.bf16.msra.mxu0 %v634
    %836 = vmatprep.subr.bf16.mxu0 %v627
    %837 = vmatpush1.bf16.msra.mxu0 %v626
    %838 = vmatprep.subr.bf16.mxu0 %v619
    %839 = vmatpush1.bf16.msra.mxu0 %v618
    %840 = vmatprep.subr.bf16.mxu0 %v611
    %841 = vmatpush1.bf16.msra.mxu0 %v610
    %842 = vmatprep.subr.bf16.mxu0 %v603
    %843 = vmatpush1.bf16.msra.mxu0 %v602
    %844 = vmatprep.subr.bf16.mxu0 %v595
    %845 = vmatpush1.bf16.msra.mxu0 %v594
    %846 = vmatprep.subr.bf16.mxu0 %v587
    %847 = vmatpush1.bf16.msra.mxu0 %v586
    %848 = vmatprep.subr.bf16.mxu0 %v579
    %849 = vmatpush1.bf16.msra.mxu0 %v578
    %850 = vmatprep.subr.bf16.mxu0 %v699
    %851 = vmatpush2.bf16.msra.mxu0 %v698
    %852 = vmatprep.subr.bf16.mxu0 %v691
    %853 = vmatpush2.bf16.msra.mxu0 %v690
    %854 = vmatprep.subr.bf16.mxu0 %v683
    %855 = vmatpush2.bf16.msra.mxu0 %v682
    %856 = vmatprep.subr.bf16.mxu0 %v675
    %857 = vmatpush2.bf16.msra.mxu0 %v674
    %858 = vmatprep.subr.bf16.mxu0 %v667
    %859 = vmatpush2.bf16.msra.mxu0 %v666
    %860 = vmatprep.subr.bf16.mxu0 %v659
    %861 = vmatpush2.bf16.msra.mxu0 %v658
    %862 = vmatprep.subr.bf16.mxu0 %v651
    %863 = vmatpush2.bf16.msra.mxu0 %v650
    %864 = vmatprep.subr.bf16.mxu0 %v643
    %865 = vmatpush2.bf16.msra.mxu0 %v642
    %866 = vmatprep.mubr.bf16.mxu0 %v191
    %867 = vmatmul.mubr.bf16.gmra.mxu0 %v190
    %v868 = vpop.f32.mrf.mxu0
    %v869 = vadd.f32 0.0, %v868
    %v870 = vpop.f32.mrf.mxu0
    %v871 = vadd.f32 0.0, %v870
    %v872 = vpop.f32.mrf.mxu0
    %v873 = vadd.f32 0.0, %v872
    %v874 = vpop.f32.mrf.mxu0
    %v875 = vadd.f32 0.0, %v874
    %876 = vdwg.mxu0
    %877 = vmatprep.subr.bf16.mxu0 %v637
    %878 = vmatpush1.bf16.msra.mxu0 %v636
    %879 = vmatprep.subr.bf16.mxu0 %v629
    %880 = vmatpush1.bf16.msra.mxu0 %v628
    %881 = vmatprep.subr.bf16.mxu0 %v621
    %882 = vmatpush1.bf16.msra.mxu0 %v620
    %883 = vmatprep.subr.bf16.mxu0 %v613
    %884 = vmatpush1.bf16.msra.mxu0 %v612
    %885 = vmatprep.subr.bf16.mxu0 %v605
    %886 = vmatpush1.bf16.msra.mxu0 %v604
    %887 = vmatprep.subr.bf16.mxu0 %v597
    %888 = vmatpush1.bf16.msra.mxu0 %v596
    %889 = vmatprep.subr.bf16.mxu0 %v589
    %890 = vmatpush1.bf16.msra.mxu0 %v588
    %891 = vmatprep.subr.bf16.mxu0 %v581
    %892 = vmatpush1.bf16.msra.mxu0 %v580
    %893 = vmatprep.subr.bf16.mxu0 %v701
    %894 = vmatpush2.bf16.msra.mxu0 %v700
    %895 = vmatprep.subr.bf16.mxu0 %v693
    %896 = vmatpush2.bf16.msra.mxu0 %v692
    %897 = vmatprep.subr.bf16.mxu0 %v685
    %898 = vmatpush2.bf16.msra.mxu0 %v684
    %899 = vmatprep.subr.bf16.mxu0 %v677
    %900 = vmatpush2.bf16.msra.mxu0 %v676
    %901 = vmatprep.subr.bf16.mxu0 %v669
    %902 = vmatpush2.bf16.msra.mxu0 %v668
    %903 = vmatprep.subr.bf16.mxu0 %v661
    %904 = vmatpush2.bf16.msra.mxu0 %v660
    %905 = vmatprep.subr.bf16.mxu0 %v653
    %906 = vmatpush2.bf16.msra.mxu0 %v652
    %907 = vmatprep.subr.bf16.mxu0 %v645
    %908 = vmatpush2.bf16.msra.mxu0 %v644
    %909 = vmatprep.mubr.bf16.mxu0 %v191
    %910 = vmatmul.mubr.bf16.gmra.mxu0 %v190
    %v911 = vpop.f32.mrf.mxu0
    %v912 = vadd.f32 0.0, %v911
    %v913 = vpop.f32.mrf.mxu0
    %v914 = vadd.f32 0.0, %v913
    %v915 = vpop.f32.mrf.mxu0
    %v916 = vadd.f32 0.0, %v915
    %v917 = vpop.f32.mrf.mxu0
    %v918 = vadd.f32 0.0, %v917
    %919 = vdwg.mxu0
    %920 = vmatprep.subr.bf16.mxu0 %v639
    %921 = vmatpush1.bf16.msra.mxu0 %v638
    %922 = vmatprep.subr.bf16.mxu0 %v631
    %923 = vmatpush1.bf16.msra.mxu0 %v630
    %924 = vmatprep.subr.bf16.mxu0 %v623
    %925 = vmatpush1.bf16.msra.mxu0 %v622
    %926 = vmatprep.subr.bf16.mxu0 %v615
    %927 = vmatpush1.bf16.msra.mxu0 %v614
    %928 = vmatprep.subr.bf16.mxu0 %v607
    %929 = vmatpush1.bf16.msra.mxu0 %v606
    %930 = vmatprep.subr.bf16.mxu0 %v599
    %931 = vmatpush1.bf16.msra.mxu0 %v598
    %932 = vmatprep.subr.bf16.mxu0 %v591
    %933 = vmatpush1.bf16.msra.mxu0 %v590
    %934 = vmatprep.subr.bf16.mxu0 %v583
    %935 = vmatpush1.bf16.msra.mxu0 %v582
    %936 = vmatprep.subr.bf16.mxu0 %v703
    %937 = vmatpush2.bf16.msra.mxu0 %v702
    %938 = vmatprep.subr.bf16.mxu0 %v695
    %939 = vmatpush2.bf16.msra.mxu0 %v694
    %940 = vmatprep.subr.bf16.mxu0 %v687
    %941 = vmatpush2.bf16.msra.mxu0 %v686
    %942 = vmatprep.subr.bf16.mxu0 %v679
    %943 = vmatpush2.bf16.msra.mxu0 %v678
    %944 = vmatprep.subr.bf16.mxu0 %v671
    %945 = vmatpush2.bf16.msra.mxu0 %v670
    %946 = vmatprep.subr.bf16.mxu0 %v663
    %947 = vmatpush2.bf16.msra.mxu0 %v662
    %948 = vmatprep.subr.bf16.mxu0 %v655
    %949 = vmatpush2.bf16.msra.mxu0 %v654
    %950 = vmatprep.subr.bf16.mxu0 %v647
    %951 = vmatpush2.bf16.msra.mxu0 %v646
    %952 = vmatprep.mubr.bf16.mxu0 %v191
    %953 = vmatmul.mubr.bf16.gmra.mxu0 %v190
    %v954 = vpop.f32.mrf.mxu0
    %v955 = vadd.f32 0.0, %v954
    %v956 = vpop.f32.mrf.mxu0
    %v957 = vadd.f32 0.0, %v956
    %v958 = vpop.f32.mrf.mxu0
    %v959 = vadd.f32 0.0, %v958
    %v960 = vpop.f32.mrf.mxu0
    %v961 = vadd.f32 0.0, %v960
    %962 = vdwg.mxu0
    %963 = vmatprep.subr.bf16.mxu0 %v641
    %964 = vmatpush1.bf16.msra.mxu0 %v640
    %965 = vmatprep.subr.bf16.mxu0 %v633
    %966 = vmatpush1.bf16.msra.mxu0 %v632
    %967 = vmatprep.subr.bf16.mxu0 %v625
    %968 = vmatpush1.bf16.msra.mxu0 %v624
    %969 = vmatprep.subr.bf16.mxu0 %v617
    %970 = vmatpush1.bf16.msra.mxu0 %v616
    %971 = vmatprep.subr.bf16.mxu0 %v609
    %972 = vmatpush1.bf16.msra.mxu0 %v608
    %973 = vmatprep.subr.bf16.mxu0 %v601
    %974 = vmatpush1.bf16.msra.mxu0 %v600
    %975 = vmatprep.subr.bf16.mxu0 %v593
    %976 = vmatpush1.bf16.msra.mxu0 %v592
    %977 = vmatprep.subr.bf16.mxu0 %v585
    %978 = vmatpush1.bf16.msra.mxu0 %v584
    %979 = vmatprep.subr.bf16.mxu0 %v705
    %980 = vmatpush2.bf16.msra.mxu0 %v704
    %981 = vmatprep.subr.bf16.mxu0 %v697
    %982 = vmatpush2.bf16.msra.mxu0 %v696
    %983 = vmatprep.subr.bf16.mxu0 %v689
    %984 = vmatpush2.bf16.msra.mxu0 %v688
    %985 = vmatprep.subr.bf16.mxu0 %v681
    %986 = vmatpush2.bf16.msra.mxu0 %v680
    %987 = vmatprep.subr.bf16.mxu0 %v673
    %988 = vmatpush2.bf16.msra.mxu0 %v672
    %989 = vmatprep.subr.bf16.mxu0 %v665
    %990 = vmatpush2.bf16.msra.mxu0 %v664
    %991 = vmatprep.subr.bf16.mxu0 %v657
    %992 = vmatpush2.bf16.msra.mxu0 %v656
    %993 = vmatprep.subr.bf16.mxu0 %v649
    %994 = vmatpush2.bf16.msra.mxu0 %v648
    %995 = vmatprep.mubr.bf16.mxu0 %v191
    %996 = vmatmul.mubr.bf16.gmra.mxu0 %v190
    %v997 = vpop.f32.mrf.mxu0
    %v998 = vadd.f32 0.0, %v997
    %v999 = vpop.f32.mrf.mxu0
    %v1000 = vadd.f32 0.0, %v999
    %v1001 = vpop.f32.mrf.mxu0
    %v1002 = vadd.f32 0.0, %v1001
    %v1003 = vpop.f32.mrf.mxu0
    %v1004 = vadd.f32 0.0, %v1003
    %1005 = vdwg.mxu0
    %v1006 = vlaneseq
    %v1007 = vshrl.u32 %v1006, 7
    %v1008 = vadd.s32 %v1007, 8
    %vm1009 = vcmp.lt.s32.totalorder %v1007, 0
    %v1010 = vsub.s32 0, %v1007
    %v1011 = vsel %vm1009, %v1010, %v1007
    %v1012 = vshrl.u32 %v1011, 3
    %v1013 = vand.u32 %v1011, 7
    %v1014 = vsub.s32 0, %v1013
    %v1015 = vsel %vm1009, %v1014, %v1013
    %vm1016 = vcmp.lt.s32.totalorder %v1008, 0
    %v1017 = vsub.s32 0, %v1008
    %v1018 = vsel %vm1016, %v1017, %v1008
    %v1019 = vshrl.u32 %v1018, 3
    %v1020 = vand.u32 %v1018, 7
    %v1021 = vsub.s32 0, %v1020
    %v1022 = vsel %vm1016, %v1021, %v1020
    %vm1023 = vcmp.ne.s32.totalorder %v1015, 0
    %vm1024 = vcmp.ne.s32.totalorder %v1022, 0
    %vm1025 = vcmp.lt.s32.totalorder %v1015, 0
    %vm1026 = vcmp.lt.s32.totalorder %v1022, 0
    %vm1027 = vmand %vm1025, %vm1023
    %vm1028 = vmand %vm1026, %vm1024
    %v1029 = vadd.s32 %v1015, 8
    %v1030 = vadd.s32 %v1022, 8
    %v1031 = vsel %vm1027, %v1029, %v1015
    %v1032 = vsel %vm1028, %v1030, %v1022
    %vm1033 = vcmp.ne.s32.totalorder %v1031, 0
    %vm1034 = vcmp.ne.s32.totalorder %v1032, 0
    %v1037 = vrot.slane %v959, 7
    %v1038 = vrot.slane %v961, 7
    %vm1043 = vcmask 1040384
    %v1044 = vrot.slane %v955, 7
    %v1045 = vrot.slane %v957, 7
    %v1046 = vsel %vm1043, %v1044, %v1037
    %v1047 = vsel %vm1043, %v1045, %v1038
    %v1052 = vsel %vm1043, %v1037, %v1044
    %v1053 = vsel %vm1043, %v1038, %v1045
    %v1054 = vsel %vm1033, %v1052, 0.0
    %v1055 = vsel %vm1033, %v1053, 0.0
    %v1056 = vsel %vm1034, %v1046, 0.0
    %v1057 = vsel %vm1034, %v1047, 0.0
    %vm1058 = vcmp.ne.s32.totalorder %v1031, 7
    %vm1059 = vcmp.ne.s32.totalorder %v1032, 7
    %vm1064 = vcmask 1046528
    %v1065 = vrot.slane %v998, 1
    %v1066 = vrot.slane %v1002, 1
    %v1067 = vsel %vm1064, %v1065, %v1066
    %v1068 = vrot.slane %v1000, 1
    %v1069 = vrot.slane %v1004, 1
    %v1070 = vsel %vm1064, %v1068, %v1069
    %v1077 = vsel %vm1064, %v1066, %v1065
    %v1078 = vsel %vm1064, %v1069, %v1068
    %v1079 = vsel %vm1058, %v1067, 0.0
    %v1080 = vsel %vm1058, %v1070, 0.0
    %v1081 = vsel %vm1059, %v1077, 0.0
    %v1082 = vsel %vm1059, %v1078, 0.0
    %v1083 = vadd.f32 %v869, %v1054
    %v1084 = vadd.f32 %v871, %v1055
    %v1085 = vadd.f32 %v912, %v1079
    %v1086 = vadd.f32 %v914, %v1080
    %v1087 = vadd.f32 %v873, %v1056
    %v1088 = vadd.f32 %v875, %v1057
    %v1089 = vadd.f32 %v916, %v1081
    %v1090 = vadd.f32 %v918, %v1082
    %v1091 = vld [vmem:[#allocation4] sm:$0xf]
    %v1092 = vld [vmem:[#allocation6] sm:$0xf]
    %v1093 = vadd.f32 %v1083, %v1087
    %v1094 = vrot.slane %v1093, 4
    %v1095 = vadd.f32 %v1093, %v1094
    %v1096 = vrot.slane %v1095, 2
    %v1097 = vadd.f32 %v1095, %v1096
    %v1098 = vrot.slane %v1097, 1
    %v1099 = vadd.f32 %v1097, %v1098
    %v1100 = vadd.f32 %v1084, %v1088
    %v1101 = vrot.slane %v1100, 4
    %v1102 = vadd.f32 %v1100, %v1101
    %v1103 = vrot.slane %v1102, 2
    %v1104 = vadd.f32 %v1102, %v1103
    %v1105 = vrot.slane %v1104, 1
    %v1106 = vadd.f32 %v1104, %v1105
    %v1107 = vadd.f32 %v1085, %v1089
    %v1108 = vrot.slane %v1107, 4
    %v1109 = vadd.f32 %v1107, %v1108
    %v1110 = vrot.slane %v1109, 2
    %v1111 = vadd.f32 %v1109, %v1110
    %v1112 = vrot.slane %v1111, 1
    %v1113 = vadd.f32 %v1111, %v1112
    %v1114 = vadd.f32 %v1086, %v1090
    %v1115 = vrot.slane %v1114, 4
    %v1116 = vadd.f32 %v1114, %v1115
    %v1117 = vrot.slane %v1116, 2
    %v1118 = vadd.f32 %v1116, %v1117
    %v1119 = vrot.slane %v1118, 1
    %v1120 = vadd.f32 %v1118, %v1119
    %v1121 = vmul.f32 %v1083, %v1083
    %v1122 = vmul.f32 %v1084, %v1084
    %v1123 = vmul.f32 %v1085, %v1085
    %v1124 = vmul.f32 %v1086, %v1086
    %v1125 = vmul.f32 %v1087, %v1087
    %v1126 = vmul.f32 %v1088, %v1088
    %v1127 = vmul.f32 %v1089, %v1089
    %v1128 = vmul.f32 %v1090, %v1090
    %v1129 = vadd.f32 %v1121, %v1125
    %v1130 = vrot.slane %v1129, 4
    %v1131 = vadd.f32 %v1129, %v1130
    %v1132 = vrot.slane %v1131, 2
    %v1133 = vadd.f32 %v1131, %v1132
    %v1134 = vrot.slane %v1133, 1
    %v1135 = vadd.f32 %v1133, %v1134
    %v1136 = vadd.f32 %v1122, %v1126
    %v1137 = vrot.slane %v1136, 4
    %v1138 = vadd.f32 %v1136, %v1137
    %v1139 = vrot.slane %v1138, 2
    %v1140 = vadd.f32 %v1138, %v1139
    %v1141 = vrot.slane %v1140, 1
    %v1142 = vadd.f32 %v1140, %v1141
    %v1143 = vadd.f32 %v1123, %v1127
    %v1144 = vrot.slane %v1143, 4
    %v1145 = vadd.f32 %v1143, %v1144
    %v1146 = vrot.slane %v1145, 2
    %v1147 = vadd.f32 %v1145, %v1146
    %v1148 = vrot.slane %v1147, 1
    %v1149 = vadd.f32 %v1147, %v1148
    %v1150 = vadd.f32 %v1124, %v1128
    %v1151 = vrot.slane %v1150, 4
    %v1152 = vadd.f32 %v1150, %v1151
    %v1153 = vrot.slane %v1152, 2
    %v1154 = vadd.f32 %v1152, %v1153
    %v1155 = vrot.slane %v1154, 1
    %v1156 = vadd.f32 %v1154, %v1155
    %v1157 = vsel %vm1043, %v1099, %v1135
    %v1158 = vsel %vm1043, %v1106, %v1142
    %v1159 = vsel %vm1043, %v1113, %v1149
    %v1160 = vsel %vm1043, %v1120, %v1156
    %v1161 = vadd.f32 %v1157, %v1159
    %v1162 = vadd.f32 %v1158, %v1160
    %v1163 = vadd.f32 %v1161, %v1162
    %1164 = vrot.lane.b32.xlu0 %v1163, 64
    %v1165 = vpop.permute.xlu0 %1164
    %v1166 = vlaneseq
    %v1167 = vand.u32 %v1166, 127
    %v1168 = vadd.f32 %v1163, %v1165
    %1169 = vrot.lane.b32.xlu0 %v1168, 32
    %v1170 = vpop.permute.xlu0 %1169
    %v1171 = vadd.f32 %v1168, %v1170
    %1172 = vrot.lane.b32.xlu0 %v1171, 16
    %v1173 = vpop.permute.xlu0 %1172
    %v1174 = vadd.f32 %v1171, %v1173
    %v1175 = vmul.f32 %v1174, 0.001953125
    %v1176 = vmul.f32 %v1175, %v1175
    %v1178 = vrot.slane %v1176, 7
    %v1180 = vsub.f32 %v1175, %v1178
    %v1181 = vadd.f32 %v1180, 1e-05
    %v1182 = vrsqrt.pop %v1181
    %v1184 = vcombine.low %v1182, %v1182
    %v1186 = vunpack.c.l.s4 1966171168
    %v1187 = vunpack.c.0.s8 %v1186
    %v1188 = vlaneseq
    %v1189 = vshrl.u32 %v1188, 7
    %v1190 = vsub.s32 %v1187, %v1189
    %v1191 = vrot.slane %v1184, %v1190
    %v1192 = vcombine.high %v1191, %v1191
    %v1194 = vunpack.c.l.s4 1966171168
    %v1195 = vunpack.c.0.s8 %v1194
    %v1196 = vlaneseq
    %v1197 = vshrl.u32 %v1196, 7
    %v1198 = vsub.s32 %v1195, %v1197
    %v1199 = vrot.slane %v1192, %v1198
    %v1201 = vmul.f32 %v1091, %v1199
    %v1203 = vlaneseq
    %v1204 = vshrl.u32 %v1203, 7
    %v1205 = vsub.s32 0, %v1204
    %v1206 = vrot.slane %v1201, %v1205
    %v1207 = vlaneseq
    %v1208 = vshrl.u32 %v1207, 7
    %v1209 = vsub.s32 1, %v1208
    %v1210 = vrot.slane %v1201, %v1209
    %v1211 = vlaneseq
    %v1212 = vshrl.u32 %v1211, 7
    %v1213 = vsub.s32 2, %v1212
    %v1214 = vrot.slane %v1201, %v1213
    %v1215 = vlaneseq
    %v1216 = vshrl.u32 %v1215, 7
    %v1217 = vsub.s32 3, %v1216
    %v1218 = vrot.slane %v1201, %v1217
    %v1223 = vmul.f32 %v1175, %v1206
    %v1224 = vmul.f32 %v1175, %v1210
    %v1225 = vmul.f32 %v1175, %v1214
    %v1226 = vmul.f32 %v1175, %v1218
    %v1231 = vcombine.low %v1223, %v1224
    %v1232 = vcombine.low %v1225, %v1226
    %v1234 = vunpack.c.l.s4 1966171168
    %v1235 = vunpack.c.0.s8 %v1234
    %v1236 = vlaneseq
    %v1237 = vshrl.u32 %v1236, 7
    %v1238 = vsub.s32 %v1235, %v1237
    %v1239 = vrot.slane %v1231, %v1238
    %v1241 = vunpack.c.l.s4 1966171168
    %v1242 = vunpack.c.0.s8 %v1241
    %v1243 = vlaneseq
    %v1244 = vshrl.u32 %v1243, 7
    %v1245 = vsub.s32 %v1242, %v1244
    %v1246 = vrot.slane %v1232, %v1245
    %v1247 = vcombine.low %v1239, %v1246
    %v1249 = vunpack.c.l.s4 1966171168
    %v1250 = vunpack.c.0.s8 %v1249
    %v1251 = vlaneseq
    %v1252 = vshrl.u32 %v1251, 7
    %v1253 = vsub.s32 %v1250, %v1252
    %v1254 = vrot.slane %v1247, %v1253
    %v1256 = vsub.f32 %v1092, %v1254
    %v1257 = vmul.f32 %v1083, %v1206
    %v1258 = vmul.f32 %v1084, %v1210
    %v1259 = vmul.f32 %v1085, %v1214
    %v1260 = vmul.f32 %v1086, %v1218
    %v1261 = vmul.f32 %v1087, %v1206
    %v1262 = vmul.f32 %v1088, %v1210
    %v1263 = vmul.f32 %v1089, %v1214
    %v1264 = vmul.f32 %v1090, %v1218
    %v1266 = vlaneseq
    %v1267 = vshrl.u32 %v1266, 7
    %v1268 = vsub.s32 0, %v1267
    %v1269 = vrot.slane %v1256, %v1268
    %v1270 = vlaneseq
    %v1271 = vshrl.u32 %v1270, 7
    %v1272 = vsub.s32 1, %v1271
    %v1273 = vrot.slane %v1256, %v1272
    %v1274 = vlaneseq
    %v1275 = vshrl.u32 %v1274, 7
    %v1276 = vsub.s32 2, %v1275
    %v1277 = vrot.slane %v1256, %v1276
    %v1278 = vlaneseq
    %v1279 = vshrl.u32 %v1278, 7
    %v1280 = vsub.s32 3, %v1279
    %v1281 = vrot.slane %v1256, %v1280
    %v1286 = vadd.f32 %v1257, %v1269
    %v1287 = vadd.f32 %v1258, %v1273
    %v1288 = vadd.f32 %v1259, %v1277
    %v1289 = vadd.f32 %v1260, %v1281
    %v1290 = vadd.f32 %v1261, %v1269
    %v1291 = vadd.f32 %v1262, %v1273
    %v1292 = vadd.f32 %v1263, %v1277
    %v1293 = vadd.f32 %v1264, %v1281
    %v1294 = vmax.f32 %v1286, 0.0
    %v1295 = vmax.f32 %v1287, 0.0
    %v1296 = vmax.f32 %v1288, 0.0
    %v1297 = vmax.f32 %v1289, 0.0
    %v1298 = vmax.f32 %v1290, 0.0
    %v1299 = vmax.f32 %v1291, 0.0
    %v1300 = vmax.f32 %v1292, 0.0
    %v1301 = vmax.f32 %v1293, 0.0
    %v1302 = vpack.c.bf16 %v1298, %v1294
    %v1303 = vpack.c.bf16 %v1299, %v1295
    %v1304 = vpack.c.bf16 %v1300, %v1296
    %v1305 = vpack.c.bf16 %v1301, %v1297
    %v1310 = vunpack.c.l.b16 %v1302
    %v1311 = vunpack.c.l.b16 %v1303
    %v1312 = vunpack.c.l.b16 %v1304
    %v1313 = vunpack.c.l.b16 %v1305
    %v1314 = vunpack.c.h.b16 %v1302
    %v1315 = vunpack.c.h.b16 %v1303
    %v1316 = vunpack.c.h.b16 %v1304
    %v1317 = vunpack.c.h.b16 %v1305
    %v1318 = vpack.c.b16 %v1311, %v1310
    %v1319 = vpack.c.b16 %v1313, %v1312
    %v1320 = vpack.c.b16 %v1315, %v1314
    %v1321 = vpack.c.b16 %v1317, %v1316
    %1326 = vst [vmem:[%s4] sm:$0xff] %v1318
    %1327 = vst [vmem:[%s4 + $0x8] sm:$0xff] %v1319
    %1328 = vst [vmem:[%s4 + $0x10] sm:$0xff] %v1320
    %1329 = vst [vmem:[%s4 + $0x18] sm:$0xff] %v1321
    // Predicated region
    $region30: #{_lambda_.7} parent=1 // pred_check
      _
    $region31: #{_lambda_.7} parent=1 // pred_check_branch
      %1331 = sbr.rel (0) target = $region33
    $region32: #{_lambda_.7} parent=1 // pred_region
      _
    $region33: #{_lambda_.7} parent=1 // pred_fallthru
      _
    // Predicated region
    $region34: #{_lambda_.7} parent=1 // pred_check
      _
    $region35: #{_lambda_.7} parent=1 // pred_check_branch
      %1333 = sbr.rel (0) target = $region37
    $region36: #{_lambda_.7} parent=1 // pred_region
      _
    $region37: #{_lambda_.7} parent=1 // pred_fallthru
      _
    %1334 = vsyncpa [#allocation3], 1
    %1335 = vsyncpa [#allocation5], 1

// kernel: _lambda_.9
$region0: #{_lambda_.9}
  #allocation0 [shape = 'u32[]', space=smem, size = 0x4, offset = 0x4, fixed_abs, tag = 'smem constant byte address 0x4 - core index']
  #allocation1 [shape = 'u32[144,128]{1,0:T(1,128)}', space=vmem, size = 0x12000, scoped, tag = 'internal scratch']
  %s0 = inlined_call_operand.vmem [shape: bf16[64,256], index: 0, kind: input, shape index: {}]
  %s1 = inlined_call_operand.hbm [shape: bf16[256,1024], index: 1, kind: input, shape index: {}]
  %s2 = inlined_call_operand.vmem [shape: f32[64,512], index: 2, kind: output, shape index: {}]
  %s3 = sld [smem:[#allocation0]]
  $region22: #{_lambda_.9} parent=0
    _
  %s5 = ssub.s32 1, %s3
  %s6 = scalar_select 0, %s5, %s3
  $region1: #{_lambda_.9} parent=0
    #allocation2 [shape = 'u8[524288]{0}', space=vmem, size = 0x80000, scoped, tag = 'input window, operand 1, single buffered']
    #allocation3 [shape = 's32[1]{0}', space=sflag, size = 0x4, scoped, tag = 'scoped memory for _lambda_.9']
    %7 = vsyncpa [#allocation3], 0
    // Predicated region
    $region2: #{_lambda_.9} parent=1 // pred_check
      _
    $region3: #{_lambda_.9} parent=1 // pred_check_branch
      %9 = sbr.rel (0) target = $region5
    $region4: #{_lambda_.9} parent=1 // pred_region
      _
    $region5: #{_lambda_.9} parent=1 // pred_fallthru
      _
    // Predicated region
    $region6: #{_lambda_.9} parent=1 // pred_check
      _
    $region7: #{_lambda_.9} parent=1 // pred_check_branch
      %11 = sbr.rel (0) target = $region9
    $region8: #{_lambda_.9} parent=1 // pred_region
      %s13 = ssub.s32 16384, 16384
      %14 = vsyncadd [#allocation3], %s13
      %s15 = sshll.u32 [#allocation2], 4
      %s16 = int_to_ptr.vmem [resolvable:$true] %s15
      %21 = dma.hbm_to_vmem [thread:$0]  %s1, 16384, %s16, [#allocation3], 512, 512, 32
    $region9: #{_lambda_.9} parent=1 // pred_fallthru
      _
    // Predicated region
    $region10: #{_lambda_.9} parent=1 // pred_check
      _
    $region11: #{_lambda_.9} parent=1 // pred_check_branch
      %23 = sbr.rel (0) target = $region13
    $region12: #{_lambda_.9} parent=1 // pred_region
      %24 = dma.done [#allocation3], 16384
    $region13: #{_lambda_.9} parent=1 // pred_fallthru
      _
    %v25 = vld [vmem:[%s0] sm:$0xff]
    %v26 = vld [vmem:[%s0 + $0x8] sm:$0xff]
    %v27 = vld [vmem:[%s0 + $0x10] sm:$0xff]
    %v28 = vld [vmem:[%s0 + $0x18] sm:$0xff]
    %v29 = vld [vmem:[%s0 + $0x20] sm:$0xff]
    %v30 = vld [vmem:[%s0 + $0x28] sm:$0xff]
    %v31 = vld [vmem:[%s0 + $0x30] sm:$0xff]
    %v32 = vld [vmem:[%s0 + $0x38] sm:$0xff]
    %v33 = vld [vmem:[#allocation2] sm:$0xff]
    %v34 = vld [vmem:[#allocation2 + $0x8] sm:$0xff]
    %v35 = vld [vmem:[#allocation2 + $0x10] sm:$0xff]
    %v36 = vld [vmem:[#allocation2 + $0x18] sm:$0xff]
    %v37 = vld [vmem:[#allocation2 + $0x20] sm:$0xff]
    %v38 = vld [vmem:[#allocation2 + $0x28] sm:$0xff]
    %v39 = vld [vmem:[#allocation2 + $0x30] sm:$0xff]
    %v40 = vld [vmem:[#allocation2 + $0x38] sm:$0xff]
    %v41 = vld [vmem:[#allocation2 + $0x40] sm:$0xff]
    %v42 = vld [vmem:[#allocation2 + $0x48] sm:$0xff]
    %v43 = vld [vmem:[#allocation2 + $0x50] sm:$0xff]
    %v44 = vld [vmem:[#allocation2 + $0x58] sm:$0xff]
    %v45 = vld [vmem:[#allocation2 + $0x60] sm:$0xff]
    %v46 = vld [vmem:[#allocation2 + $0x68] sm:$0xff]
    %v47 = vld [vmem:[#allocation2 + $0x70] sm:$0xff]
    %v48 = vld [vmem:[#allocation2 + $0x78] sm:$0xff]
    %v49 = vld [vmem:[#allocation2 + $0x80] sm:$0xff]
    %v50 = vld [vmem:[#allocation2 + $0x88] sm:$0xff]
    %v51 = vld [vmem:[#allocation2 + $0x90] sm:$0xff]
    %v52 = vld [vmem:[#allocation2 + $0x98] sm:$0xff]
    %v53 = vld [vmem:[#allocation2 + $0xa0] sm:$0xff]
    %v54 = vld [vmem:[#allocation2 + $0xa8] sm:$0xff]
    %v55 = vld [vmem:[#allocation2 + $0xb0] sm:$0xff]
    %v56 = vld [vmem:[#allocation2 + $0xb8] sm:$0xff]
    %v57 = vld [vmem:[#allocation2 + $0xc0] sm:$0xff]
    %v58 = vld [vmem:[#allocation2 + $0xc8] sm:$0xff]
    %v59 = vld [vmem:[#allocation2 + $0xd0] sm:$0xff]
    %v60 = vld [vmem:[#allocation2 + $0xd8] sm:$0xff]
    %v61 = vld [vmem:[#allocation2 + $0xe0] sm:$0xff]
    %v62 = vld [vmem:[#allocation2 + $0xe8] sm:$0xff]
    %v63 = vld [vmem:[#allocation2 + $0xf0] sm:$0xff]
    %v64 = vld [vmem:[#allocation2 + $0xf8] sm:$0xff]
    %v65 = vld [vmem:[#allocation2 + $0x100] sm:$0xff]
    %v66 = vld [vmem:[#allocation2 + $0x108] sm:$0xff]
    %v67 = vld [vmem:[#allocation2 + $0x110] sm:$0xff]
    %v68 = vld [vmem:[#allocation2 + $0x118] sm:$0xff]
    %v69 = vld [vmem:[#allocation2 + $0x120] sm:$0xff]
    %v70 = vld [vmem:[#allocation2 + $0x128] sm:$0xff]
    %v71 = vld [vmem:[#allocation2 + $0x130] sm:$0xff]
    %v72 = vld [vmem:[#allocation2 + $0x138] sm:$0xff]
    %v73 = vld [vmem:[#allocation2 + $0x140] sm:$0xff]
    %v74 = vld [vmem:[#allocation2 + $0x148] sm:$0xff]
    %v75 = vld [vmem:[#allocation2 + $0x150] sm:$0xff]
    %v76 = vld [vmem:[#allocation2 + $0x158] sm:$0xff]
    %v77 = vld [vmem:[#allocation2 + $0x160] sm:$0xff]
    %v78 = vld [vmem:[#allocation2 + $0x168] sm:$0xff]
    %v79 = vld [vmem:[#allocation2 + $0x170] sm:$0xff]
    %v80 = vld [vmem:[#allocation2 + $0x178] sm:$0xff]
    %v81 = vld [vmem:[#allocation2 + $0x180] sm:$0xff]
    %v82 = vld [vmem:[#allocation2 + $0x188] sm:$0xff]
    %v83 = vld [vmem:[#allocation2 + $0x190] sm:$0xff]
    %v84 = vld [vmem:[#allocation2 + $0x198] sm:$0xff]
    %v85 = vld [vmem:[#allocation2 + $0x1a0] sm:$0xff]
    %v86 = vld [vmem:[#allocation2 + $0x1a8] sm:$0xff]
    %v87 = vld [vmem:[#allocation2 + $0x1b0] sm:$0xff]
    %v88 = vld [vmem:[#allocation2 + $0x1b8] sm:$0xff]
    %v89 = vld [vmem:[#allocation2 + $0x1c0] sm:$0xff]
    %v90 = vld [vmem:[#allocation2 + $0x1c8] sm:$0xff]
    %v91 = vld [vmem:[#allocation2 + $0x1d0] sm:$0xff]
    %v92 = vld [vmem:[#allocation2 + $0x1d8] sm:$0xff]
    %v93 = vld [vmem:[#allocation2 + $0x1e0] sm:$0xff]
    %v94 = vld [vmem:[#allocation2 + $0x1e8] sm:$0xff]
    %v95 = vld [vmem:[#allocation2 + $0x1f0] sm:$0xff]
    %v96 = vld [vmem:[#allocation2 + $0x1f8] sm:$0xff]
    %v97 = vld [vmem:[#allocation2 + $0x200] sm:$0xff]
    %v98 = vld [vmem:[#allocation2 + $0x208] sm:$0xff]
    %v99 = vld [vmem:[#allocation2 + $0x210] sm:$0xff]
    %v100 = vld [vmem:[#allocation2 + $0x218] sm:$0xff]
    %v101 = vld [vmem:[#allocation2 + $0x220] sm:$0xff]
    %v102 = vld [vmem:[#allocation2 + $0x228] sm:$0xff]
    %v103 = vld [vmem:[#allocation2 + $0x230] sm:$0xff]
    %v104 = vld [vmem:[#allocation2 + $0x238] sm:$0xff]
    %v105 = vld [vmem:[#allocation2 + $0x240] sm:$0xff]
    %v106 = vld [vmem:[#allocation2 + $0x248] sm:$0xff]
    %v107 = vld [vmem:[#allocation2 + $0x250] sm:$0xff]
    %v108 = vld [vmem:[#allocation2 + $0x258] sm:$0xff]
    %v109 = vld [vmem:[#allocation2 + $0x260] sm:$0xff]
    %v110 = vld [vmem:[#allocation2 + $0x268] sm:$0xff]
    %v111 = vld [vmem:[#allocation2 + $0x270] sm:$0xff]
    %v112 = vld [vmem:[#allocation2 + $0x278] sm:$0xff]
    %v113 = vld [vmem:[#allocation2 + $0x280] sm:$0xff]
    %v114 = vld [vmem:[#allocation2 + $0x288] sm:$0xff]
    %v115 = vld [vmem:[#allocation2 + $0x290] sm:$0xff]
    %v116 = vld [vmem:[#allocation2 + $0x298] sm:$0xff]
    %v117 = vld [vmem:[#allocation2 + $0x2a0] sm:$0xff]
    %v118 = vld [vmem:[#allocation2 + $0x2a8] sm:$0xff]
    %v119 = vld [vmem:[#allocation2 + $0x2b0] sm:$0xff]
    %v120 = vld [vmem:[#allocation2 + $0x2b8] sm:$0xff]
    %v121 = vld [vmem:[#allocation2 + $0x2c0] sm:$0xff]
    %v122 = vld [vmem:[#allocation2 + $0x2c8] sm:$0xff]
    %v123 = vld [vmem:[#allocation2 + $0x2d0] sm:$0xff]
    %v124 = vld [vmem:[#allocation2 + $0x2d8] sm:$0xff]
    %v125 = vld [vmem:[#allocation2 + $0x2e0] sm:$0xff]
    %v126 = vld [vmem:[#allocation2 + $0x2e8] sm:$0xff]
    %v127 = vld [vmem:[#allocation2 + $0x2f0] sm:$0xff]
    %v128 = vld [vmem:[#allocation2 + $0x2f8] sm:$0xff]
    %v129 = vld [vmem:[#allocation2 + $0x300] sm:$0xff]
    %v130 = vld [vmem:[#allocation2 + $0x308] sm:$0xff]
    %v131 = vld [vmem:[#allocation2 + $0x310] sm:$0xff]
    %v132 = vld [vmem:[#allocation2 + $0x318] sm:$0xff]
    %v133 = vld [vmem:[#allocation2 + $0x320] sm:$0xff]
    %v134 = vld [vmem:[#allocation2 + $0x328] sm:$0xff]
    %v135 = vld [vmem:[#allocation2 + $0x330] sm:$0xff]
    %v136 = vld [vmem:[#allocation2 + $0x338] sm:$0xff]
    %v137 = vld [vmem:[#allocation2 + $0x340] sm:$0xff]
    %v138 = vld [vmem:[#allocation2 + $0x348] sm:$0xff]
    %v139 = vld [vmem:[#allocation2 + $0x350] sm:$0xff]
    %v140 = vld [vmem:[#allocation2 + $0x358] sm:$0xff]
    %v141 = vld [vmem:[#allocation2 + $0x360] sm:$0xff]
    %v142 = vld [vmem:[#allocation2 + $0x368] sm:$0xff]
    %v143 = vld [vmem:[#allocation2 + $0x370] sm:$0xff]
    %v144 = vld [vmem:[#allocation2 + $0x378] sm:$0xff]
    %v145 = vld [vmem:[#allocation2 + $0x380] sm:$0xff]
    %v146 = vld [vmem:[#allocation2 + $0x388] sm:$0xff]
    %v147 = vld [vmem:[#allocation2 + $0x390] sm:$0xff]
    %v148 = vld [vmem:[#allocation2 + $0x398] sm:$0xff]
    %v149 = vld [vmem:[#allocation2 + $0x3a0] sm:$0xff]
    %v150 = vld [vmem:[#allocation2 + $0x3a8] sm:$0xff]
    %v151 = vld [vmem:[#allocation2 + $0x3b0] sm:$0xff]
    %v152 = vld [vmem:[#allocation2 + $0x3b8] sm:$0xff]
    %v153 = vld [vmem:[#allocation2 + $0x3c0] sm:$0xff]
    %v154 = vld [vmem:[#allocation2 + $0x3c8] sm:$0xff]
    %v155 = vld [vmem:[#allocation2 + $0x3d0] sm:$0xff]
    %v156 = vld [vmem:[#allocation2 + $0x3d8] sm:$0xff]
    %v157 = vld [vmem:[#allocation2 + $0x3e0] sm:$0xff]
    %v158 = vld [vmem:[#allocation2 + $0x3e8] sm:$0xff]
    %v159 = vld [vmem:[#allocation2 + $0x3f0] sm:$0xff]
    %v160 = vld [vmem:[#allocation2 + $0x3f8] sm:$0xff]
    %v169 = vunpack.c.l.b16 %v25
    %v170 = vunpack.c.h.b16 %v25
    %v171 = vunpack.c.l.b16 %v26
    %v172 = vunpack.c.h.b16 %v26
    %v173 = vunpack.c.l.b16 %v27
    %v174 = vunpack.c.h.b16 %v27
    %v175 = vunpack.c.l.b16 %v28
    %v176 = vunpack.c.h.b16 %v28
    %v177 = vunpack.c.l.b16 %v29
    %v178 = vunpack.c.h.b16 %v29
    %v179 = vunpack.c.l.b16 %v30
    %v180 = vunpack.c.h.b16 %v30
    %v181 = vunpack.c.l.b16 %v31
    %v182 = vunpack.c.h.b16 %v31
    %v183 = vunpack.c.l.b16 %v32
    %v184 = vunpack.c.h.b16 %v32
    %v185 = vpack.c.b16 %v171, %v169
    %v186 = vpack.c.b16 %v172, %v170
    %v187 = vpack.c.b16 %v175, %v173
    %v188 = vpack.c.b16 %v176, %v174
    %v189 = vpack.c.b16 %v179, %v177
    %v190 = vpack.c.b16 %v180, %v178
    %v191 = vpack.c.b16 %v183, %v181
    %v192 = vpack.c.b16 %v184, %v182
    %v329 = vunpack.c.l.b16 %v33
    %v330 = vunpack.c.h.b16 %v33
    %v331 = vunpack.c.l.b16 %v34
    %v332 = vunpack.c.h.b16 %v34
    %v333 = vunpack.c.l.b16 %v35
    %v334 = vunpack.c.h.b16 %v35
    %v335 = vunpack.c.l.b16 %v36
    %v336 = vunpack.c.h.b16 %v36
    %v337 = vunpack.c.l.b16 %v37
    %v338 = vunpack.c.h.b16 %v37
    %v339 = vunpack.c.l.b16 %v38
    %v340 = vunpack.c.h.b16 %v38
    %v341 = vunpack.c.l.b16 %v39
    %v342 = vunpack.c.h.b16 %v39
    %v343 = vunpack.c.l.b16 %v40
    %v344 = vunpack.c.h.b16 %v40
    %v345 = vunpack.c.l.b16 %v41
    %v346 = vunpack.c.h.b16 %v41
    %v347 = vunpack.c.l.b16 %v42
    %v348 = vunpack.c.h.b16 %v42
    %v349 = vunpack.c.l.b16 %v43
    %v350 = vunpack.c.h.b16 %v43
    %v351 = vunpack.c.l.b16 %v44
    %v352 = vunpack.c.h.b16 %v44
    %v353 = vunpack.c.l.b16 %v45
    %v354 = vunpack.c.h.b16 %v45
    %v355 = vunpack.c.l.b16 %v46
    %v356 = vunpack.c.h.b16 %v46
    %v357 = vunpack.c.l.b16 %v47
    %v358 = vunpack.c.h.b16 %v47
    %v359 = vunpack.c.l.b16 %v48
    %v360 = vunpack.c.h.b16 %v48
    %v361 = vunpack.c.l.b16 %v49
    %v362 = vunpack.c.h.b16 %v49
    %v363 = vunpack.c.l.b16 %v50
    %v364 = vunpack.c.h.b16 %v50
    %v365 = vunpack.c.l.b16 %v51
    %v366 = vunpack.c.h.b16 %v51
    %v367 = vunpack.c.l.b16 %v52
    %v368 = vunpack.c.h.b16 %v52
    %v369 = vunpack.c.l.b16 %v53
    %v370 = vunpack.c.h.b16 %v53
    %v371 = vunpack.c.l.b16 %v54
    %v372 = vunpack.c.h.b16 %v54
    %v373 = vunpack.c.l.b16 %v55
    %v374 = vunpack.c.h.b16 %v55
    %v375 = vunpack.c.l.b16 %v56
    %v376 = vunpack.c.h.b16 %v56
    %v377 = vunpack.c.l.b16 %v57
    %v378 = vunpack.c.h.b16 %v57
    %v379 = vunpack.c.l.b16 %v58
    %v380 = vunpack.c.h.b16 %v58
    %v381 = vunpack.c.l.b16 %v59
    %v382 = vunpack.c.h.b16 %v59
    %v383 = vunpack.c.l.b16 %v60
    %v384 = vunpack.c.h.b16 %v60
    %v385 = vunpack.c.l.b16 %v61
    %v386 = vunpack.c.h.b16 %v61
    %v387 = vunpack.c.l.b16 %v62
    %v388 = vunpack.c.h.b16 %v62
    %v389 = vunpack.c.l.b16 %v63
    %v390 = vunpack.c.h.b16 %v63
    %v391 = vunpack.c.l.b16 %v64
    %v392 = vunpack.c.h.b16 %v64
    %v393 = vunpack.c.l.b16 %v65
    %v394 = vunpack.c.h.b16 %v65
    %v395 = vunpack.c.l.b16 %v66
    %v396 = vunpack.c.h.b16 %v66
    %v397 = vunpack.c.l.b16 %v67
    %v398 = vunpack.c.h.b16 %v67
    %v399 = vunpack.c.l.b16 %v68
    %v400 = vunpack.c.h.b16 %v68
    %v401 = vunpack.c.l.b16 %v69
    %v402 = vunpack.c.h.b16 %v69
    %v403 = vunpack.c.l.b16 %v70
    %v404 = vunpack.c.h.b16 %v70
    %v405 = vunpack.c.l.b16 %v71
    %v406 = vunpack.c.h.b16 %v71
    %v407 = vunpack.c.l.b16 %v72
    %v408 = vunpack.c.h.b16 %v72
    %v409 = vunpack.c.l.b16 %v73
    %v410 = vunpack.c.h.b16 %v73
    %v411 = vunpack.c.l.b16 %v74
    %v412 = vunpack.c.h.b16 %v74
    %v413 = vunpack.c.l.b16 %v75
    %v414 = vunpack.c.h.b16 %v75
    %v415 = vunpack.c.l.b16 %v76
    %v416 = vunpack.c.h.b16 %v76
    %v417 = vunpack.c.l.b16 %v77
    %v418 = vunpack.c.h.b16 %v77
    %v419 = vunpack.c.l.b16 %v78
    %v420 = vunpack.c.h.b16 %v78
    %v421 = vunpack.c.l.b16 %v79
    %v422 = vunpack.c.h.b16 %v79
    %v423 = vunpack.c.l.b16 %v80
    %v424 = vunpack.c.h.b16 %v80
    %v425 = vunpack.c.l.b16 %v81
    %v426 = vunpack.c.h.b16 %v81
    %v427 = vunpack.c.l.b16 %v82
    %v428 = vunpack.c.h.b16 %v82
    %v429 = vunpack.c.l.b16 %v83
    %v430 = vunpack.c.h.b16 %v83
    %v431 = vunpack.c.l.b16 %v84
    %v432 = vunpack.c.h.b16 %v84
    %v433 = vunpack.c.l.b16 %v85
    %v434 = vunpack.c.h.b16 %v85
    %v435 = vunpack.c.l.b16 %v86
    %v436 = vunpack.c.h.b16 %v86
    %v437 = vunpack.c.l.b16 %v87
    %v438 = vunpack.c.h.b16 %v87
    %v439 = vunpack.c.l.b16 %v88
    %v440 = vunpack.c.h.b16 %v88
    %v441 = vunpack.c.l.b16 %v89
    %v442 = vunpack.c.h.b16 %v89
    %v443 = vunpack.c.l.b16 %v90
    %v444 = vunpack.c.h.b16 %v90
    %v445 = vunpack.c.l.b16 %v91
    %v446 = vunpack.c.h.b16 %v91
    %v447 = vunpack.c.l.b16 %v92
    %v448 = vunpack.c.h.b16 %v92
    %v449 = vunpack.c.l.b16 %v93
    %v450 = vunpack.c.h.b16 %v93
    %v451 = vunpack.c.l.b16 %v94
    %v452 = vunpack.c.h.b16 %v94
    %v453 = vunpack.c.l.b16 %v95
    %v454 = vunpack.c.h.b16 %v95
    %v455 = vunpack.c.l.b16 %v96
    %v456 = vunpack.c.h.b16 %v96
    %v457 = vunpack.c.l.b16 %v97
    %v458 = vunpack.c.h.b16 %v97
    %v459 = vunpack.c.l.b16 %v98
    %v460 = vunpack.c.h.b16 %v98
    %v461 = vunpack.c.l.b16 %v99
    %v462 = vunpack.c.h.b16 %v99
    %v463 = vunpack.c.l.b16 %v100
    %v464 = vunpack.c.h.b16 %v100
    %v465 = vunpack.c.l.b16 %v101
    %v466 = vunpack.c.h.b16 %v101
    %v467 = vunpack.c.l.b16 %v102
    %v468 = vunpack.c.h.b16 %v102
    %v469 = vunpack.c.l.b16 %v103
    %v470 = vunpack.c.h.b16 %v103
    %v471 = vunpack.c.l.b16 %v104
    %v472 = vunpack.c.h.b16 %v104
    %v473 = vunpack.c.l.b16 %v105
    %v474 = vunpack.c.h.b16 %v105
    %v475 = vunpack.c.l.b16 %v106
    %v476 = vunpack.c.h.b16 %v106
    %v477 = vunpack.c.l.b16 %v107
    %v478 = vunpack.c.h.b16 %v107
    %v479 = vunpack.c.l.b16 %v108
    %v480 = vunpack.c.h.b16 %v108
    %v481 = vunpack.c.l.b16 %v109
    %v482 = vunpack.c.h.b16 %v109
    %v483 = vunpack.c.l.b16 %v110
    %v484 = vunpack.c.h.b16 %v110
    %v485 = vunpack.c.l.b16 %v111
    %v486 = vunpack.c.h.b16 %v111
    %v487 = vunpack.c.l.b16 %v112
    %v488 = vunpack.c.h.b16 %v112
    %v489 = vunpack.c.l.b16 %v113
    %v490 = vunpack.c.h.b16 %v113
    %v491 = vunpack.c.l.b16 %v114
    %v492 = vunpack.c.h.b16 %v114
    %v493 = vunpack.c.l.b16 %v115
    %v494 = vunpack.c.h.b16 %v115
    %v495 = vunpack.c.l.b16 %v116
    %v496 = vunpack.c.h.b16 %v116
    %v497 = vunpack.c.l.b16 %v117
    %v498 = vunpack.c.h.b16 %v117
    %v499 = vunpack.c.l.b16 %v118
    %v500 = vunpack.c.h.b16 %v118
    %v501 = vunpack.c.l.b16 %v119
    %v502 = vunpack.c.h.b16 %v119
    %v503 = vunpack.c.l.b16 %v120
    %v504 = vunpack.c.h.b16 %v120
    %v505 = vunpack.c.l.b16 %v121
    %v506 = vunpack.c.h.b16 %v121
    %v507 = vunpack.c.l.b16 %v122
    %v508 = vunpack.c.h.b16 %v122
    %v509 = vunpack.c.l.b16 %v123
    %v510 = vunpack.c.h.b16 %v123
    %v511 = vunpack.c.l.b16 %v124
    %v512 = vunpack.c.h.b16 %v124
    %v513 = vunpack.c.l.b16 %v125
    %v514 = vunpack.c.h.b16 %v125
    %v515 = vunpack.c.l.b16 %v126
    %v516 = vunpack.c.h.b16 %v126
    %v517 = vunpack.c.l.b16 %v127
    %v518 = vunpack.c.h.b16 %v127
    %v519 = vunpack.c.l.b16 %v128
    %v520 = vunpack.c.h.b16 %v128
    %v521 = vunpack.c.l.b16 %v129
    %v522 = vunpack.c.h.b16 %v129
    %v523 = vunpack.c.l.b16 %v130
    %v524 = vunpack.c.h.b16 %v130
    %v525 = vunpack.c.l.b16 %v131
    %v526 = vunpack.c.h.b16 %v131
    %v527 = vunpack.c.l.b16 %v132
    %v528 = vunpack.c.h.b16 %v132
    %v529 = vunpack.c.l.b16 %v133
    %v530 = vunpack.c.h.b16 %v133
    %v531 = vunpack.c.l.b16 %v134
    %v532 = vunpack.c.h.b16 %v134
    %v533 = vunpack.c.l.b16 %v135
    %v534 = vunpack.c.h.b16 %v135
    %v535 = vunpack.c.l.b16 %v136
    %v536 = vunpack.c.h.b16 %v136
    %v537 = vunpack.c.l.b16 %v137
    %v538 = vunpack.c.h.b16 %v137
    %v539 = vunpack.c.l.b16 %v138
    %v540 = vunpack.c.h.b16 %v138
    %v541 = vunpack.c.l.b16 %v139
    %v542 = vunpack.c.h.b16 %v139
    %v543 = vunpack.c.l.b16 %v140
    %v544 = vunpack.c.h.b16 %v140
    %v545 = vunpack.c.l.b16 %v141
    %v546 = vunpack.c.h.b16 %v141
    %v547 = vunpack.c.l.b16 %v142
    %v548 = vunpack.c.h.b16 %v142
    %v549 = vunpack.c.l.b16 %v143
    %v550 = vunpack.c.h.b16 %v143
    %v551 = vunpack.c.l.b16 %v144
    %v552 = vunpack.c.h.b16 %v144
    %v553 = vunpack.c.l.b16 %v145
    %v554 = vunpack.c.h.b16 %v145
    %v555 = vunpack.c.l.b16 %v146
    %v556 = vunpack.c.h.b16 %v146
    %v557 = vunpack.c.l.b16 %v147
    %v558 = vunpack.c.h.b16 %v147
    %v559 = vunpack.c.l.b16 %v148
    %v560 = vunpack.c.h.b16 %v148
    %v561 = vunpack.c.l.b16 %v149
    %v562 = vunpack.c.h.b16 %v149
    %v563 = vunpack.c.l.b16 %v150
    %v564 = vunpack.c.h.b16 %v150
    %v565 = vunpack.c.l.b16 %v151
    %v566 = vunpack.c.h.b16 %v151
    %v567 = vunpack.c.l.b16 %v152
    %v568 = vunpack.c.h.b16 %v152
    %v569 = vunpack.c.l.b16 %v153
    %v570 = vunpack.c.h.b16 %v153
    %v571 = vunpack.c.l.b16 %v154
    %v572 = vunpack.c.h.b16 %v154
    %v573 = vunpack.c.l.b16 %v155
    %v574 = vunpack.c.h.b16 %v155
    %v575 = vunpack.c.l.b16 %v156
    %v576 = vunpack.c.h.b16 %v156
    %v577 = vunpack.c.l.b16 %v157
    %v578 = vunpack.c.h.b16 %v157
    %v579 = vunpack.c.l.b16 %v158
    %v580 = vunpack.c.h.b16 %v158
    %v581 = vunpack.c.l.b16 %v159
    %v582 = vunpack.c.h.b16 %v159
    %v583 = vunpack.c.l.b16 %v160
    %v584 = vunpack.c.h.b16 %v160
    %v585 = vpack.c.b16 %v337, %v329
    %v586 = vpack.c.b16 %v338, %v330
    %v587 = vpack.c.b16 %v339, %v331
    %v588 = vpack.c.b16 %v340, %v332
    %v589 = vpack.c.b16 %v341, %v333
    %v590 = vpack.c.b16 %v342, %v334
    %v591 = vpack.c.b16 %v343, %v335
    %v592 = vpack.c.b16 %v344, %v336
    %v593 = vpack.c.b16 %v353, %v345
    %v594 = vpack.c.b16 %v354, %v346
    %v595 = vpack.c.b16 %v355, %v347
    %v596 = vpack.c.b16 %v356, %v348
    %v597 = vpack.c.b16 %v357, %v349
    %v598 = vpack.c.b16 %v358, %v350
    %v599 = vpack.c.b16 %v359, %v351
    %v600 = vpack.c.b16 %v360, %v352
    %v601 = vpack.c.b16 %v369, %v361
    %v602 = vpack.c.b16 %v370, %v362
    %v603 = vpack.c.b16 %v371, %v363
    %v604 = vpack.c.b16 %v372, %v364
    %v605 = vpack.c.b16 %v373, %v365
    %v606 = vpack.c.b16 %v374, %v366
    %v607 = vpack.c.b16 %v375, %v367
    %v608 = vpack.c.b16 %v376, %v368
    %v609 = vpack.c.b16 %v385, %v377
    %v610 = vpack.c.b16 %v386, %v378
    %v611 = vpack.c.b16 %v387, %v379
    %v612 = vpack.c.b16 %v388, %v380
    %v613 = vpack.c.b16 %v389, %v381
    %v614 = vpack.c.b16 %v390, %v382
    %v615 = vpack.c.b16 %v391, %v383
    %v616 = vpack.c.b16 %v392, %v384
    %v617 = vpack.c.b16 %v401, %v393
    %v618 = vpack.c.b16 %v402, %v394
    %v619 = vpack.c.b16 %v403, %v395
    %v620 = vpack.c.b16 %v404, %v396
    %v621 = vpack.c.b16 %v405, %v397
    %v622 = vpack.c.b16 %v406, %v398
    %v623 = vpack.c.b16 %v407, %v399
    %v624 = vpack.c.b16 %v408, %v400
    %v625 = vpack.c.b16 %v417, %v409
    %v626 = vpack.c.b16 %v418, %v410
    %v627 = vpack.c.b16 %v419, %v411
    %v628 = vpack.c.b16 %v420, %v412
    %v629 = vpack.c.b16 %v421, %v413
    %v630 = vpack.c.b16 %v422, %v414
    %v631 = vpack.c.b16 %v423, %v415
    %v632 = vpack.c.b16 %v424, %v416
    %v633 = vpack.c.b16 %v433, %v425
    %v634 = vpack.c.b16 %v434, %v426
    %v635 = vpack.c.b16 %v435, %v427
    %v636 = vpack.c.b16 %v436, %v428
    %v637 = vpack.c.b16 %v437, %v429
    %v638 = vpack.c.b16 %v438, %v430
    %v639 = vpack.c.b16 %v439, %v431
    %v640 = vpack.c.b16 %v440, %v432
    %v641 = vpack.c.b16 %v449, %v441
    %v642 = vpack.c.b16 %v450, %v442
    %v643 = vpack.c.b16 %v451, %v443
    %v644 = vpack.c.b16 %v452, %v444
    %v645 = vpack.c.b16 %v453, %v445
    %v646 = vpack.c.b16 %v454, %v446
    %v647 = vpack.c.b16 %v455, %v447
    %v648 = vpack.c.b16 %v456, %v448
    %v649 = vpack.c.b16 %v465, %v457
    %v650 = vpack.c.b16 %v466, %v458
    %v651 = vpack.c.b16 %v467, %v459
    %v652 = vpack.c.b16 %v468, %v460
    %v653 = vpack.c.b16 %v469, %v461
    %v654 = vpack.c.b16 %v470, %v462
    %v655 = vpack.c.b16 %v471, %v463
    %v656 = vpack.c.b16 %v472, %v464
    %v657 = vpack.c.b16 %v481, %v473
    %v658 = vpack.c.b16 %v482, %v474
    %v659 = vpack.c.b16 %v483, %v475
    %v660 = vpack.c.b16 %v484, %v476
    %v661 = vpack.c.b16 %v485, %v477
    %v662 = vpack.c.b16 %v486, %v478
    %v663 = vpack.c.b16 %v487, %v479
    %v664 = vpack.c.b16 %v488, %v480
    %v665 = vpack.c.b16 %v497, %v489
    %v666 = vpack.c.b16 %v498, %v490
    %v667 = vpack.c.b16 %v499, %v491
    %v668 = vpack.c.b16 %v500, %v492
    %v669 = vpack.c.b16 %v501, %v493
    %v670 = vpack.c.b16 %v502, %v494
    %v671 = vpack.c.b16 %v503, %v495
    %v672 = vpack.c.b16 %v504, %v496
    %v673 = vpack.c.b16 %v513, %v505
    %v674 = vpack.c.b16 %v514, %v506
    %v675 = vpack.c.b16 %v515, %v507
    %v676 = vpack.c.b16 %v516, %v508
    %v677 = vpack.c.b16 %v517, %v509
    %v678 = vpack.c.b16 %v518, %v510
    %v679 = vpack.c.b16 %v519, %v511
    %v680 = vpack.c.b16 %v520, %v512
    %v681 = vpack.c.b16 %v529, %v521
    %v682 = vpack.c.b16 %v530, %v522
    %v683 = vpack.c.b16 %v531, %v523
    %v684 = vpack.c.b16 %v532, %v524
    %v685 = vpack.c.b16 %v533, %v525
    %v686 = vpack.c.b16 %v534, %v526
    %v687 = vpack.c.b16 %v535, %v527
    %v688 = vpack.c.b16 %v536, %v528
    %v689 = vpack.c.b16 %v545, %v537
    %v690 = vpack.c.b16 %v546, %v538
    %v691 = vpack.c.b16 %v547, %v539
    %v692 = vpack.c.b16 %v548, %v540
    %v693 = vpack.c.b16 %v549, %v541
    %v694 = vpack.c.b16 %v550, %v542
    %v695 = vpack.c.b16 %v551, %v543
    %v696 = vpack.c.b16 %v552, %v544
    %v697 = vpack.c.b16 %v561, %v553
    %v698 = vpack.c.b16 %v562, %v554
    %v699 = vpack.c.b16 %v563, %v555
    %v700 = vpack.c.b16 %v564, %v556
    %v701 = vpack.c.b16 %v565, %v557
    %v702 = vpack.c.b16 %v566, %v558
    %v703 = vpack.c.b16 %v567, %v559
    %v704 = vpack.c.b16 %v568, %v560
    %v705 = vpack.c.b16 %v577, %v569
    %v706 = vpack.c.b16 %v578, %v570
    %v707 = vpack.c.b16 %v579, %v571
    %v708 = vpack.c.b16 %v580, %v572
    %v709 = vpack.c.b16 %v581, %v573
    %v710 = vpack.c.b16 %v582, %v574
    %v711 = vpack.c.b16 %v583, %v575
    %v712 = vpack.c.b16 %v584, %v576
    %841 = vmatprep.subr.bf16.mxu0 %v642
    %842 = vmatpush1.bf16.msra.mxu0 %v641
    %843 = vmatprep.subr.bf16.mxu0 %v634
    %844 = vmatpush1.bf16.msra.mxu0 %v633
    %845 = vmatprep.subr.bf16.mxu0 %v626
    %846 = vmatpush1.bf16.msra.mxu0 %v625
    %847 = vmatprep.subr.bf16.mxu0 %v618
    %848 = vmatpush1.bf16.msra.mxu0 %v617
    %849 = vmatprep.subr.bf16.mxu0 %v610
    %850 = vmatpush1.bf16.msra.mxu0 %v609
    %851 = vmatprep.subr.bf16.mxu0 %v602
    %852 = vmatpush1.bf16.msra.mxu0 %v601
    %853 = vmatprep.subr.bf16.mxu0 %v594
    %854 = vmatpush1.bf16.msra.mxu0 %v593
    %855 = vmatprep.subr.bf16.mxu0 %v586
    %856 = vmatpush1.bf16.msra.mxu0 %v585
    %857 = vmatprep.subr.bf16.mxu0 %v706
    %858 = vmatpush2.bf16.msra.mxu0 %v705
    %859 = vmatprep.subr.bf16.mxu0 %v698
    %860 = vmatpush2.bf16.msra.mxu0 %v697
    %861 = vmatprep.subr.bf16.mxu0 %v690
    %862 = vmatpush2.bf16.msra.mxu0 %v689
    %863 = vmatprep.subr.bf16.mxu0 %v682
    %864 = vmatpush2.bf16.msra.mxu0 %v681
    %865 = vmatprep.subr.bf16.mxu0 %v674
    %866 = vmatpush2.bf16.msra.mxu0 %v673
    %867 = vmatprep.subr.bf16.mxu0 %v666
    %868 = vmatpush2.bf16.msra.mxu0 %v665
    %869 = vmatprep.subr.bf16.mxu0 %v658
    %870 = vmatpush2.bf16.msra.mxu0 %v657
    %871 = vmatprep.subr.bf16.mxu0 %v650
    %872 = vmatpush2.bf16.msra.mxu0 %v649
    %873 = vmatprep.mubr.bf16.mxu0 %v186
    %874 = vmatmul.mubr.bf16.gmra.mxu0 %v185
    %v875 = vpop.f32.mrf.mxu0
    %v876 = vadd.f32 0.0, %v875
    %v877 = vpop.f32.mrf.mxu0
    %v878 = vadd.f32 0.0, %v877
    %v879 = vpop.f32.mrf.mxu0
    %v880 = vadd.f32 0.0, %v879
    %v881 = vpop.f32.mrf.mxu0
    %v882 = vadd.f32 0.0, %v881
    %883 = vmatprep.mubr.bf16.mxu0 %v188
    %884 = vmatmul.mubr.bf16.gmra.mxu0 %v187
    %v885 = vpop.f32.mrf.mxu0
    %v886 = vadd.f32 0.0, %v885
    %v887 = vpop.f32.mrf.mxu0
    %v888 = vadd.f32 0.0, %v887
    %v889 = vpop.f32.mrf.mxu0
    %v890 = vadd.f32 0.0, %v889
    %v891 = vpop.f32.mrf.mxu0
    %v892 = vadd.f32 0.0, %v891
    %893 = vmatprep.mubr.bf16.mxu0 %v190
    %894 = vmatmul.mubr.bf16.gmra.mxu0 %v189
    %v895 = vpop.f32.mrf.mxu0
    %v896 = vadd.f32 0.0, %v895
    %v897 = vpop.f32.mrf.mxu0
    %v898 = vadd.f32 0.0, %v897
    %v899 = vpop.f32.mrf.mxu0
    %v900 = vadd.f32 0.0, %v899
    %v901 = vpop.f32.mrf.mxu0
    %v902 = vadd.f32 0.0, %v901
    %903 = vmatprep.mubr.bf16.mxu0 %v192
    %904 = vmatmul.mubr.bf16.gmra.mxu0 %v191
    %v905 = vpop.f32.mrf.mxu0
    %v906 = vadd.f32 0.0, %v905
    %v907 = vpop.f32.mrf.mxu0
    %v908 = vadd.f32 0.0, %v907
    %v909 = vpop.f32.mrf.mxu0
    %v910 = vadd.f32 0.0, %v909
    %v911 = vpop.f32.mrf.mxu0
    %v912 = vadd.f32 0.0, %v911
    %913 = vdwg.mxu0
    %914 = vmatprep.subr.bf16.mxu0 %v644
    %915 = vmatpush1.bf16.msra.mxu0 %v643
    %916 = vmatprep.subr.bf16.mxu0 %v636
    %917 = vmatpush1.bf16.msra.mxu0 %v635
    %918 = vmatprep.subr.bf16.mxu0 %v628
    %919 = vmatpush1.bf16.msra.mxu0 %v627
    %920 = vmatprep.subr.bf16.mxu0 %v620
    %921 = vmatpush1.bf16.msra.mxu0 %v619
    %922 = vmatprep.subr.bf16.mxu0 %v612
    %923 = vmatpush1.bf16.msra.mxu0 %v611
    %924 = vmatprep.subr.bf16.mxu0 %v604
    %925 = vmatpush1.bf16.msra.mxu0 %v603
    %926 = vmatprep.subr.bf16.mxu0 %v596
    %927 = vmatpush1.bf16.msra.mxu0 %v595
    %928 = vmatprep.subr.bf16.mxu0 %v588
    %929 = vmatpush1.bf16.msra.mxu0 %v587
    %930 = vmatprep.subr.bf16.mxu0 %v708
    %931 = vmatpush2.bf16.msra.mxu0 %v707
    %932 = vmatprep.subr.bf16.mxu0 %v700
    %933 = vmatpush2.bf16.msra.mxu0 %v699
    %934 = vmatprep.subr.bf16.mxu0 %v692
    %935 = vmatpush2.bf16.msra.mxu0 %v691
    %936 = vmatprep.subr.bf16.mxu0 %v684
    %937 = vmatpush2.bf16.msra.mxu0 %v683
    %938 = vmatprep.subr.bf16.mxu0 %v676
    %939 = vmatpush2.bf16.msra.mxu0 %v675
    %940 = vmatprep.subr.bf16.mxu0 %v668
    %941 = vmatpush2.bf16.msra.mxu0 %v667
    %942 = vmatprep.subr.bf16.mxu0 %v660
    %943 = vmatpush2.bf16.msra.mxu0 %v659
    %944 = vmatprep.subr.bf16.mxu0 %v652
    %945 = vmatpush2.bf16.msra.mxu0 %v651
    %946 = vmatprep.mubr.bf16.mxu0 %v186
    %947 = vmatmul.mubr.bf16.gmra.mxu0 %v185
    %v948 = vpop.f32.mrf.mxu0
    %v949 = vadd.f32 0.0, %v948
    %v950 = vpop.f32.mrf.mxu0
    %v951 = vadd.f32 0.0, %v950
    %v952 = vpop.f32.mrf.mxu0
    %v953 = vadd.f32 0.0, %v952
    %v954 = vpop.f32.mrf.mxu0
    %v955 = vadd.f32 0.0, %v954
    %956 = vmatprep.mubr.bf16.mxu0 %v188
    %957 = vmatmul.mubr.bf16.gmra.mxu0 %v187
    %v958 = vpop.f32.mrf.mxu0
    %v959 = vadd.f32 0.0, %v958
    %v960 = vpop.f32.mrf.mxu0
    %v961 = vadd.f32 0.0, %v960
    %v962 = vpop.f32.mrf.mxu0
    %v963 = vadd.f32 0.0, %v962
    %v964 = vpop.f32.mrf.mxu0
    %v965 = vadd.f32 0.0, %v964
    %966 = vmatprep.mubr.bf16.mxu0 %v190
    %967 = vmatmul.mubr.bf16.gmra.mxu0 %v189
    %v968 = vpop.f32.mrf.mxu0
    %v969 = vadd.f32 0.0, %v968
    %v970 = vpop.f32.mrf.mxu0
    %v971 = vadd.f32 0.0, %v970
    %v972 = vpop.f32.mrf.mxu0
    %v973 = vadd.f32 0.0, %v972
    %v974 = vpop.f32.mrf.mxu0
    %v975 = vadd.f32 0.0, %v974
    %976 = vmatprep.mubr.bf16.mxu0 %v192
    %977 = vmatmul.mubr.bf16.gmra.mxu0 %v191
    %v978 = vpop.f32.mrf.mxu0
    %v979 = vadd.f32 0.0, %v978
    %v980 = vpop.f32.mrf.mxu0
    %v981 = vadd.f32 0.0, %v980
    %v982 = vpop.f32.mrf.mxu0
    %v983 = vadd.f32 0.0, %v982
    %v984 = vpop.f32.mrf.mxu0
    %v985 = vadd.f32 0.0, %v984
    %986 = vdwg.mxu0
    %987 = vmatprep.subr.bf16.mxu0 %v646
    %988 = vmatpush1.bf16.msra.mxu0 %v645
    %989 = vmatprep.subr.bf16.mxu0 %v638
    %990 = vmatpush1.bf16.msra.mxu0 %v637
    %991 = vmatprep.subr.bf16.mxu0 %v630
    %992 = vmatpush1.bf16.msra.mxu0 %v629
    %993 = vmatprep.subr.bf16.mxu0 %v622
    %994 = vmatpush1.bf16.msra.mxu0 %v621
    %995 = vmatprep.subr.bf16.mxu0 %v614
    %996 = vmatpush1.bf16.msra.mxu0 %v613
    %997 = vmatprep.subr.bf16.mxu0 %v606
    %998 = vmatpush1.bf16.msra.mxu0 %v605
    %999 = vmatprep.subr.bf16.mxu0 %v598
    %1000 = vmatpush1.bf16.msra.mxu0 %v597
    %1001 = vmatprep.subr.bf16.mxu0 %v590
    %1002 = vmatpush1.bf16.msra.mxu0 %v589
    %1003 = vmatprep.subr.bf16.mxu0 %v710
    %1004 = vmatpush2.bf16.msra.mxu0 %v709
    %1005 = vmatprep.subr.bf16.mxu0 %v702
    %1006 = vmatpush2.bf16.msra.mxu0 %v701
    %1007 = vmatprep.subr.bf16.mxu0 %v694
    %1008 = vmatpush2.bf16.msra.mxu0 %v693
    %1009 = vmatprep.subr.bf16.mxu0 %v686
    %1010 = vmatpush2.bf16.msra.mxu0 %v685
    %1011 = vmatprep.subr.bf16.mxu0 %v678
    %1012 = vmatpush2.bf16.msra.mxu0 %v677
    %1013 = vmatprep.subr.bf16.mxu0 %v670
    %1014 = vmatpush2.bf16.msra.mxu0 %v669
    %1015 = vmatprep.subr.bf16.mxu0 %v662
    %1016 = vmatpush2.bf16.msra.mxu0 %v661
    %1017 = vmatprep.subr.bf16.mxu0 %v654
    %1018 = vmatpush2.bf16.msra.mxu0 %v653
    %1019 = vmatprep.mubr.bf16.mxu0 %v186
    %1020 = vmatmul.mubr.bf16.gmra.mxu0 %v185
    %v1021 = vpop.f32.mrf.mxu0
    %v1022 = vadd.f32 0.0, %v1021
    %v1023 = vpop.f32.mrf.mxu0
    %v1024 = vadd.f32 0.0, %v1023
    %v1025 = vpop.f32.mrf.mxu0
    %v1026 = vadd.f32 0.0, %v1025
    %v1027 = vpop.f32.mrf.mxu0
    %v1028 = vadd.f32 0.0, %v1027
    %1029 = vmatprep.mubr.bf16.mxu0 %v188
    %1030 = vmatmul.mubr.bf16.gmra.mxu0 %v187
    %v1031 = vpop.f32.mrf.mxu0
    %v1032 = vadd.f32 0.0, %v1031
    %v1033 = vpop.f32.mrf.mxu0
    %v1034 = vadd.f32 0.0, %v1033
    %v1035 = vpop.f32.mrf.mxu0
    %v1036 = vadd.f32 0.0, %v1035
    %v1037 = vpop.f32.mrf.mxu0
    %v1038 = vadd.f32 0.0, %v1037
    %1039 = vmatprep.mubr.bf16.mxu0 %v190
    %1040 = vmatmul.mubr.bf16.gmra.mxu0 %v189
    %v1041 = vpop.f32.mrf.mxu0
    %v1042 = vadd.f32 0.0, %v1041
    %v1043 = vpop.f32.mrf.mxu0
    %v1044 = vadd.f32 0.0, %v1043
    %v1045 = vpop.f32.mrf.mxu0
    %v1046 = vadd.f32 0.0, %v1045
    %v1047 = vpop.f32.mrf.mxu0
    %v1048 = vadd.f32 0.0, %v1047
    %1049 = vmatprep.mubr.bf16.mxu0 %v192
    %1050 = vmatmul.mubr.bf16.gmra.mxu0 %v191
    %v1051 = vpop.f32.mrf.mxu0
    %v1052 = vadd.f32 0.0, %v1051
    %v1053 = vpop.f32.mrf.mxu0
    %v1054 = vadd.f32 0.0, %v1053
    %v1055 = vpop.f32.mrf.mxu0
    %v1056 = vadd.f32 0.0, %v1055
    %v1057 = vpop.f32.mrf.mxu0
    %v1058 = vadd.f32 0.0, %v1057
    %1059 = vdwg.mxu0
    %1060 = vmatprep.subr.bf16.mxu0 %v648
    %1061 = vmatpush1.bf16.msra.mxu0 %v647
    %1062 = vmatprep.subr.bf16.mxu0 %v640
    %1063 = vmatpush1.bf16.msra.mxu0 %v639
    %1064 = vmatprep.subr.bf16.mxu0 %v632
    %1065 = vmatpush1.bf16.msra.mxu0 %v631
    %1066 = vmatprep.subr.bf16.mxu0 %v624
    %1067 = vmatpush1.bf16.msra.mxu0 %v623
    %1068 = vmatprep.subr.bf16.mxu0 %v616
    %1069 = vmatpush1.bf16.msra.mxu0 %v615
    %1070 = vmatprep.subr.bf16.mxu0 %v608
    %1071 = vmatpush1.bf16.msra.mxu0 %v607
    %1072 = vmatprep.subr.bf16.mxu0 %v600
    %1073 = vmatpush1.bf16.msra.mxu0 %v599
    %1074 = vmatprep.subr.bf16.mxu0 %v592
    %1075 = vmatpush1.bf16.msra.mxu0 %v591
    %1076 = vmatprep.subr.bf16.mxu0 %v712
    %1077 = vmatpush2.bf16.msra.mxu0 %v711
    %1078 = vmatprep.subr.bf16.mxu0 %v704
    %1079 = vmatpush2.bf16.msra.mxu0 %v703
    %1080 = vmatprep.subr.bf16.mxu0 %v696
    %1081 = vmatpush2.bf16.msra.mxu0 %v695
    %1082 = vmatprep.subr.bf16.mxu0 %v688
    %1083 = vmatpush2.bf16.msra.mxu0 %v687
    %1084 = vmatprep.subr.bf16.mxu0 %v680
    %1085 = vmatpush2.bf16.msra.mxu0 %v679
    %1086 = vmatprep.subr.bf16.mxu0 %v672
    %1087 = vmatpush2.bf16.msra.mxu0 %v671
    %1088 = vmatprep.subr.bf16.mxu0 %v664
    %1089 = vmatpush2.bf16.msra.mxu0 %v663
    %1090 = vmatprep.subr.bf16.mxu0 %v656
    %1091 = vmatpush2.bf16.msra.mxu0 %v655
    %1092 = vmatprep.mubr.bf16.mxu0 %v186
    %1093 = vmatmul.mubr.bf16.gmra.mxu0 %v185
    %v1094 = vpop.f32.mrf.mxu0
    %v1095 = vadd.f32 0.0, %v1094
    %v1096 = vpop.f32.mrf.mxu0
    %v1097 = vadd.f32 0.0, %v1096
    %v1098 = vpop.f32.mrf.mxu0
    %v1099 = vadd.f32 0.0, %v1098
    %v1100 = vpop.f32.mrf.mxu0
    %v1101 = vadd.f32 0.0, %v1100
    %1102 = vmatprep.mubr.bf16.mxu0 %v188
    %1103 = vmatmul.mubr.bf16.gmra.mxu0 %v187
    %v1104 = vpop.f32.mrf.mxu0
    %v1105 = vadd.f32 0.0, %v1104
    %v1106 = vpop.f32.mrf.mxu0
    %v1107 = vadd.f32 0.0, %v1106
    %v1108 = vpop.f32.mrf.mxu0
    %v1109 = vadd.f32 0.0, %v1108
    %v1110 = vpop.f32.mrf.mxu0
    %v1111 = vadd.f32 0.0, %v1110
    %1112 = vmatprep.mubr.bf16.mxu0 %v190
    %1113 = vmatmul.mubr.bf16.gmra.mxu0 %v189
    %v1114 = vpop.f32.mrf.mxu0
    %v1115 = vadd.f32 0.0, %v1114
    %v1116 = vpop.f32.mrf.mxu0
    %v1117 = vadd.f32 0.0, %v1116
    %v1118 = vpop.f32.mrf.mxu0
    %v1119 = vadd.f32 0.0, %v1118
    %v1120 = vpop.f32.mrf.mxu0
    %v1121 = vadd.f32 0.0, %v1120
    %1122 = vmatprep.mubr.bf16.mxu0 %v192
    %1123 = vmatmul.mubr.bf16.gmra.mxu0 %v191
    %v1124 = vpop.f32.mrf.mxu0
    %v1125 = vadd.f32 0.0, %v1124
    %v1126 = vpop.f32.mrf.mxu0
    %v1127 = vadd.f32 0.0, %v1126
    %v1128 = vpop.f32.mrf.mxu0
    %v1129 = vadd.f32 0.0, %v1128
    %v1130 = vpop.f32.mrf.mxu0
    %v1131 = vadd.f32 0.0, %v1130
    %1132 = vdwg.mxu0
    %v1133 = vlaneseq
    %v1134 = vshrl.u32 %v1133, 7
    %v1135 = vadd.s32 %v1134, 8
    %v1136 = vadd.s32 %v1134, 16
    %v1137 = vadd.s32 %v1134, 24
    %v1138 = vadd.s32 %v1134, 32
    %v1139 = vadd.s32 %v1134, 40
    %v1140 = vadd.s32 %v1134, 48
    %v1141 = vadd.s32 %v1134, 56
    %vm1142 = vcmp.lt.s32.totalorder %v1134, 0
    %v1143 = vsub.s32 0, %v1134
    %v1144 = vsel %vm1142, %v1143, %v1134
    %v1145 = vshrl.u32 %v1144, 5
    %v1146 = vand.u32 %v1144, 31
    %v1147 = vsub.s32 0, %v1146
    %v1148 = vsel %vm1142, %v1147, %v1146
    %vm1149 = vcmp.lt.s32.totalorder %v1135, 0
    %v1150 = vsub.s32 0, %v1135
    %v1151 = vsel %vm1149, %v1150, %v1135
    %v1152 = vshrl.u32 %v1151, 5
    %v1153 = vand.u32 %v1151, 31
    %v1154 = vsub.s32 0, %v1153
    %v1155 = vsel %vm1149, %v1154, %v1153
    %vm1156 = vcmp.lt.s32.totalorder %v1136, 0
    %v1157 = vsub.s32 0, %v1136
    %v1158 = vsel %vm1156, %v1157, %v1136
    %v1159 = vshrl.u32 %v1158, 5
    %v1160 = vand.u32 %v1158, 31
    %v1161 = vsub.s32 0, %v1160
    %v1162 = vsel %vm1156, %v1161, %v1160
    %vm1163 = vcmp.lt.s32.totalorder %v1137, 0
    %v1164 = vsub.s32 0, %v1137
    %v1165 = vsel %vm1163, %v1164, %v1137
    %v1166 = vshrl.u32 %v1165, 5
    %v1167 = vand.u32 %v1165, 31
    %v1168 = vsub.s32 0, %v1167
    %v1169 = vsel %vm1163, %v1168, %v1167
    %vm1170 = vcmp.lt.s32.totalorder %v1138, 0
    %v1171 = vsub.s32 0, %v1138
    %v1172 = vsel %vm1170, %v1171, %v1138
    %v1173 = vshrl.u32 %v1172, 5
    %v1174 = vand.u32 %v1172, 31
    %v1175 = vsub.s32 0, %v1174
    %v1176 = vsel %vm1170, %v1175, %v1174
    %vm1177 = vcmp.lt.s32.totalorder %v1139, 0
    %v1178 = vsub.s32 0, %v1139
    %v1179 = vsel %vm1177, %v1178, %v1139
    %v1180 = vshrl.u32 %v1179, 5
    %v1181 = vand.u32 %v1179, 31
    %v1182 = vsub.s32 0, %v1181
    %v1183 = vsel %vm1177, %v1182, %v1181
    %vm1184 = vcmp.lt.s32.totalorder %v1140, 0
    %v1185 = vsub.s32 0, %v1140
    %v1186 = vsel %vm1184, %v1185, %v1140
    %v1187 = vshrl.u32 %v1186, 5
    %v1188 = vand.u32 %v1186, 31
    %v1189 = vsub.s32 0, %v1188
    %v1190 = vsel %vm1184, %v1189, %v1188
    %vm1191 = vcmp.lt.s32.totalorder %v1141, 0
    %v1192 = vsub.s32 0, %v1141
    %v1193 = vsel %vm1191, %v1192, %v1141
    %v1194 = vshrl.u32 %v1193, 5
    %v1195 = vand.u32 %v1193, 31
    %v1196 = vsub.s32 0, %v1195
    %v1197 = vsel %vm1191, %v1196, %v1195
    %vm1198 = vcmp.ne.s32.totalorder %v1148, 0
    %vm1199 = vcmp.ne.s32.totalorder %v1155, 0
    %vm1200 = vcmp.ne.s32.totalorder %v1162, 0
    %vm1201 = vcmp.ne.s32.totalorder %v1169, 0
    %vm1202 = vcmp.ne.s32.totalorder %v1176, 0
    %vm1203 = vcmp.ne.s32.totalorder %v1183, 0
    %vm1204 = vcmp.ne.s32.totalorder %v1190, 0
    %vm1205 = vcmp.ne.s32.totalorder %v1197, 0
    %vm1206 = vcmp.lt.s32.totalorder %v1148, 0
    %vm1207 = vcmp.lt.s32.totalorder %v1155, 0
    %vm1208 = vcmp.lt.s32.totalorder %v1162, 0
    %vm1209 = vcmp.lt.s32.totalorder %v1169, 0
    %vm1210 = vcmp.lt.s32.totalorder %v1176, 0
    %vm1211 = vcmp.lt.s32.totalorder %v1183, 0
    %vm1212 = vcmp.lt.s32.totalorder %v1190, 0
    %vm1213 = vcmp.lt.s32.totalorder %v1197, 0
    %vm1214 = vmand %vm1206, %vm1198
    %vm1215 = vmand %vm1207, %vm1199
    %vm1216 = vmand %vm1208, %vm1200
    %vm1217 = vmand %vm1209, %vm1201
    %vm1218 = vmand %vm1210, %vm1202
    %vm1219 = vmand %vm1211, %vm1203
    %vm1220 = vmand %vm1212, %vm1204
    %vm1221 = vmand %vm1213, %vm1205
    %v1222 = vadd.s32 %v1148, 32
    %v1223 = vadd.s32 %v1155, 32
    %v1224 = vadd.s32 %v1162, 32
    %v1225 = vadd.s32 %v1169, 32
    %v1226 = vadd.s32 %v1176, 32
    %v1227 = vadd.s32 %v1183, 32
    %v1228 = vadd.s32 %v1190, 32
    %v1229 = vadd.s32 %v1197, 32
    %v1230 = vsel %vm1214, %v1222, %v1148
    %v1231 = vsel %vm1215, %v1223, %v1155
    %v1232 = vsel %vm1216, %v1224, %v1162
    %v1233 = vsel %vm1217, %v1225, %v1169
    %v1234 = vsel %vm1218, %v1226, %v1176
    %v1235 = vsel %vm1219, %v1227, %v1183
    %v1236 = vsel %vm1220, %v1228, %v1190
    %v1237 = vsel %vm1221, %v1229, %v1197
    %vm1238 = vcmp.ne.s32.totalorder %v1230, 0
    %vm1239 = vcmp.ne.s32.totalorder %v1231, 0
    %vm1240 = vcmp.ne.s32.totalorder %v1232, 0
    %vm1241 = vcmp.ne.s32.totalorder %v1233, 0
    %vm1242 = vcmp.ne.s32.totalorder %v1234, 0
    %vm1243 = vcmp.ne.s32.totalorder %v1235, 0
    %vm1244 = vcmp.ne.s32.totalorder %v1236, 0
    %vm1245 = vcmp.ne.s32.totalorder %v1237, 0
    %v1248 = vrot.slane %v1056, 7
    %v1249 = vrot.slane %v1058, 7
    %vm1266 = vcmask 1040384
    %v1267 = vrot.slane %v1022, 7
    %v1268 = vrot.slane %v1024, 7
    %v1269 = vrot.slane %v1026, 7
    %v1270 = vsel %vm1266, %v1267, %v1269
    %v1271 = vrot.slane %v1028, 7
    %v1272 = vsel %vm1266, %v1268, %v1271
    %v1273 = vrot.slane %v1032, 7
    %v1274 = vsel %vm1266, %v1269, %v1273
    %v1275 = vrot.slane %v1034, 7
    %v1276 = vsel %vm1266, %v1271, %v1275
    %v1277 = vrot.slane %v1036, 7
    %v1278 = vsel %vm1266, %v1273, %v1277
    %v1279 = vrot.slane %v1038, 7
    %v1280 = vsel %vm1266, %v1275, %v1279
    %v1281 = vrot.slane %v1042, 7
    %v1282 = vsel %vm1266, %v1277, %v1281
    %v1283 = vrot.slane %v1044, 7
    %v1284 = vsel %vm1266, %v1279, %v1283
    %v1285 = vrot.slane %v1046, 7
    %v1286 = vsel %vm1266, %v1281, %v1285
    %v1287 = vrot.slane %v1048, 7
    %v1288 = vsel %vm1266, %v1283, %v1287
    %v1289 = vrot.slane %v1052, 7
    %v1290 = vsel %vm1266, %v1285, %v1289
    %v1291 = vrot.slane %v1054, 7
    %v1292 = vsel %vm1266, %v1287, %v1291
    %v1293 = vsel %vm1266, %v1289, %v1248
    %v1294 = vsel %vm1266, %v1291, %v1249
    %v1311 = vsel %vm1266, %v1248, %v1267
    %v1312 = vsel %vm1266, %v1249, %v1268
    %v1313 = vsel %vm1238, %v1311, 0.0
    %v1314 = vsel %vm1238, %v1312, 0.0
    %v1315 = vsel %vm1239, %v1270, 0.0
    %v1316 = vsel %vm1239, %v1272, 0.0
    %v1317 = vsel %vm1240, %v1274, 0.0
    %v1318 = vsel %vm1240, %v1276, 0.0
    %v1319 = vsel %vm1241, %v1278, 0.0
    %v1320 = vsel %vm1241, %v1280, 0.0
    %v1321 = vsel %vm1242, %v1282, 0.0
    %v1322 = vsel %vm1242, %v1284, 0.0
    %v1323 = vsel %vm1243, %v1286, 0.0
    %v1324 = vsel %vm1243, %v1288, 0.0
    %v1325 = vsel %vm1244, %v1290, 0.0
    %v1326 = vsel %vm1244, %v1292, 0.0
    %v1327 = vsel %vm1245, %v1293, 0.0
    %v1328 = vsel %vm1245, %v1294, 0.0
    %vm1329 = vcmp.ne.s32.totalorder %v1230, 31
    %vm1330 = vcmp.ne.s32.totalorder %v1231, 31
    %vm1331 = vcmp.ne.s32.totalorder %v1232, 31
    %vm1332 = vcmp.ne.s32.totalorder %v1233, 31
    %vm1333 = vcmp.ne.s32.totalorder %v1234, 31
    %vm1334 = vcmp.ne.s32.totalorder %v1235, 31
    %vm1335 = vcmp.ne.s32.totalorder %v1236, 31
    %vm1336 = vcmp.ne.s32.totalorder %v1237, 31
    %vm1353 = vcmask 1046528
    %v1354 = vrot.slane %v1095, 1
    %v1355 = vrot.slane %v1099, 1
    %v1356 = vsel %vm1353, %v1354, %v1355
    %v1357 = vrot.slane %v1097, 1
    %v1358 = vrot.slane %v1101, 1
    %v1359 = vsel %vm1353, %v1357, %v1358
    %v1360 = vrot.slane %v1105, 1
    %v1361 = vsel %vm1353, %v1355, %v1360
    %v1362 = vrot.slane %v1107, 1
    %v1363 = vsel %vm1353, %v1358, %v1362
    %v1364 = vrot.slane %v1109, 1
    %v1365 = vsel %vm1353, %v1360, %v1364
    %v1366 = vrot.slane %v1111, 1
    %v1367 = vsel %vm1353, %v1362, %v1366
    %v1368 = vrot.slane %v1115, 1
    %v1369 = vsel %vm1353, %v1364, %v1368
    %v1370 = vrot.slane %v1117, 1
    %v1371 = vsel %vm1353, %v1366, %v1370
    %v1372 = vrot.slane %v1119, 1
    %v1373 = vsel %vm1353, %v1368, %v1372
    %v1374 = vrot.slane %v1121, 1
    %v1375 = vsel %vm1353, %v1370, %v1374
    %v1376 = vrot.slane %v1125, 1
    %v1377 = vsel %vm1353, %v1372, %v1376
    %v1378 = vrot.slane %v1127, 1
    %v1379 = vsel %vm1353, %v1374, %v1378
    %v1380 = vrot.slane %v1129, 1
    %v1381 = vsel %vm1353, %v1376, %v1380
    %v1382 = vrot.slane %v1131, 1
    %v1383 = vsel %vm1353, %v1378, %v1382
    %v1402 = vsel %vm1353, %v1380, %v1354
    %v1403 = vsel %vm1353, %v1382, %v1357
    %v1404 = vsel %vm1329, %v1356, 0.0
    %v1405 = vsel %vm1329, %v1359, 0.0
    %v1406 = vsel %vm1330, %v1361, 0.0
    %v1407 = vsel %vm1330, %v1363, 0.0
    %v1408 = vsel %vm1331, %v1365, 0.0
    %v1409 = vsel %vm1331, %v1367, 0.0
    %v1410 = vsel %vm1332, %v1369, 0.0
    %v1411 = vsel %vm1332, %v1371, 0.0
    %v1412 = vsel %vm1333, %v1373, 0.0
    %v1413 = vsel %vm1333, %v1375, 0.0
    %v1414 = vsel %vm1334, %v1377, 0.0
    %v1415 = vsel %vm1334, %v1379, 0.0
    %v1416 = vsel %vm1335, %v1381, 0.0
    %v1417 = vsel %vm1335, %v1383, 0.0
    %v1418 = vsel %vm1336, %v1402, 0.0
    %v1419 = vsel %vm1336, %v1403, 0.0
    %v1420 = vadd.f32 %v876, %v1313
    %v1421 = vadd.f32 %v878, %v1314
    %v1422 = vadd.f32 %v949, %v1404
    %v1423 = vadd.f32 %v951, %v1405
    %v1424 = vadd.f32 %v880, %v1315
    %v1425 = vadd.f32 %v882, %v1316
    %v1426 = vadd.f32 %v953, %v1406
    %v1427 = vadd.f32 %v955, %v1407
    %v1428 = vadd.f32 %v886, %v1317
    %v1429 = vadd.f32 %v888, %v1318
    %v1430 = vadd.f32 %v959, %v1408
    %v1431 = vadd.f32 %v961, %v1409
    %v1432 = vadd.f32 %v890, %v1319
    %v1433 = vadd.f32 %v892, %v1320
    %v1434 = vadd.f32 %v963, %v1410
    %v1435 = vadd.f32 %v965, %v1411
    %v1436 = vadd.f32 %v896, %v1321
    %v1437 = vadd.f32 %v898, %v1322
    %v1438 = vadd.f32 %v969, %v1412
    %v1439 = vadd.f32 %v971, %v1413
    %v1440 = vadd.f32 %v900, %v1323
    %v1441 = vadd.f32 %v902, %v1324
    %v1442 = vadd.f32 %v973, %v1414
    %v1443 = vadd.f32 %v975, %v1415
    %v1444 = vadd.f32 %v906, %v1325
    %v1445 = vadd.f32 %v908, %v1326
    %v1446 = vadd.f32 %v979, %v1416
    %v1447 = vadd.f32 %v981, %v1417
    %v1448 = vadd.f32 %v910, %v1327
    %v1449 = vadd.f32 %v912, %v1328
    %v1450 = vadd.f32 %v983, %v1418
    %v1451 = vadd.f32 %v985, %v1419
    %v1452 = vtanh.pop %v1420
    %v1453 = vtanh.pop %v1421
    %v1454 = vtanh.pop %v1422
    %v1455 = vtanh.pop %v1423
    %v1456 = vtanh.pop %v1424
    %v1457 = vtanh.pop %v1425
    %v1458 = vtanh.pop %v1426
    %v1459 = vtanh.pop %v1427
    %v1460 = vtanh.pop %v1428
    %v1461 = vtanh.pop %v1429
    %v1462 = vtanh.pop %v1430
    %v1463 = vtanh.pop %v1431
    %v1464 = vtanh.pop %v1432
    %v1465 = vtanh.pop %v1433
    %v1466 = vtanh.pop %v1434
    %v1467 = vtanh.pop %v1435
    %v1468 = vtanh.pop %v1436
    %v1469 = vtanh.pop %v1437
    %v1470 = vtanh.pop %v1438
    %v1471 = vtanh.pop %v1439
    %v1472 = vtanh.pop %v1440
    %v1473 = vtanh.pop %v1441
    %v1474 = vtanh.pop %v1442
    %v1475 = vtanh.pop %v1443
    %v1476 = vtanh.pop %v1444
    %v1477 = vtanh.pop %v1445
    %v1478 = vtanh.pop %v1446
    %v1479 = vtanh.pop %v1447
    %v1480 = vtanh.pop %v1448
    %v1481 = vtanh.pop %v1449
    %v1482 = vtanh.pop %v1450
    %v1483 = vtanh.pop %v1451
    %1484 = vst [vmem:[%s2] sm:$0xff] %v1452
    %1485 = vst [vmem:[%s2 + $0x8] sm:$0xff] %v1453
    %1486 = vst [vmem:[%s2 + $0x10] sm:$0xff] %v1454
    %1487 = vst [vmem:[%s2 + $0x18] sm:$0xff] %v1455
    %1488 = vst [vmem:[%s2 + $0x20] sm:$0xff] %v1456
    %1489 = vst [vmem:[%s2 + $0x28] sm:$0xff] %v1457
    %1490 = vst [vmem:[%s2 + $0x30] sm:$0xff] %v1458
    %1491 = vst [vmem:[%s2 + $0x38] sm:$0xff] %v1459
    %1492 = vst [vmem:[%s2 + $0x40] sm:$0xff] %v1460
    %1493 = vst [vmem:[%s2 + $0x48] sm:$0xff] %v1461
    %1494 = vst [vmem:[%s2 + $0x50] sm:$0xff] %v1462
    %1495 = vst [vmem:[%s2 + $0x58] sm:$0xff] %v1463
    %1496 = vst [vmem:[%s2 + $0x60] sm:$0xff] %v1464
    %1497 = vst [vmem:[%s2 + $0x68] sm:$0xff] %v1465
    %1498 = vst [vmem:[%s2 + $0x70] sm:$0xff] %v1466
    %1499 = vst [vmem:[%s2 + $0x78] sm:$0xff] %v1467
    %1500 = vst [vmem:[%s2 + $0x80] sm:$0xff] %v1468
    %1501 = vst [vmem:[%s2 + $0x88] sm:$0xff] %v1469
    %1502 = vst [vmem:[%s2 + $0x90] sm:$0xff] %v1470
    %1503 = vst [vmem:[%s2 + $0x98] sm:$0xff] %v1471
    %1504 = vst [vmem:[%s2 + $0xa0] sm:$0xff] %v1472
    %1505 = vst [vmem:[%s2 + $0xa8] sm:$0xff] %v1473
    %1506 = vst [vmem:[%s2 + $0xb0] sm:$0xff] %v1474
    %1507 = vst [vmem:[%s2 + $0xb8] sm:$0xff] %v1475
    %1508 = vst [vmem:[%s2 + $0xc0] sm:$0xff] %v1476
    %1509 = vst [vmem:[%s2 + $0xc8] sm:$0xff] %v1477
    %1510 = vst [vmem:[%s2 + $0xd0] sm:$0xff] %v1478
    %1511 = vst [vmem:[%s2 + $0xd8] sm:$0xff] %v1479
    %1512 = vst [vmem:[%s2 + $0xe0] sm:$0xff] %v1480
    %1513 = vst [vmem:[%s2 + $0xe8] sm:$0xff] %v1481
    %1514 = vst [vmem:[%s2 + $0xf0] sm:$0xff] %v1482
    %1515 = vst [vmem:[%s2 + $0xf8] sm:$0xff] %v1483
    // Predicated region
    $region14: #{_lambda_.9} parent=1 // pred_check
      _
    $region15: #{_lambda_.9} parent=1 // pred_check_branch
      %1517 = sbr.rel (0) target = $region17
    $region16: #{_lambda_.9} parent=1 // pred_region
      _
    $region17: #{_lambda_.9} parent=1 // pred_fallthru
      _
    // Predicated region
    $region18: #{_lambda_.9} parent=1 // pred_check
      _
    $region19: #{_lambda_.9} parent=1 // pred_check_branch
      %1519 = sbr.rel (0) target = $region21
    $region20: #{_lambda_.9} parent=1 // pred_region
      _
    $region21: #{_lambda_.9} parent=1 // pred_fallthru
      _
    %1520 = vsyncpa [#allocation3], 1

</llo_original>
